<compile_context>
chip_gen: v7x
topology: tpu7x:2x2x1
jax: 0.10.0
libtpu: 0.0.40
codegen_flags: <defaults>
</compile_context>

<pallas_src>
import jax
import jax.numpy as jnp
from jax.experimental import pallas as pl
from jax.experimental.pallas import tpu as pltpu

LANES = 128  # packed-output lane width
TILE_GRAN = 1024  # tile_b granularity -> packed out block second-minor dim >= 8


def _round_up(v, m):
    return (v + m - 1) // m * m


def mlp_kernel(x_ref, w1_ref, b1_ref, w2_ref, b2_ref, w3_ref, b3_ref, o_ref):
    # In-kernel cast of the streamed x tile to bf16 (no separate XLA cast pass
    # over HBM); MXU accumulates in f32.
    x = x_ref[...].astype(jnp.bfloat16)

    # Layer 1: [TILE_B, D] @ [D, 128]   (bf16 operands, f32 accumulation, MXU)
    h1 = jnp.dot(x, w1_ref[...], preferred_element_type=jnp.float32)
    h1 = jnp.maximum(h1 + b1_ref[...], 0.0)

    # Layer 2: [TILE_B, 128] @ [128, 64]
    h2 = jnp.dot(h1.astype(jnp.bfloat16), w2_ref[...],
                 preferred_element_type=jnp.float32)
    h2 = jnp.maximum(h2 + b2_ref[...], 0.0)

    # Layer 3 ([*,64]x[64,1]): VPU broadcast-multiply + XLU lane reduce, emitted
    # directly in the lane-packed output layout. The leading-dim split
    # (TILE_B,64) -> (TILE_B//128, 128, 64) is layout-free (split at a multiple
    # of the sublane tiling), so no relayout copy is paid.
    g, lanes = o_ref.shape                       # (TILE_B // 128, 128)
    h2w = h2 * w3_ref[...]                       # (TILE_B, 64), VPU
    z = jnp.sum(h2w.reshape(g, lanes, -1), axis=-1) + b3_ref[...]   # (g, 128)

    # Sigmoid on the packed layout: one exp (EUP) + one divide per vreg block.
    o_ref[...] = 1.0 / (1.0 + jnp.exp(-z))


def classifier_forward(x, params, *, vmem_budget_bytes=40 * 1024 * 1024,
                       max_tile_b=8192):
    """x: [B, input_dim] float -> [B, 1] float32 probabilities."""
    w1, b1, w2, b2, w3, b3 = params
    B, D = x.shape

    # Batch tile from a VMEM budget: 2 double-buffered x tiles (HBM dtype) plus
    # ~2 KiB/row of f32/bf16 activations; multiple of 1024 rows; capped at
    # max_tile_b and at ~half the batch so big batches give >= 2 grid steps.
    bytes_per_row = 2 * D * x.dtype.itemsize + 2048
    tile_b = (vmem_budget_bytes // bytes_per_row) // TILE_GRAN * TILE_GRAN
    tile_b = int(max(TILE_GRAN, min(tile_b, max_tile_b)))
    tile_b = min(tile_b, max(TILE_GRAN, _round_up(pl.cdiv(B, 2), TILE_GRAN)))

    n_tiles = pl.cdiv(B, tile_b)
    g = tile_b // LANES                 # packed output rows per tile
    out_rows = n_tiles * g              # packed output rows total (>= ceil(B/128))

    # Weights/biases: constant block index -> DMA'd once, resident in VMEM.
    resident = lambda arr: pl.BlockSpec(arr.shape, lambda i: (0, 0))

    out = pl.pallas_call(
        mlp_kernel,
        out_shape=jax.ShapeDtypeStruct((out_rows, LANES), jnp.float32),
        grid=(n_tiles,),
        in_specs=[
            pl.BlockSpec((tile_b, D), lambda i: (i, 0)),   # x: streamed, double-buffered
            resident(w1), resident(b1),
            resident(w2), resident(b2),
            resident(w3), resident(b3),
        ],
        out_specs=pl.BlockSpec((g, LANES), lambda i: (i, 0)),
        compiler_params=pltpu.CompilerParams(
            dimension_semantics=("parallel",),             # 2 TCs on v7x; harmless elsewhere
            vmem_limit_bytes=48 * 1024 * 1024,             # > v5e/v6e defaults, < v7x physical
        ),
    )(x, w1, b1, w2, b2, w3, b3)

    # Unpack lanes back to a [B, 1] column. Rows >= B (ragged last tile) hold
    # garbage computed from unspecified pad data and are sliced off here.
    return out.reshape(-1)[:B].reshape(B, 1)


def init_params(key, input_dim):
    """Deterministic init mimicking nn.Linear's U(-1/sqrt(fan_in), 1/sqrt(fan_in)).

    Weights stored [in_features, out_features] (transposed vs. nn.Linear); the
    two MXU weights in bf16, biases in f32; w3 kept as a [1, 64] f32 row for the
    VPU reduction; b3 as [1, 1] f32.
    """
    dims = [(input_dim, 128), (128, 64), (64, 1)]
    raw = []
    for i, (fan_in, fan_out) in enumerate(dims):
        kw, kb = jax.random.split(jax.random.fold_in(key, i))
        bound = 1.0 / jnp.sqrt(float(fan_in))
        w = jax.random.uniform(kw, (fan_in, fan_out), jnp.float32, -bound, bound)
        b = jax.random.uniform(kb, (1, fan_out), jnp.float32, -bound, bound)
        raw += [w, b]
    w1, b1, w2, b2, w3, b3 = raw
    return (w1.astype(jnp.bfloat16), b1,
            w2.astype(jnp.bfloat16), b2,
            w3.reshape(1, 64), b3.reshape(1, 1))


def reference_forward(x, params):
    """Plain-JAX reference matching the kernel's precision choices."""
    w1, b1, w2, b2, w3, b3 = params
    f32 = jnp.float32
    xb = x.astype(jnp.bfloat16)
    h1 = jnp.maximum(jnp.dot(xb, w1, preferred_element_type=f32) + b1, 0.0)
    h2 = jnp.maximum(jnp.dot(h1.astype(jnp.bfloat16), w2,
                             preferred_element_type=f32) + b2, 0.0)
    z = jnp.sum(h2 * w3, axis=-1, keepdims=True) + b3
    return 1.0 / (1.0 + jnp.exp(-z))


if __name__ == "__main__":
    key = jax.random.PRNGKey(0)
    k_x, k_p = jax.random.split(key)

    batch, input_dim = 8, 32
    x = jax.random.normal(k_x, (batch, input_dim), jnp.float32)
    params = init_params(k_p, input_dim)

    out = classifier_forward(x, params)
    out = jax.block_until_ready(out)

    ref = reference_forward(x, params)
    assert out.shape == (batch, 1)
    assert bool(jnp.all(jnp.isfinite(out)))
    assert jnp.allclose(out, ref, atol=5e-3, rtol=1e-3)

    print("KERNEL_OK")
</pallas_src>

<mosaic_0001>
module attributes {stable_mosaic.version = 11 : i64} {
  func.func @mlp_kernel(%arg0: i32, %arg1: memref<1024x32xf32, #tpu.memory_space<vmem>>, %arg2: memref<32x128xbf16, #tpu.memory_space<vmem>>, %arg3: memref<1x128xf32, #tpu.memory_space<vmem>>, %arg4: memref<128x64xbf16, #tpu.memory_space<vmem>>, %arg5: memref<1x64xf32, #tpu.memory_space<vmem>>, %arg6: memref<1x64xf32, #tpu.memory_space<vmem>>, %arg7: memref<1x1xf32, #tpu.memory_space<vmem>>, %arg8: memref<8x128xf32, #tpu.memory_space<vmem>>) attributes {dimension_semantics = [#tpu.dimension_semantics<parallel>], iteration_bounds = array<i64: 1>, scalar_prefetch = 0 : i64, scratch_operands = 0 : i64, tpu.core_type = #tpu.core_type<tc>, window_params = [{transform_indices = @transform_0, window_bounds = array<i64: 1024, 32>}, {pipeline_mode = #tpu.pipeline_mode<synchronous>, transform_indices = @transform_1, window_bounds = array<i64: 32, 128>}, {pipeline_mode = #tpu.pipeline_mode<synchronous>, transform_indices = @transform_2, window_bounds = array<i64: 1, 128>}, {pipeline_mode = #tpu.pipeline_mode<synchronous>, transform_indices = @transform_3, window_bounds = array<i64: 128, 64>}, {pipeline_mode = #tpu.pipeline_mode<synchronous>, transform_indices = @transform_4, window_bounds = array<i64: 1, 64>}, {pipeline_mode = #tpu.pipeline_mode<synchronous>, transform_indices = @transform_5, window_bounds = array<i64: 1, 64>}, {pipeline_mode = #tpu.pipeline_mode<synchronous>, transform_indices = @transform_6, window_bounds = array<i64: 1, 1>}, {transform_indices = @transform_7, window_bounds = array<i64: 8, 128>}]} {
    %c0 = arith.constant 0 : index
    %c0_0 = arith.constant 0 : index
    %0 = vector.load %arg1[%c0, %c0_0] : memref<1024x32xf32, #tpu.memory_space<vmem>>, vector<1024x32xf32>
    %1 = arith.truncf %0 : vector<1024x32xf32> to vector<1024x32xbf16>
    %c0_1 = arith.constant 0 : index
    %c0_2 = arith.constant 0 : index
    %2 = vector.load %arg2[%c0_1, %c0_2] : memref<32x128xbf16, #tpu.memory_space<vmem>>, vector<32x128xbf16>
    %cst = arith.constant dense<0.000000e+00> : vector<1024x128xf32>
    %3 = tpu.matmul %1, %2, %cst {dimension_numbers = #tpu.dot_dimension_numbers<[1], [0], [0], [1], [0, 0, 1, 1], [], []>} : vector<1024x32xbf16>, vector<32x128xbf16>, vector<1024x128xf32> -> vector<1024x128xf32>
    %c0_3 = arith.constant 0 : index
    %c0_4 = arith.constant 0 : index
    %4 = vector.load %arg3[%c0_3, %c0_4] : memref<1x128xf32, #tpu.memory_space<vmem>>, vector<1x128xf32>
    %5 = vector.broadcast %4 : vector<1x128xf32> to vector<1024x128xf32>
    %6 = arith.addf %3, %5 : vector<1024x128xf32>
    %cst_5 = arith.constant 0.000000e+00 : f32
    %7 = vector.broadcast %cst_5 : f32 to vector<1024x128xf32>
    %8 = arith.maximumf %6, %7 : vector<1024x128xf32>
    %9 = arith.truncf %8 : vector<1024x128xf32> to vector<1024x128xbf16>
    %c0_6 = arith.constant 0 : index
    %c0_7 = arith.constant 0 : index
    %10 = vector.load %arg4[%c0_6, %c0_7] : memref<128x64xbf16, #tpu.memory_space<vmem>>, vector<128x64xbf16>
    %cst_8 = arith.constant dense<0.000000e+00> : vector<1024x64xf32>
    %11 = tpu.matmul %9, %10, %cst_8 {dimension_numbers = #tpu.dot_dimension_numbers<[1], [0], [0], [1], [0, 0, 1, 1], [], []>} : vector<1024x128xbf16>, vector<128x64xbf16>, vector<1024x64xf32> -> vector<1024x64xf32>
    %c0_9 = arith.constant 0 : index
    %c0_10 = arith.constant 0 : index
    %12 = vector.load %arg5[%c0_9, %c0_10] : memref<1x64xf32, #tpu.memory_space<vmem>>, vector<1x64xf32>
    %13 = vector.broadcast %12 : vector<1x64xf32> to vector<1024x64xf32>
    %14 = arith.addf %11, %13 : vector<1024x64xf32>
    %cst_11 = arith.constant 0.000000e+00 : f32
    %15 = vector.broadcast %cst_11 : f32 to vector<1024x64xf32>
    %16 = arith.maximumf %14, %15 : vector<1024x64xf32>
    %c0_12 = arith.constant 0 : index
    %c0_13 = arith.constant 0 : index
    %17 = vector.load %arg6[%c0_12, %c0_13] : memref<1x64xf32, #tpu.memory_space<vmem>>, vector<1x64xf32>
    %18 = vector.broadcast %17 : vector<1x64xf32> to vector<1024x64xf32>
    %19 = arith.mulf %16, %18 : vector<1024x64xf32>
    %20 = vector.shape_cast %19 : vector<1024x64xf32> to vector<8x128x64xf32>
    %cst_14 = arith.constant dense<0.000000e+00> : vector<8x128xf32>
    %21 = vector.multi_reduction <add>, %20, %cst_14 [2] : vector<8x128x64xf32> to vector<8x128xf32>
    %c0_15 = arith.constant 0 : index
    %c0_16 = arith.constant 0 : index
    %22 = vector.load %arg7[%c0_15, %c0_16] : memref<1x1xf32, #tpu.memory_space<vmem>>, vector<1x1xf32>
    %23 = vector.broadcast %22 : vector<1x1xf32> to vector<8x128xf32>
    %24 = arith.addf %21, %23 : vector<8x128xf32>
    %cst_17 = arith.constant 0.000000e+00 : f32
    %25 = vector.broadcast %cst_17 : f32 to vector<8x128xf32>
    %26 = arith.subf %25, %24 : vector<8x128xf32>
    %27 = math.exp %26 : vector<8x128xf32>
    %cst_18 = arith.constant 1.000000e+00 : f32
    %28 = vector.broadcast %cst_18 : f32 to vector<8x128xf32>
    %29 = arith.addf %28, %27 : vector<8x128xf32>
    %cst_19 = arith.constant 1.000000e+00 : f32
    %30 = vector.broadcast %cst_19 : f32 to vector<8x128xf32>
    %31 = arith.divf %30, %29 : vector<8x128xf32>
    %c0_20 = arith.constant 0 : index
    %c0_21 = arith.constant 0 : index
    %32 = vector.load %arg8[%c0_20, %c0_21] : memref<8x128xf32, #tpu.memory_space<vmem>>, vector<8x128xf32>
    tpu.vector_store %arg8[%c0_20, %c0_21], %31 {strides = array<i32>} : memref<8x128xf32, #tpu.memory_space<vmem>>, vector<8x128xf32>,
    return
  }
  func.func @transform_0(%arg0: i32) -> (i32, i32) {
    %c0_i32 = arith.constant 0 : i32
    %c0_i32_0 = arith.constant 0 : i32
    return %arg0, %c0_i32 : i32, i32
  }
  func.func @transform_1(%arg0: i32) -> (i32, i32) {
    %c0_i32 = arith.constant 0 : i32
    %c0_i32_0 = arith.constant 0 : i32
    %c0_i32_1 = arith.constant 0 : i32
    return %c0_i32, %c0_i32_0 : i32, i32
  }
  func.func @transform_2(%arg0: i32) -> (i32, i32) {
    %c0_i32 = arith.constant 0 : i32
    %c0_i32_0 = arith.constant 0 : i32
    %c0_i32_1 = arith.constant 0 : i32
    return %c0_i32, %c0_i32_0 : i32, i32
  }
  func.func @transform_3(%arg0: i32) -> (i32, i32) {
    %c0_i32 = arith.constant 0 : i32
    %c0_i32_0 = arith.constant 0 : i32
    %c0_i32_1 = arith.constant 0 : i32
    return %c0_i32, %c0_i32_0 : i32, i32
  }
  func.func @transform_4(%arg0: i32) -> (i32, i32) {
    %c0_i32 = arith.constant 0 : i32
    %c0_i32_0 = arith.constant 0 : i32
    %c0_i32_1 = arith.constant 0 : i32
    return %c0_i32, %c0_i32_0 : i32, i32
  }
  func.func @transform_5(%arg0: i32) -> (i32, i32) {
    %c0_i32 = arith.constant 0 : i32
    %c0_i32_0 = arith.constant 0 : i32
    %c0_i32_1 = arith.constant 0 : i32
    return %c0_i32, %c0_i32_0 : i32, i32
  }
  func.func @transform_6(%arg0: i32) -> (i32, i32) {
    %c0_i32 = arith.constant 0 : i32
    %c0_i32_0 = arith.constant 0 : i32
    %c0_i32_1 = arith.constant 0 : i32
    return %c0_i32, %c0_i32_0 : i32, i32
  }
  func.func @transform_7(%arg0: i32) -> (i32, i32) {
    %c0_i32 = arith.constant 0 : i32
    %c0_i32_0 = arith.constant 0 : i32
    return %arg0, %c0_i32 : i32, i32
  }
}

</mosaic_0001>

<llo_original>
// kernel: tpu_custom_call.1
$region0: #{tpu_custom_call.1}
  #allocation0 [shape = 'u32[]', space=smem, size = 0x4, offset = 0x4, fixed_abs, tag = 'smem constant byte address 0x4 - core index']
  #allocation1 [shape = 'u32[144,128]{1,0:T(1,128)}', space=vmem, size = 0x12000, scoped, tag = 'internal scratch']
  #allocation2 [shape = 'f32[1,1]{1,0:T(1,128)S(1)}', space=vmem, size = 0x200, scoped, tag = 'scoped memory for tpu_custom_call.1']
  %s0 = inlined_call_operand.vmem [shape: f32[8,32], index: 0, kind: input, shape index: {}]
  %s1 = inlined_call_operand.vmem [shape: bf16[32,128], index: 1, kind: input, shape index: {}]
  %s2 = inlined_call_operand.vmem [shape: f32[1,128], index: 2, kind: input, shape index: {}]
  %s3 = inlined_call_operand.vmem [shape: bf16[128,64], index: 3, kind: input, shape index: {}]
  %s4 = inlined_call_operand.vmem [shape: f32[1,64], index: 4, kind: input, shape index: {}]
  %s5 = inlined_call_operand.vmem [shape: f32[1,64], index: 5, kind: input, shape index: {}]
  %s6 = inlined_call_operand.<no memory space> [shape: f32[1,1], index: 6, kind: input, shape index: {}]
  %s7 = inlined_call_operand.hbm [shape: f32[8,128], index: 7, kind: output, shape index: {}]
  %s8 = sld [smem:[#allocation0]]
  $region38: #{tpu_custom_call.1} parent=0
    _
  %s10 = ssub.s32 1, %s8
  %s11 = scalar_select 0, %s10, %s8
  %v12 = vstv %s6
  %13 = vst [vmem:[#allocation2] sm:$0x1] %v12
  $region1: #{tpu_custom_call.1} parent=0
    #allocation3 [shape = 'u8[4096]{0}', space=vmem, size = 0x1000, scoped, tag = 'output window, operand 0, single buffered']
    #allocation4 [shape = 's32[1]{0}', space=sflag, size = 0x4, scoped, tag = 'scoped memory for tpu_custom_call.1']
    %14 = vsyncpa [#allocation4], 0
    // Predicated region
    $region2: #{tpu_custom_call.1} parent=1 // pred_check
      _
    $region3: #{tpu_custom_call.1} parent=1 // pred_check_branch
      %16 = sbr.rel (0) target = $region5
    $region4: #{tpu_custom_call.1} parent=1 // pred_region
      _
    $region5: #{tpu_custom_call.1} parent=1 // pred_fallthru
      _
    // Predicated region
    $region6: #{tpu_custom_call.1} parent=1 // pred_check
      _
    $region7: #{tpu_custom_call.1} parent=1 // pred_check_branch
      %18 = sbr.rel (0) target = $region9
    $region8: #{tpu_custom_call.1} parent=1 // pred_region
      _
    $region9: #{tpu_custom_call.1} parent=1 // pred_fallthru
      _
    // Predicated region
    $region10: #{tpu_custom_call.1} parent=1 // pred_check
      _
    $region11: #{tpu_custom_call.1} parent=1 // pred_check_branch
      %20 = sbr.rel (0) target = $region13
    $region12: #{tpu_custom_call.1} parent=1 // pred_region
      _
    $region13: #{tpu_custom_call.1} parent=1 // pred_fallthru
      _
    // Predicated region
    $region14: #{tpu_custom_call.1} parent=1 // pred_check
      _
    $region15: #{tpu_custom_call.1} parent=1 // pred_check_branch
      %22 = sbr.rel (0) target = $region17
    $region16: #{tpu_custom_call.1} parent=1 // pred_region
      _
    $region17: #{tpu_custom_call.1} parent=1 // pred_fallthru
      _
    // Predicated region
    $region18: #{tpu_custom_call.1} parent=1 // pred_check
      _
    $region19: #{tpu_custom_call.1} parent=1 // pred_check_branch
      %24 = sbr.rel (0) target = $region21
    $region20: #{tpu_custom_call.1} parent=1 // pred_region
      _
    $region21: #{tpu_custom_call.1} parent=1 // pred_fallthru
      _
    // Predicated region
    $region22: #{tpu_custom_call.1} parent=1 // pred_check
      _
    $region23: #{tpu_custom_call.1} parent=1 // pred_check_branch
      %26 = sbr.rel (0) target = $region25
    $region24: #{tpu_custom_call.1} parent=1 // pred_region
      _
    $region25: #{tpu_custom_call.1} parent=1 // pred_fallthru
      _
    // Predicated region
    $region26: #{tpu_custom_call.1} parent=1 // pred_check
      _
    $region27: #{tpu_custom_call.1} parent=1 // pred_check_branch
      %28 = sbr.rel (0) target = $region29
    $region28: #{tpu_custom_call.1} parent=1 // pred_region
      _
    $region29: #{tpu_custom_call.1} parent=1 // pred_fallthru
      _
    %v30 = vld [vmem:[%s0] sm:$0xff]
    %v31 = vld [vmem:[%s0 + $0x8] sm:$0xff]
    %v32 = vld [vmem:[%s0 + $0x10] sm:$0xff]
    %v33 = vld [vmem:[%s0 + $0x18] sm:$0xff]
    %v34 = vld [vmem:[%s0 + $0x20] sm:$0xff]
    %v35 = vld [vmem:[%s0 + $0x28] sm:$0xff]
    %v36 = vld [vmem:[%s0 + $0x30] sm:$0xff]
    %v37 = vld [vmem:[%s0 + $0x38] sm:$0xff]
    %v38 = vld [vmem:[%s0 + $0x40] sm:$0xff]
    %v39 = vld [vmem:[%s0 + $0x48] sm:$0xff]
    %v40 = vld [vmem:[%s0 + $0x50] sm:$0xff]
    %v41 = vld [vmem:[%s0 + $0x58] sm:$0xff]
    %v42 = vld [vmem:[%s0 + $0x60] sm:$0xff]
    %v43 = vld [vmem:[%s0 + $0x68] sm:$0xff]
    %v44 = vld [vmem:[%s0 + $0x70] sm:$0xff]
    %v45 = vld [vmem:[%s0 + $0x78] sm:$0xff]
    %v46 = vld [vmem:[%s0 + $0x80] sm:$0xff]
    %v47 = vld [vmem:[%s0 + $0x88] sm:$0xff]
    %v48 = vld [vmem:[%s0 + $0x90] sm:$0xff]
    %v49 = vld [vmem:[%s0 + $0x98] sm:$0xff]
    %v50 = vld [vmem:[%s0 + $0xa0] sm:$0xff]
    %v51 = vld [vmem:[%s0 + $0xa8] sm:$0xff]
    %v52 = vld [vmem:[%s0 + $0xb0] sm:$0xff]
    %v53 = vld [vmem:[%s0 + $0xb8] sm:$0xff]
    %v54 = vld [vmem:[%s0 + $0xc0] sm:$0xff]
    %v55 = vld [vmem:[%s0 + $0xc8] sm:$0xff]
    %v56 = vld [vmem:[%s0 + $0xd0] sm:$0xff]
    %v57 = vld [vmem:[%s0 + $0xd8] sm:$0xff]
    %v58 = vld [vmem:[%s0 + $0xe0] sm:$0xff]
    %v59 = vld [vmem:[%s0 + $0xe8] sm:$0xff]
    %v60 = vld [vmem:[%s0 + $0xf0] sm:$0xff]
    %v61 = vld [vmem:[%s0 + $0xf8] sm:$0xff]
    %v62 = vld [vmem:[%s0 + $0x100] sm:$0xff]
    %v63 = vld [vmem:[%s0 + $0x108] sm:$0xff]
    %v64 = vld [vmem:[%s0 + $0x110] sm:$0xff]
    %v65 = vld [vmem:[%s0 + $0x118] sm:$0xff]
    %v66 = vld [vmem:[%s0 + $0x120] sm:$0xff]
    %v67 = vld [vmem:[%s0 + $0x128] sm:$0xff]
    %v68 = vld [vmem:[%s0 + $0x130] sm:$0xff]
    %v69 = vld [vmem:[%s0 + $0x138] sm:$0xff]
    %v70 = vld [vmem:[%s0 + $0x140] sm:$0xff]
    %v71 = vld [vmem:[%s0 + $0x148] sm:$0xff]
    %v72 = vld [vmem:[%s0 + $0x150] sm:$0xff]
    %v73 = vld [vmem:[%s0 + $0x158] sm:$0xff]
    %v74 = vld [vmem:[%s0 + $0x160] sm:$0xff]
    %v75 = vld [vmem:[%s0 + $0x168] sm:$0xff]
    %v76 = vld [vmem:[%s0 + $0x170] sm:$0xff]
    %v77 = vld [vmem:[%s0 + $0x178] sm:$0xff]
    %v78 = vld [vmem:[%s0 + $0x180] sm:$0xff]
    %v79 = vld [vmem:[%s0 + $0x188] sm:$0xff]
    %v80 = vld [vmem:[%s0 + $0x190] sm:$0xff]
    %v81 = vld [vmem:[%s0 + $0x198] sm:$0xff]
    %v82 = vld [vmem:[%s0 + $0x1a0] sm:$0xff]
    %v83 = vld [vmem:[%s0 + $0x1a8] sm:$0xff]
    %v84 = vld [vmem:[%s0 + $0x1b0] sm:$0xff]
    %v85 = vld [vmem:[%s0 + $0x1b8] sm:$0xff]
    %v86 = vld [vmem:[%s0 + $0x1c0] sm:$0xff]
    %v87 = vld [vmem:[%s0 + $0x1c8] sm:$0xff]
    %v88 = vld [vmem:[%s0 + $0x1d0] sm:$0xff]
    %v89 = vld [vmem:[%s0 + $0x1d8] sm:$0xff]
    %v90 = vld [vmem:[%s0 + $0x1e0] sm:$0xff]
    %v91 = vld [vmem:[%s0 + $0x1e8] sm:$0xff]
    %v92 = vld [vmem:[%s0 + $0x1f0] sm:$0xff]
    %v93 = vld [vmem:[%s0 + $0x1f8] sm:$0xff]
    %v94 = vld [vmem:[%s0 + $0x200] sm:$0xff]
    %v95 = vld [vmem:[%s0 + $0x208] sm:$0xff]
    %v96 = vld [vmem:[%s0 + $0x210] sm:$0xff]
    %v97 = vld [vmem:[%s0 + $0x218] sm:$0xff]
    %v98 = vld [vmem:[%s0 + $0x220] sm:$0xff]
    %v99 = vld [vmem:[%s0 + $0x228] sm:$0xff]
    %v100 = vld [vmem:[%s0 + $0x230] sm:$0xff]
    %v101 = vld [vmem:[%s0 + $0x238] sm:$0xff]
    %v102 = vld [vmem:[%s0 + $0x240] sm:$0xff]
    %v103 = vld [vmem:[%s0 + $0x248] sm:$0xff]
    %v104 = vld [vmem:[%s0 + $0x250] sm:$0xff]
    %v105 = vld [vmem:[%s0 + $0x258] sm:$0xff]
    %v106 = vld [vmem:[%s0 + $0x260] sm:$0xff]
    %v107 = vld [vmem:[%s0 + $0x268] sm:$0xff]
    %v108 = vld [vmem:[%s0 + $0x270] sm:$0xff]
    %v109 = vld [vmem:[%s0 + $0x278] sm:$0xff]
    %v110 = vld [vmem:[%s0 + $0x280] sm:$0xff]
    %v111 = vld [vmem:[%s0 + $0x288] sm:$0xff]
    %v112 = vld [vmem:[%s0 + $0x290] sm:$0xff]
    %v113 = vld [vmem:[%s0 + $0x298] sm:$0xff]
    %v114 = vld [vmem:[%s0 + $0x2a0] sm:$0xff]
    %v115 = vld [vmem:[%s0 + $0x2a8] sm:$0xff]
    %v116 = vld [vmem:[%s0 + $0x2b0] sm:$0xff]
    %v117 = vld [vmem:[%s0 + $0x2b8] sm:$0xff]
    %v118 = vld [vmem:[%s0 + $0x2c0] sm:$0xff]
    %v119 = vld [vmem:[%s0 + $0x2c8] sm:$0xff]
    %v120 = vld [vmem:[%s0 + $0x2d0] sm:$0xff]
    %v121 = vld [vmem:[%s0 + $0x2d8] sm:$0xff]
    %v122 = vld [vmem:[%s0 + $0x2e0] sm:$0xff]
    %v123 = vld [vmem:[%s0 + $0x2e8] sm:$0xff]
    %v124 = vld [vmem:[%s0 + $0x2f0] sm:$0xff]
    %v125 = vld [vmem:[%s0 + $0x2f8] sm:$0xff]
    %v126 = vld [vmem:[%s0 + $0x300] sm:$0xff]
    %v127 = vld [vmem:[%s0 + $0x308] sm:$0xff]
    %v128 = vld [vmem:[%s0 + $0x310] sm:$0xff]
    %v129 = vld [vmem:[%s0 + $0x318] sm:$0xff]
    %v130 = vld [vmem:[%s0 + $0x320] sm:$0xff]
    %v131 = vld [vmem:[%s0 + $0x328] sm:$0xff]
    %v132 = vld [vmem:[%s0 + $0x330] sm:$0xff]
    %v133 = vld [vmem:[%s0 + $0x338] sm:$0xff]
    %v134 = vld [vmem:[%s0 + $0x340] sm:$0xff]
    %v135 = vld [vmem:[%s0 + $0x348] sm:$0xff]
    %v136 = vld [vmem:[%s0 + $0x350] sm:$0xff]
    %v137 = vld [vmem:[%s0 + $0x358] sm:$0xff]
    %v138 = vld [vmem:[%s0 + $0x360] sm:$0xff]
    %v139 = vld [vmem:[%s0 + $0x368] sm:$0xff]
    %v140 = vld [vmem:[%s0 + $0x370] sm:$0xff]
    %v141 = vld [vmem:[%s0 + $0x378] sm:$0xff]
    %v142 = vld [vmem:[%s0 + $0x380] sm:$0xff]
    %v143 = vld [vmem:[%s0 + $0x388] sm:$0xff]
    %v144 = vld [vmem:[%s0 + $0x390] sm:$0xff]
    %v145 = vld [vmem:[%s0 + $0x398] sm:$0xff]
    %v146 = vld [vmem:[%s0 + $0x3a0] sm:$0xff]
    %v147 = vld [vmem:[%s0 + $0x3a8] sm:$0xff]
    %v148 = vld [vmem:[%s0 + $0x3b0] sm:$0xff]
    %v149 = vld [vmem:[%s0 + $0x3b8] sm:$0xff]
    %v150 = vld [vmem:[%s0 + $0x3c0] sm:$0xff]
    %v151 = vld [vmem:[%s0 + $0x3c8] sm:$0xff]
    %v152 = vld [vmem:[%s0 + $0x3d0] sm:$0xff]
    %v153 = vld [vmem:[%s0 + $0x3d8] sm:$0xff]
    %v154 = vld [vmem:[%s0 + $0x3e0] sm:$0xff]
    %v155 = vld [vmem:[%s0 + $0x3e8] sm:$0xff]
    %v156 = vld [vmem:[%s0 + $0x3f0] sm:$0xff]
    %v157 = vld [vmem:[%s0 + $0x3f8] sm:$0xff]
    %v158 = vpack.c.bf16 %v31, %v30
    %v159 = vpack.c.bf16 %v33, %v32
    %v160 = vpack.c.bf16 %v35, %v34
    %v161 = vpack.c.bf16 %v37, %v36
    %v162 = vpack.c.bf16 %v39, %v38
    %v163 = vpack.c.bf16 %v41, %v40
    %v164 = vpack.c.bf16 %v43, %v42
    %v165 = vpack.c.bf16 %v45, %v44
    %v166 = vpack.c.bf16 %v47, %v46
    %v167 = vpack.c.bf16 %v49, %v48
    %v168 = vpack.c.bf16 %v51, %v50
    %v169 = vpack.c.bf16 %v53, %v52
    %v170 = vpack.c.bf16 %v55, %v54
    %v171 = vpack.c.bf16 %v57, %v56
    %v172 = vpack.c.bf16 %v59, %v58
    %v173 = vpack.c.bf16 %v61, %v60
    %v174 = vpack.c.bf16 %v63, %v62
    %v175 = vpack.c.bf16 %v65, %v64
    %v176 = vpack.c.bf16 %v67, %v66
    %v177 = vpack.c.bf16 %v69, %v68
    %v178 = vpack.c.bf16 %v71, %v70
    %v179 = vpack.c.bf16 %v73, %v72
    %v180 = vpack.c.bf16 %v75, %v74
    %v181 = vpack.c.bf16 %v77, %v76
    %v182 = vpack.c.bf16 %v79, %v78
    %v183 = vpack.c.bf16 %v81, %v80
    %v184 = vpack.c.bf16 %v83, %v82
    %v185 = vpack.c.bf16 %v85, %v84
    %v186 = vpack.c.bf16 %v87, %v86
    %v187 = vpack.c.bf16 %v89, %v88
    %v188 = vpack.c.bf16 %v91, %v90
    %v189 = vpack.c.bf16 %v93, %v92
    %v190 = vpack.c.bf16 %v95, %v94
    %v191 = vpack.c.bf16 %v97, %v96
    %v192 = vpack.c.bf16 %v99, %v98
    %v193 = vpack.c.bf16 %v101, %v100
    %v194 = vpack.c.bf16 %v103, %v102
    %v195 = vpack.c.bf16 %v105, %v104
    %v196 = vpack.c.bf16 %v107, %v106
    %v197 = vpack.c.bf16 %v109, %v108
    %v198 = vpack.c.bf16 %v111, %v110
    %v199 = vpack.c.bf16 %v113, %v112
    %v200 = vpack.c.bf16 %v115, %v114
    %v201 = vpack.c.bf16 %v117, %v116
    %v202 = vpack.c.bf16 %v119, %v118
    %v203 = vpack.c.bf16 %v121, %v120
    %v204 = vpack.c.bf16 %v123, %v122
    %v205 = vpack.c.bf16 %v125, %v124
    %v206 = vpack.c.bf16 %v127, %v126
    %v207 = vpack.c.bf16 %v129, %v128
    %v208 = vpack.c.bf16 %v131, %v130
    %v209 = vpack.c.bf16 %v133, %v132
    %v210 = vpack.c.bf16 %v135, %v134
    %v211 = vpack.c.bf16 %v137, %v136
    %v212 = vpack.c.bf16 %v139, %v138
    %v213 = vpack.c.bf16 %v141, %v140
    %v214 = vpack.c.bf16 %v143, %v142
    %v215 = vpack.c.bf16 %v145, %v144
    %v216 = vpack.c.bf16 %v147, %v146
    %v217 = vpack.c.bf16 %v149, %v148
    %v218 = vpack.c.bf16 %v151, %v150
    %v219 = vpack.c.bf16 %v153, %v152
    %v220 = vpack.c.bf16 %v155, %v154
    %v221 = vpack.c.bf16 %v157, %v156
    %v222 = vld [vmem:[%s1] sm:$0xf]
    %v223 = vld [vmem:[%s1 + $0x4] sm:$0xf]
    %v224 = vld [vmem:[%s1 + $0x8] sm:$0xf]
    %v225 = vld [vmem:[%s1 + $0xc] sm:$0xf]
    %v226 = vld [vmem:[%s2] sm:$0x1]
    %v228 = vlaneseq
    %v229 = vshrl.u32 %v228, 7
    %v230 = vsub.s32 0, %v229
    %v231 = vrot.slane %v226, %v230
    %v237 = vunpack.c.l.b16 %v222
    %v238 = vunpack.c.l.b16 %v223
    %v239 = vunpack.c.l.b16 %v224
    %v240 = vunpack.c.l.b16 %v225
    %v241 = vpack.c.b16 %v238, %v237
    %v242 = vpack.c.b16 %v240, %v239
    %vm245 = vcmask 261120
    %v247 = vsel %vm245, %v158, 0
    %v250 = vsel %vm245, %v159, 0
    %v253 = vsel %vm245, %v160, 0
    %v256 = vsel %vm245, %v161, 0
    %v259 = vsel %vm245, %v162, 0
    %v262 = vsel %vm245, %v163, 0
    %v265 = vsel %vm245, %v164, 0
    %v268 = vsel %vm245, %v165, 0
    %v271 = vsel %vm245, %v166, 0
    %v274 = vsel %vm245, %v167, 0
    %v277 = vsel %vm245, %v168, 0
    %v280 = vsel %vm245, %v169, 0
    %v283 = vsel %vm245, %v170, 0
    %v286 = vsel %vm245, %v171, 0
    %v289 = vsel %vm245, %v172, 0
    %v292 = vsel %vm245, %v173, 0
    %v295 = vsel %vm245, %v174, 0
    %v298 = vsel %vm245, %v175, 0
    %v301 = vsel %vm245, %v176, 0
    %v304 = vsel %vm245, %v177, 0
    %v307 = vsel %vm245, %v178, 0
    %v310 = vsel %vm245, %v179, 0
    %v313 = vsel %vm245, %v180, 0
    %v316 = vsel %vm245, %v181, 0
    %v319 = vsel %vm245, %v182, 0
    %v322 = vsel %vm245, %v183, 0
    %v325 = vsel %vm245, %v184, 0
    %v328 = vsel %vm245, %v185, 0
    %v331 = vsel %vm245, %v186, 0
    %v334 = vsel %vm245, %v187, 0
    %v337 = vsel %vm245, %v188, 0
    %v340 = vsel %vm245, %v189, 0
    %v343 = vsel %vm245, %v190, 0
    %v346 = vsel %vm245, %v191, 0
    %v349 = vsel %vm245, %v192, 0
    %v352 = vsel %vm245, %v193, 0
    %v355 = vsel %vm245, %v194, 0
    %v358 = vsel %vm245, %v195, 0
    %v361 = vsel %vm245, %v196, 0
    %v364 = vsel %vm245, %v197, 0
    %v367 = vsel %vm245, %v198, 0
    %v370 = vsel %vm245, %v199, 0
    %v373 = vsel %vm245, %v200, 0
    %v376 = vsel %vm245, %v201, 0
    %v379 = vsel %vm245, %v202, 0
    %v382 = vsel %vm245, %v203, 0
    %v385 = vsel %vm245, %v204, 0
    %v388 = vsel %vm245, %v205, 0
    %v391 = vsel %vm245, %v206, 0
    %v394 = vsel %vm245, %v207, 0
    %v397 = vsel %vm245, %v208, 0
    %v400 = vsel %vm245, %v209, 0
    %v403 = vsel %vm245, %v210, 0
    %v406 = vsel %vm245, %v211, 0
    %v409 = vsel %vm245, %v212, 0
    %v412 = vsel %vm245, %v213, 0
    %v415 = vsel %vm245, %v214, 0
    %v418 = vsel %vm245, %v215, 0
    %v421 = vsel %vm245, %v216, 0
    %v424 = vsel %vm245, %v217, 0
    %v427 = vsel %vm245, %v218, 0
    %v430 = vsel %vm245, %v219, 0
    %v433 = vsel %vm245, %v220, 0
    %v436 = vsel %vm245, %v221, 0
    %438 = vmatprep.subr.bf16.mxu0 0
    %439 = vmatpush1.bf16.msra.mxu0 %v241
    %440 = vmatprep.subr.bf16.mxu0 0
    %441 = vmatpush1.bf16.msra.mxu0 %v242
    %442 = vmatprep.subr.bf16.mxu0 0
    %443 = vmatpush1.bf16.msra.mxu0 0
    %444 = vmatprep.subr.bf16.mxu0 0
    %445 = vmatpush1.bf16.msra.mxu0 0
    %446 = vmatprep.subr.bf16.mxu0 0
    %447 = vmatpush1.bf16.msra.mxu0 0
    %448 = vmatprep.subr.bf16.mxu0 0
    %449 = vmatpush1.bf16.msra.mxu0 0
    %450 = vmatprep.subr.bf16.mxu0 0
    %451 = vmatpush1.bf16.msra.mxu0 0
    %452 = vmatprep.subr.bf16.mxu0 0
    %453 = vmatpush1.bf16.msra.mxu0 0
    %454 = vmatprep.subr.bf16.mxu0 0
    %455 = vmatpush1.bf16.msra.mxu0 0
    %456 = vmatprep.subr.bf16.mxu0 0
    %457 = vmatpush1.bf16.msra.mxu0 0
    %458 = vmatprep.subr.bf16.mxu0 0
    %459 = vmatpush1.bf16.msra.mxu0 0
    %460 = vmatprep.subr.bf16.mxu0 0
    %461 = vmatpush1.bf16.msra.mxu0 0
    %462 = vmatprep.subr.bf16.mxu0 0
    %463 = vmatpush1.bf16.msra.mxu0 0
    %464 = vmatprep.subr.bf16.mxu0 0
    %465 = vmatpush1.bf16.msra.mxu0 0
    %466 = vmatprep.subr.bf16.mxu0 0
    %467 = vmatpush1.bf16.msra.mxu0 0
    %468 = vmatprep.subr.bf16.mxu0 0
    %469 = vmatpush1.bf16.msra.mxu0 0
    %470 = vmatprep.mubr.bf16.mxu0 0
    %471 = vmatmul.mubr.bf16.gmra.mrb[0].mxu0 %v247
    %v472 = vpop.f32.mrb[0].mxu0
    %v473 = vadd.f32 %v231, %v472
    %v474 = vpop.f32.mrb[0].mxu0
    %v475 = vpop.f32.mrb[0].mxu0
    %v476 = vadd.f32 %v231, %v475
    %v477 = vpop.f32.mrb[0].mxu0
    %478 = vmatprep.mubr.bf16.mxu0 0
    %479 = vmatmul.mubr.bf16.gmra.mrb[0].mxu0 %v250
    %v480 = vpop.f32.mrb[0].mxu0
    %v481 = vadd.f32 %v231, %v480
    %v482 = vpop.f32.mrb[0].mxu0
    %v483 = vpop.f32.mrb[0].mxu0
    %v484 = vadd.f32 %v231, %v483
    %v485 = vpop.f32.mrb[0].mxu0
    %486 = vmatprep.mubr.bf16.mxu0 0
    %487 = vmatmul.mubr.bf16.gmra.mrb[0].mxu0 %v253
    %v488 = vpop.f32.mrb[0].mxu0
    %v489 = vadd.f32 %v231, %v488
    %v490 = vpop.f32.mrb[0].mxu0
    %v491 = vpop.f32.mrb[0].mxu0
    %v492 = vadd.f32 %v231, %v491
    %v493 = vpop.f32.mrb[0].mxu0
    %494 = vmatprep.mubr.bf16.mxu0 0
    %495 = vmatmul.mubr.bf16.gmra.mrb[0].mxu0 %v256
    %v496 = vpop.f32.mrb[0].mxu0
    %v497 = vadd.f32 %v231, %v496
    %v498 = vpop.f32.mrb[0].mxu0
    %v499 = vpop.f32.mrb[0].mxu0
    %v500 = vadd.f32 %v231, %v499
    %v501 = vpop.f32.mrb[0].mxu0
    %502 = vmatprep.mubr.bf16.mxu0 0
    %503 = vmatmul.mubr.bf16.gmra.mrb[0].mxu0 %v259
    %v504 = vpop.f32.mrb[0].mxu0
    %v505 = vadd.f32 %v231, %v504
    %v506 = vpop.f32.mrb[0].mxu0
    %v507 = vpop.f32.mrb[0].mxu0
    %v508 = vadd.f32 %v231, %v507
    %v509 = vpop.f32.mrb[0].mxu0
    %510 = vmatprep.mubr.bf16.mxu0 0
    %511 = vmatmul.mubr.bf16.gmra.mrb[0].mxu0 %v262
    %v512 = vpop.f32.mrb[0].mxu0
    %v513 = vadd.f32 %v231, %v512
    %v514 = vpop.f32.mrb[0].mxu0
    %v515 = vpop.f32.mrb[0].mxu0
    %v516 = vadd.f32 %v231, %v515
    %v517 = vpop.f32.mrb[0].mxu0
    %518 = vmatprep.mubr.bf16.mxu0 0
    %519 = vmatmul.mubr.bf16.gmra.mrb[0].mxu0 %v265
    %v520 = vpop.f32.mrb[0].mxu0
    %v521 = vadd.f32 %v231, %v520
    %v522 = vpop.f32.mrb[0].mxu0
    %v523 = vpop.f32.mrb[0].mxu0
    %v524 = vadd.f32 %v231, %v523
    %v525 = vpop.f32.mrb[0].mxu0
    %526 = vmatprep.mubr.bf16.mxu0 0
    %527 = vmatmul.mubr.bf16.gmra.mrb[0].mxu0 %v268
    %v528 = vpop.f32.mrb[0].mxu0
    %v529 = vadd.f32 %v231, %v528
    %v530 = vpop.f32.mrb[0].mxu0
    %v531 = vpop.f32.mrb[0].mxu0
    %v532 = vadd.f32 %v231, %v531
    %v533 = vpop.f32.mrb[0].mxu0
    %534 = vmatprep.mubr.bf16.mxu0 0
    %535 = vmatmul.mubr.bf16.gmra.mrb[0].mxu0 %v271
    %v536 = vpop.f32.mrb[0].mxu0
    %v537 = vadd.f32 %v231, %v536
    %v538 = vpop.f32.mrb[0].mxu0
    %v539 = vpop.f32.mrb[0].mxu0
    %v540 = vadd.f32 %v231, %v539
    %v541 = vpop.f32.mrb[0].mxu0
    %542 = vmatprep.mubr.bf16.mxu0 0
    %543 = vmatmul.mubr.bf16.gmra.mrb[0].mxu0 %v274
    %v544 = vpop.f32.mrb[0].mxu0
    %v545 = vadd.f32 %v231, %v544
    %v546 = vpop.f32.mrb[0].mxu0
    %v547 = vpop.f32.mrb[0].mxu0
    %v548 = vadd.f32 %v231, %v547
    %v549 = vpop.f32.mrb[0].mxu0
    %550 = vmatprep.mubr.bf16.mxu0 0
    %551 = vmatmul.mubr.bf16.gmra.mrb[0].mxu0 %v277
    %v552 = vpop.f32.mrb[0].mxu0
    %v553 = vadd.f32 %v231, %v552
    %v554 = vpop.f32.mrb[0].mxu0
    %v555 = vpop.f32.mrb[0].mxu0
    %v556 = vadd.f32 %v231, %v555
    %v557 = vpop.f32.mrb[0].mxu0
    %558 = vmatprep.mubr.bf16.mxu0 0
    %559 = vmatmul.mubr.bf16.gmra.mrb[0].mxu0 %v280
    %v560 = vpop.f32.mrb[0].mxu0
    %v561 = vadd.f32 %v231, %v560
    %v562 = vpop.f32.mrb[0].mxu0
    %v563 = vpop.f32.mrb[0].mxu0
    %v564 = vadd.f32 %v231, %v563
    %v565 = vpop.f32.mrb[0].mxu0
    %566 = vmatprep.mubr.bf16.mxu0 0
    %567 = vmatmul.mubr.bf16.gmra.mrb[0].mxu0 %v283
    %v568 = vpop.f32.mrb[0].mxu0
    %v569 = vadd.f32 %v231, %v568
    %v570 = vpop.f32.mrb[0].mxu0
    %v571 = vpop.f32.mrb[0].mxu0
    %v572 = vadd.f32 %v231, %v571
    %v573 = vpop.f32.mrb[0].mxu0
    %574 = vmatprep.mubr.bf16.mxu0 0
    %575 = vmatmul.mubr.bf16.gmra.mrb[0].mxu0 %v286
    %v576 = vpop.f32.mrb[0].mxu0
    %v577 = vadd.f32 %v231, %v576
    %v578 = vpop.f32.mrb[0].mxu0
    %v579 = vpop.f32.mrb[0].mxu0
    %v580 = vadd.f32 %v231, %v579
    %v581 = vpop.f32.mrb[0].mxu0
    %582 = vmatprep.mubr.bf16.mxu0 0
    %583 = vmatmul.mubr.bf16.gmra.mrb[0].mxu0 %v289
    %v584 = vpop.f32.mrb[0].mxu0
    %v585 = vadd.f32 %v231, %v584
    %v586 = vpop.f32.mrb[0].mxu0
    %v587 = vpop.f32.mrb[0].mxu0
    %v588 = vadd.f32 %v231, %v587
    %v589 = vpop.f32.mrb[0].mxu0
    %590 = vmatprep.mubr.bf16.mxu0 0
    %591 = vmatmul.mubr.bf16.gmra.mrb[0].mxu0 %v292
    %v592 = vpop.f32.mrb[0].mxu0
    %v593 = vadd.f32 %v231, %v592
    %v594 = vpop.f32.mrb[0].mxu0
    %v595 = vpop.f32.mrb[0].mxu0
    %v596 = vadd.f32 %v231, %v595
    %v597 = vpop.f32.mrb[0].mxu0
    %598 = vmatprep.mubr.bf16.mxu0 0
    %599 = vmatmul.mubr.bf16.gmra.mrb[0].mxu0 %v295
    %v600 = vpop.f32.mrb[0].mxu0
    %v601 = vadd.f32 %v231, %v600
    %v602 = vpop.f32.mrb[0].mxu0
    %v603 = vpop.f32.mrb[0].mxu0
    %v604 = vadd.f32 %v231, %v603
    %v605 = vpop.f32.mrb[0].mxu0
    %606 = vmatprep.mubr.bf16.mxu0 0
    %607 = vmatmul.mubr.bf16.gmra.mrb[0].mxu0 %v298
    %v608 = vpop.f32.mrb[0].mxu0
    %v609 = vadd.f32 %v231, %v608
    %v610 = vpop.f32.mrb[0].mxu0
    %v611 = vpop.f32.mrb[0].mxu0
    %v612 = vadd.f32 %v231, %v611
    %v613 = vpop.f32.mrb[0].mxu0
    %614 = vmatprep.mubr.bf16.mxu0 0
    %615 = vmatmul.mubr.bf16.gmra.mrb[0].mxu0 %v301
    %v616 = vpop.f32.mrb[0].mxu0
    %v617 = vadd.f32 %v231, %v616
    %v618 = vpop.f32.mrb[0].mxu0
    %v619 = vpop.f32.mrb[0].mxu0
    %v620 = vadd.f32 %v231, %v619
    %v621 = vpop.f32.mrb[0].mxu0
    %622 = vmatprep.mubr.bf16.mxu0 0
    %623 = vmatmul.mubr.bf16.gmra.mrb[0].mxu0 %v304
    %v624 = vpop.f32.mrb[0].mxu0
    %v625 = vadd.f32 %v231, %v624
    %v626 = vpop.f32.mrb[0].mxu0
    %v627 = vpop.f32.mrb[0].mxu0
    %v628 = vadd.f32 %v231, %v627
    %v629 = vpop.f32.mrb[0].mxu0
    %630 = vmatprep.mubr.bf16.mxu0 0
    %631 = vmatmul.mubr.bf16.gmra.mrb[0].mxu0 %v307
    %v632 = vpop.f32.mrb[0].mxu0
    %v633 = vadd.f32 %v231, %v632
    %v634 = vpop.f32.mrb[0].mxu0
    %v635 = vpop.f32.mrb[0].mxu0
    %v636 = vadd.f32 %v231, %v635
    %v637 = vpop.f32.mrb[0].mxu0
    %638 = vmatprep.mubr.bf16.mxu0 0
    %639 = vmatmul.mubr.bf16.gmra.mrb[0].mxu0 %v310
    %v640 = vpop.f32.mrb[0].mxu0
    %v641 = vadd.f32 %v231, %v640
    %v642 = vpop.f32.mrb[0].mxu0
    %v643 = vpop.f32.mrb[0].mxu0
    %v644 = vadd.f32 %v231, %v643
    %v645 = vpop.f32.mrb[0].mxu0
    %646 = vmatprep.mubr.bf16.mxu0 0
    %647 = vmatmul.mubr.bf16.gmra.mrb[0].mxu0 %v313
    %v648 = vpop.f32.mrb[0].mxu0
    %v649 = vadd.f32 %v231, %v648
    %v650 = vpop.f32.mrb[0].mxu0
    %v651 = vpop.f32.mrb[0].mxu0
    %v652 = vadd.f32 %v231, %v651
    %v653 = vpop.f32.mrb[0].mxu0
    %654 = vmatprep.mubr.bf16.mxu0 0
    %655 = vmatmul.mubr.bf16.gmra.mrb[0].mxu0 %v316
    %v656 = vpop.f32.mrb[0].mxu0
    %v657 = vadd.f32 %v231, %v656
    %v658 = vpop.f32.mrb[0].mxu0
    %v659 = vpop.f32.mrb[0].mxu0
    %v660 = vadd.f32 %v231, %v659
    %v661 = vpop.f32.mrb[0].mxu0
    %662 = vmatprep.mubr.bf16.mxu0 0
    %663 = vmatmul.mubr.bf16.gmra.mrb[0].mxu0 %v319
    %v664 = vpop.f32.mrb[0].mxu0
    %v665 = vadd.f32 %v231, %v664
    %v666 = vpop.f32.mrb[0].mxu0
    %v667 = vpop.f32.mrb[0].mxu0
    %v668 = vadd.f32 %v231, %v667
    %v669 = vpop.f32.mrb[0].mxu0
    %670 = vmatprep.mubr.bf16.mxu0 0
    %671 = vmatmul.mubr.bf16.gmra.mrb[0].mxu0 %v322
    %v672 = vpop.f32.mrb[0].mxu0
    %v673 = vadd.f32 %v231, %v672
    %v674 = vpop.f32.mrb[0].mxu0
    %v675 = vpop.f32.mrb[0].mxu0
    %v676 = vadd.f32 %v231, %v675
    %v677 = vpop.f32.mrb[0].mxu0
    %678 = vmatprep.mubr.bf16.mxu0 0
    %679 = vmatmul.mubr.bf16.gmra.mrb[0].mxu0 %v325
    %v680 = vpop.f32.mrb[0].mxu0
    %v681 = vadd.f32 %v231, %v680
    %v682 = vpop.f32.mrb[0].mxu0
    %v683 = vpop.f32.mrb[0].mxu0
    %v684 = vadd.f32 %v231, %v683
    %v685 = vpop.f32.mrb[0].mxu0
    %686 = vmatprep.mubr.bf16.mxu0 0
    %687 = vmatmul.mubr.bf16.gmra.mrb[0].mxu0 %v328
    %v688 = vpop.f32.mrb[0].mxu0
    %v689 = vadd.f32 %v231, %v688
    %v690 = vpop.f32.mrb[0].mxu0
    %v691 = vpop.f32.mrb[0].mxu0
    %v692 = vadd.f32 %v231, %v691
    %v693 = vpop.f32.mrb[0].mxu0
    %694 = vmatprep.mubr.bf16.mxu0 0
    %695 = vmatmul.mubr.bf16.gmra.mrb[0].mxu0 %v331
    %v696 = vpop.f32.mrb[0].mxu0
    %v697 = vadd.f32 %v231, %v696
    %v698 = vpop.f32.mrb[0].mxu0
    %v699 = vpop.f32.mrb[0].mxu0
    %v700 = vadd.f32 %v231, %v699
    %v701 = vpop.f32.mrb[0].mxu0
    %702 = vmatprep.mubr.bf16.mxu0 0
    %703 = vmatmul.mubr.bf16.gmra.mrb[0].mxu0 %v334
    %v704 = vpop.f32.mrb[0].mxu0
    %v705 = vadd.f32 %v231, %v704
    %v706 = vpop.f32.mrb[0].mxu0
    %v707 = vpop.f32.mrb[0].mxu0
    %v708 = vadd.f32 %v231, %v707
    %v709 = vpop.f32.mrb[0].mxu0
    %710 = vmatprep.mubr.bf16.mxu0 0
    %711 = vmatmul.mubr.bf16.gmra.mrb[0].mxu0 %v337
    %v712 = vpop.f32.mrb[0].mxu0
    %v713 = vadd.f32 %v231, %v712
    %v714 = vpop.f32.mrb[0].mxu0
    %v715 = vpop.f32.mrb[0].mxu0
    %v716 = vadd.f32 %v231, %v715
    %v717 = vpop.f32.mrb[0].mxu0
    %718 = vmatprep.mubr.bf16.mxu0 0
    %719 = vmatmul.mubr.bf16.gmra.mrb[0].mxu0 %v340
    %v720 = vpop.f32.mrb[0].mxu0
    %v721 = vadd.f32 %v231, %v720
    %v722 = vpop.f32.mrb[0].mxu0
    %v723 = vpop.f32.mrb[0].mxu0
    %v724 = vadd.f32 %v231, %v723
    %v725 = vpop.f32.mrb[0].mxu0
    %726 = vmatprep.mubr.bf16.mxu0 0
    %727 = vmatmul.mubr.bf16.gmra.mrb[0].mxu0 %v343
    %v728 = vpop.f32.mrb[0].mxu0
    %v729 = vadd.f32 %v231, %v728
    %v730 = vpop.f32.mrb[0].mxu0
    %v731 = vpop.f32.mrb[0].mxu0
    %v732 = vadd.f32 %v231, %v731
    %v733 = vpop.f32.mrb[0].mxu0
    %734 = vmatprep.mubr.bf16.mxu0 0
    %735 = vmatmul.mubr.bf16.gmra.mrb[0].mxu0 %v346
    %v736 = vpop.f32.mrb[0].mxu0
    %v737 = vadd.f32 %v231, %v736
    %v738 = vpop.f32.mrb[0].mxu0
    %v739 = vpop.f32.mrb[0].mxu0
    %v740 = vadd.f32 %v231, %v739
    %v741 = vpop.f32.mrb[0].mxu0
    %742 = vmatprep.mubr.bf16.mxu0 0
    %743 = vmatmul.mubr.bf16.gmra.mrb[0].mxu0 %v349
    %v744 = vpop.f32.mrb[0].mxu0
    %v745 = vadd.f32 %v231, %v744
    %v746 = vpop.f32.mrb[0].mxu0
    %v747 = vpop.f32.mrb[0].mxu0
    %v748 = vadd.f32 %v231, %v747
    %v749 = vpop.f32.mrb[0].mxu0
    %750 = vmatprep.mubr.bf16.mxu0 0
    %751 = vmatmul.mubr.bf16.gmra.mrb[0].mxu0 %v352
    %v752 = vpop.f32.mrb[0].mxu0
    %v753 = vadd.f32 %v231, %v752
    %v754 = vpop.f32.mrb[0].mxu0
    %v755 = vpop.f32.mrb[0].mxu0
    %v756 = vadd.f32 %v231, %v755
    %v757 = vpop.f32.mrb[0].mxu0
    %758 = vmatprep.mubr.bf16.mxu0 0
    %759 = vmatmul.mubr.bf16.gmra.mrb[0].mxu0 %v355
    %v760 = vpop.f32.mrb[0].mxu0
    %v761 = vadd.f32 %v231, %v760
    %v762 = vpop.f32.mrb[0].mxu0
    %v763 = vpop.f32.mrb[0].mxu0
    %v764 = vadd.f32 %v231, %v763
    %v765 = vpop.f32.mrb[0].mxu0
    %766 = vmatprep.mubr.bf16.mxu0 0
    %767 = vmatmul.mubr.bf16.gmra.mrb[0].mxu0 %v358
    %v768 = vpop.f32.mrb[0].mxu0
    %v769 = vadd.f32 %v231, %v768
    %v770 = vpop.f32.mrb[0].mxu0
    %v771 = vpop.f32.mrb[0].mxu0
    %v772 = vadd.f32 %v231, %v771
    %v773 = vpop.f32.mrb[0].mxu0
    %774 = vmatprep.mubr.bf16.mxu0 0
    %775 = vmatmul.mubr.bf16.gmra.mrb[0].mxu0 %v361
    %v776 = vpop.f32.mrb[0].mxu0
    %v777 = vadd.f32 %v231, %v776
    %v778 = vpop.f32.mrb[0].mxu0
    %v779 = vpop.f32.mrb[0].mxu0
    %v780 = vadd.f32 %v231, %v779
    %v781 = vpop.f32.mrb[0].mxu0
    %782 = vmatprep.mubr.bf16.mxu0 0
    %783 = vmatmul.mubr.bf16.gmra.mrb[0].mxu0 %v364
    %v784 = vpop.f32.mrb[0].mxu0
    %v785 = vadd.f32 %v231, %v784
    %v786 = vpop.f32.mrb[0].mxu0
    %v787 = vpop.f32.mrb[0].mxu0
    %v788 = vadd.f32 %v231, %v787
    %v789 = vpop.f32.mrb[0].mxu0
    %790 = vmatprep.mubr.bf16.mxu0 0
    %791 = vmatmul.mubr.bf16.gmra.mrb[0].mxu0 %v367
    %v792 = vpop.f32.mrb[0].mxu0
    %v793 = vadd.f32 %v231, %v792
    %v794 = vpop.f32.mrb[0].mxu0
    %v795 = vpop.f32.mrb[0].mxu0
    %v796 = vadd.f32 %v231, %v795
    %v797 = vpop.f32.mrb[0].mxu0
    %798 = vmatprep.mubr.bf16.mxu0 0
    %799 = vmatmul.mubr.bf16.gmra.mrb[0].mxu0 %v370
    %v800 = vpop.f32.mrb[0].mxu0
    %v801 = vadd.f32 %v231, %v800
    %v802 = vpop.f32.mrb[0].mxu0
    %v803 = vpop.f32.mrb[0].mxu0
    %v804 = vadd.f32 %v231, %v803
    %v805 = vpop.f32.mrb[0].mxu0
    %806 = vmatprep.mubr.bf16.mxu0 0
    %807 = vmatmul.mubr.bf16.gmra.mrb[0].mxu0 %v373
    %v808 = vpop.f32.mrb[0].mxu0
    %v809 = vadd.f32 %v231, %v808
    %v810 = vpop.f32.mrb[0].mxu0
    %v811 = vpop.f32.mrb[0].mxu0
    %v812 = vadd.f32 %v231, %v811
    %v813 = vpop.f32.mrb[0].mxu0
    %814 = vmatprep.mubr.bf16.mxu0 0
    %815 = vmatmul.mubr.bf16.gmra.mrb[0].mxu0 %v376
    %v816 = vpop.f32.mrb[0].mxu0
    %v817 = vadd.f32 %v231, %v816
    %v818 = vpop.f32.mrb[0].mxu0
    %v819 = vpop.f32.mrb[0].mxu0
    %v820 = vadd.f32 %v231, %v819
    %v821 = vpop.f32.mrb[0].mxu0
    %822 = vmatprep.mubr.bf16.mxu0 0
    %823 = vmatmul.mubr.bf16.gmra.mrb[0].mxu0 %v379
    %v824 = vpop.f32.mrb[0].mxu0
    %v825 = vadd.f32 %v231, %v824
    %v826 = vpop.f32.mrb[0].mxu0
    %v827 = vpop.f32.mrb[0].mxu0
    %v828 = vadd.f32 %v231, %v827
    %v829 = vpop.f32.mrb[0].mxu0
    %830 = vmatprep.mubr.bf16.mxu0 0
    %831 = vmatmul.mubr.bf16.gmra.mrb[0].mxu0 %v382
    %v832 = vpop.f32.mrb[0].mxu0
    %v833 = vadd.f32 %v231, %v832
    %v834 = vpop.f32.mrb[0].mxu0
    %v835 = vpop.f32.mrb[0].mxu0
    %v836 = vadd.f32 %v231, %v835
    %v837 = vpop.f32.mrb[0].mxu0
    %838 = vmatprep.mubr.bf16.mxu0 0
    %839 = vmatmul.mubr.bf16.gmra.mrb[0].mxu0 %v385
    %v840 = vpop.f32.mrb[0].mxu0
    %v841 = vadd.f32 %v231, %v840
    %v842 = vpop.f32.mrb[0].mxu0
    %v843 = vpop.f32.mrb[0].mxu0
    %v844 = vadd.f32 %v231, %v843
    %v845 = vpop.f32.mrb[0].mxu0
    %846 = vmatprep.mubr.bf16.mxu0 0
    %847 = vmatmul.mubr.bf16.gmra.mrb[0].mxu0 %v388
    %v848 = vpop.f32.mrb[0].mxu0
    %v849 = vadd.f32 %v231, %v848
    %v850 = vpop.f32.mrb[0].mxu0
    %v851 = vpop.f32.mrb[0].mxu0
    %v852 = vadd.f32 %v231, %v851
    %v853 = vpop.f32.mrb[0].mxu0
    %854 = vmatprep.mubr.bf16.mxu0 0
    %855 = vmatmul.mubr.bf16.gmra.mrb[0].mxu0 %v391
    %v856 = vpop.f32.mrb[0].mxu0
    %v857 = vadd.f32 %v231, %v856
    %v858 = vpop.f32.mrb[0].mxu0
    %v859 = vpop.f32.mrb[0].mxu0
    %v860 = vadd.f32 %v231, %v859
    %v861 = vpop.f32.mrb[0].mxu0
    %862 = vmatprep.mubr.bf16.mxu0 0
    %863 = vmatmul.mubr.bf16.gmra.mrb[0].mxu0 %v394
    %v864 = vpop.f32.mrb[0].mxu0
    %v865 = vadd.f32 %v231, %v864
    %v866 = vpop.f32.mrb[0].mxu0
    %v867 = vpop.f32.mrb[0].mxu0
    %v868 = vadd.f32 %v231, %v867
    %v869 = vpop.f32.mrb[0].mxu0
    %870 = vmatprep.mubr.bf16.mxu0 0
    %871 = vmatmul.mubr.bf16.gmra.mrb[0].mxu0 %v397
    %v872 = vpop.f32.mrb[0].mxu0
    %v873 = vadd.f32 %v231, %v872
    %v874 = vpop.f32.mrb[0].mxu0
    %v875 = vpop.f32.mrb[0].mxu0
    %v876 = vadd.f32 %v231, %v875
    %v877 = vpop.f32.mrb[0].mxu0
    %878 = vmatprep.mubr.bf16.mxu0 0
    %879 = vmatmul.mubr.bf16.gmra.mrb[0].mxu0 %v400
    %v880 = vpop.f32.mrb[0].mxu0
    %v881 = vadd.f32 %v231, %v880
    %v882 = vpop.f32.mrb[0].mxu0
    %v883 = vpop.f32.mrb[0].mxu0
    %v884 = vadd.f32 %v231, %v883
    %v885 = vpop.f32.mrb[0].mxu0
    %886 = vmatprep.mubr.bf16.mxu0 0
    %887 = vmatmul.mubr.bf16.gmra.mrb[0].mxu0 %v403
    %v888 = vpop.f32.mrb[0].mxu0
    %v889 = vadd.f32 %v231, %v888
    %v890 = vpop.f32.mrb[0].mxu0
    %v891 = vpop.f32.mrb[0].mxu0
    %v892 = vadd.f32 %v231, %v891
    %v893 = vpop.f32.mrb[0].mxu0
    %894 = vmatprep.mubr.bf16.mxu0 0
    %895 = vmatmul.mubr.bf16.gmra.mrb[0].mxu0 %v406
    %v896 = vpop.f32.mrb[0].mxu0
    %v897 = vadd.f32 %v231, %v896
    %v898 = vpop.f32.mrb[0].mxu0
    %v899 = vpop.f32.mrb[0].mxu0
    %v900 = vadd.f32 %v231, %v899
    %v901 = vpop.f32.mrb[0].mxu0
    %902 = vmatprep.mubr.bf16.mxu0 0
    %903 = vmatmul.mubr.bf16.gmra.mrb[0].mxu0 %v409
    %v904 = vpop.f32.mrb[0].mxu0
    %v905 = vadd.f32 %v231, %v904
    %v906 = vpop.f32.mrb[0].mxu0
    %v907 = vpop.f32.mrb[0].mxu0
    %v908 = vadd.f32 %v231, %v907
    %v909 = vpop.f32.mrb[0].mxu0
    %910 = vmatprep.mubr.bf16.mxu0 0
    %911 = vmatmul.mubr.bf16.gmra.mrb[0].mxu0 %v412
    %v912 = vpop.f32.mrb[0].mxu0
    %v913 = vadd.f32 %v231, %v912
    %v914 = vpop.f32.mrb[0].mxu0
    %v915 = vpop.f32.mrb[0].mxu0
    %v916 = vadd.f32 %v231, %v915
    %v917 = vpop.f32.mrb[0].mxu0
    %918 = vmatprep.mubr.bf16.mxu0 0
    %919 = vmatmul.mubr.bf16.gmra.mrb[0].mxu0 %v415
    %v920 = vpop.f32.mrb[0].mxu0
    %v921 = vadd.f32 %v231, %v920
    %v922 = vpop.f32.mrb[0].mxu0
    %v923 = vpop.f32.mrb[0].mxu0
    %v924 = vadd.f32 %v231, %v923
    %v925 = vpop.f32.mrb[0].mxu0
    %926 = vmatprep.mubr.bf16.mxu0 0
    %927 = vmatmul.mubr.bf16.gmra.mrb[0].mxu0 %v418
    %v928 = vpop.f32.mrb[0].mxu0
    %v929 = vadd.f32 %v231, %v928
    %v930 = vpop.f32.mrb[0].mxu0
    %v931 = vpop.f32.mrb[0].mxu0
    %v932 = vadd.f32 %v231, %v931
    %v933 = vpop.f32.mrb[0].mxu0
    %934 = vmatprep.mubr.bf16.mxu0 0
    %935 = vmatmul.mubr.bf16.gmra.mrb[0].mxu0 %v421
    %v936 = vpop.f32.mrb[0].mxu0
    %v937 = vadd.f32 %v231, %v936
    %v938 = vpop.f32.mrb[0].mxu0
    %v939 = vpop.f32.mrb[0].mxu0
    %v940 = vadd.f32 %v231, %v939
    %v941 = vpop.f32.mrb[0].mxu0
    %942 = vmatprep.mubr.bf16.mxu0 0
    %943 = vmatmul.mubr.bf16.gmra.mrb[0].mxu0 %v424
    %v944 = vpop.f32.mrb[0].mxu0
    %v945 = vadd.f32 %v231, %v944
    %v946 = vpop.f32.mrb[0].mxu0
    %v947 = vpop.f32.mrb[0].mxu0
    %v948 = vadd.f32 %v231, %v947
    %v949 = vpop.f32.mrb[0].mxu0
    %950 = vmatprep.mubr.bf16.mxu0 0
    %951 = vmatmul.mubr.bf16.gmra.mrb[0].mxu0 %v427
    %v952 = vpop.f32.mrb[0].mxu0
    %v953 = vadd.f32 %v231, %v952
    %v954 = vpop.f32.mrb[0].mxu0
    %v955 = vpop.f32.mrb[0].mxu0
    %v956 = vadd.f32 %v231, %v955
    %v957 = vpop.f32.mrb[0].mxu0
    %958 = vmatprep.mubr.bf16.mxu0 0
    %959 = vmatmul.mubr.bf16.gmra.mrb[0].mxu0 %v430
    %v960 = vpop.f32.mrb[0].mxu0
    %v961 = vadd.f32 %v231, %v960
    %v962 = vpop.f32.mrb[0].mxu0
    %v963 = vpop.f32.mrb[0].mxu0
    %v964 = vadd.f32 %v231, %v963
    %v965 = vpop.f32.mrb[0].mxu0
    %966 = vmatprep.mubr.bf16.mxu0 0
    %967 = vmatmul.mubr.bf16.gmra.mrb[0].mxu0 %v433
    %v968 = vpop.f32.mrb[0].mxu0
    %v969 = vadd.f32 %v231, %v968
    %v970 = vpop.f32.mrb[0].mxu0
    %v971 = vpop.f32.mrb[0].mxu0
    %v972 = vadd.f32 %v231, %v971
    %v973 = vpop.f32.mrb[0].mxu0
    %974 = vmatprep.mubr.bf16.mxu0 0
    %975 = vmatmul.mubr.bf16.gmra.mrb[0].mxu0 %v436
    %v976 = vpop.f32.mrb[0].mxu0
    %v977 = vadd.f32 %v231, %v976
    %v978 = vpop.f32.mrb[0].mxu0
    %v979 = vpop.f32.mrb[0].mxu0
    %v980 = vadd.f32 %v231, %v979
    %v981 = vpop.f32.mrb[0].mxu0
    %982 = vdwg.mxu0
    %v983 = vmax.f32 %v473, 0.0
    %v984 = vmax.f32 %v476, 0.0
    %v985 = vmax.f32 %v481, 0.0
    %v986 = vmax.f32 %v484, 0.0
    %v987 = vmax.f32 %v489, 0.0
    %v988 = vmax.f32 %v492, 0.0
    %v989 = vmax.f32 %v497, 0.0
    %v990 = vmax.f32 %v500, 0.0
    %v991 = vmax.f32 %v505, 0.0
    %v992 = vmax.f32 %v508, 0.0
    %v993 = vmax.f32 %v513, 0.0
    %v994 = vmax.f32 %v516, 0.0
    %v995 = vmax.f32 %v521, 0.0
    %v996 = vmax.f32 %v524, 0.0
    %v997 = vmax.f32 %v529, 0.0
    %v998 = vmax.f32 %v532, 0.0
    %v999 = vmax.f32 %v537, 0.0
    %v1000 = vmax.f32 %v540, 0.0
    %v1001 = vmax.f32 %v545, 0.0
    %v1002 = vmax.f32 %v548, 0.0
    %v1003 = vmax.f32 %v553, 0.0
    %v1004 = vmax.f32 %v556, 0.0
    %v1005 = vmax.f32 %v561, 0.0
    %v1006 = vmax.f32 %v564, 0.0
    %v1007 = vmax.f32 %v569, 0.0
    %v1008 = vmax.f32 %v572, 0.0
    %v1009 = vmax.f32 %v577, 0.0
    %v1010 = vmax.f32 %v580, 0.0
    %v1011 = vmax.f32 %v585, 0.0
    %v1012 = vmax.f32 %v588, 0.0
    %v1013 = vmax.f32 %v593, 0.0
    %v1014 = vmax.f32 %v596, 0.0
    %v1015 = vmax.f32 %v601, 0.0
    %v1016 = vmax.f32 %v604, 0.0
    %v1017 = vmax.f32 %v609, 0.0
    %v1018 = vmax.f32 %v612, 0.0
    %v1019 = vmax.f32 %v617, 0.0
    %v1020 = vmax.f32 %v620, 0.0
    %v1021 = vmax.f32 %v625, 0.0
    %v1022 = vmax.f32 %v628, 0.0
    %v1023 = vmax.f32 %v633, 0.0
    %v1024 = vmax.f32 %v636, 0.0
    %v1025 = vmax.f32 %v641, 0.0
    %v1026 = vmax.f32 %v644, 0.0
    %v1027 = vmax.f32 %v649, 0.0
    %v1028 = vmax.f32 %v652, 0.0
    %v1029 = vmax.f32 %v657, 0.0
    %v1030 = vmax.f32 %v660, 0.0
    %v1031 = vmax.f32 %v665, 0.0
    %v1032 = vmax.f32 %v668, 0.0
    %v1033 = vmax.f32 %v673, 0.0
    %v1034 = vmax.f32 %v676, 0.0
    %v1035 = vmax.f32 %v681, 0.0
    %v1036 = vmax.f32 %v684, 0.0
    %v1037 = vmax.f32 %v689, 0.0
    %v1038 = vmax.f32 %v692, 0.0
    %v1039 = vmax.f32 %v697, 0.0
    %v1040 = vmax.f32 %v700, 0.0
    %v1041 = vmax.f32 %v705, 0.0
    %v1042 = vmax.f32 %v708, 0.0
    %v1043 = vmax.f32 %v713, 0.0
    %v1044 = vmax.f32 %v716, 0.0
    %v1045 = vmax.f32 %v721, 0.0
    %v1046 = vmax.f32 %v724, 0.0
    %v1047 = vmax.f32 %v729, 0.0
    %v1048 = vmax.f32 %v732, 0.0
    %v1049 = vmax.f32 %v737, 0.0
    %v1050 = vmax.f32 %v740, 0.0
    %v1051 = vmax.f32 %v745, 0.0
    %v1052 = vmax.f32 %v748, 0.0
    %v1053 = vmax.f32 %v753, 0.0
    %v1054 = vmax.f32 %v756, 0.0
    %v1055 = vmax.f32 %v761, 0.0
    %v1056 = vmax.f32 %v764, 0.0
    %v1057 = vmax.f32 %v769, 0.0
    %v1058 = vmax.f32 %v772, 0.0
    %v1059 = vmax.f32 %v777, 0.0
    %v1060 = vmax.f32 %v780, 0.0
    %v1061 = vmax.f32 %v785, 0.0
    %v1062 = vmax.f32 %v788, 0.0
    %v1063 = vmax.f32 %v793, 0.0
    %v1064 = vmax.f32 %v796, 0.0
    %v1065 = vmax.f32 %v801, 0.0
    %v1066 = vmax.f32 %v804, 0.0
    %v1067 = vmax.f32 %v809, 0.0
    %v1068 = vmax.f32 %v812, 0.0
    %v1069 = vmax.f32 %v817, 0.0
    %v1070 = vmax.f32 %v820, 0.0
    %v1071 = vmax.f32 %v825, 0.0
    %v1072 = vmax.f32 %v828, 0.0
    %v1073 = vmax.f32 %v833, 0.0
    %v1074 = vmax.f32 %v836, 0.0
    %v1075 = vmax.f32 %v841, 0.0
    %v1076 = vmax.f32 %v844, 0.0
    %v1077 = vmax.f32 %v849, 0.0
    %v1078 = vmax.f32 %v852, 0.0
    %v1079 = vmax.f32 %v857, 0.0
    %v1080 = vmax.f32 %v860, 0.0
    %v1081 = vmax.f32 %v865, 0.0
    %v1082 = vmax.f32 %v868, 0.0
    %v1083 = vmax.f32 %v873, 0.0
    %v1084 = vmax.f32 %v876, 0.0
    %v1085 = vmax.f32 %v881, 0.0
    %v1086 = vmax.f32 %v884, 0.0
    %v1087 = vmax.f32 %v889, 0.0
    %v1088 = vmax.f32 %v892, 0.0
    %v1089 = vmax.f32 %v897, 0.0
    %v1090 = vmax.f32 %v900, 0.0
    %v1091 = vmax.f32 %v905, 0.0
    %v1092 = vmax.f32 %v908, 0.0
    %v1093 = vmax.f32 %v913, 0.0
    %v1094 = vmax.f32 %v916, 0.0
    %v1095 = vmax.f32 %v921, 0.0
    %v1096 = vmax.f32 %v924, 0.0
    %v1097 = vmax.f32 %v929, 0.0
    %v1098 = vmax.f32 %v932, 0.0
    %v1099 = vmax.f32 %v937, 0.0
    %v1100 = vmax.f32 %v940, 0.0
    %v1101 = vmax.f32 %v945, 0.0
    %v1102 = vmax.f32 %v948, 0.0
    %v1103 = vmax.f32 %v953, 0.0
    %v1104 = vmax.f32 %v956, 0.0
    %v1105 = vmax.f32 %v961, 0.0
    %v1106 = vmax.f32 %v964, 0.0
    %v1107 = vmax.f32 %v969, 0.0
    %v1108 = vmax.f32 %v972, 0.0
    %v1109 = vmax.f32 %v977, 0.0
    %v1110 = vmax.f32 %v980, 0.0
    %v1111 = vpack.c.bf16 %v984, %v983
    %v1112 = vpack.c.bf16 %v986, %v985
    %v1113 = vpack.c.bf16 %v988, %v987
    %v1114 = vpack.c.bf16 %v990, %v989
    %v1115 = vpack.c.bf16 %v992, %v991
    %v1116 = vpack.c.bf16 %v994, %v993
    %v1117 = vpack.c.bf16 %v996, %v995
    %v1118 = vpack.c.bf16 %v998, %v997
    %v1119 = vpack.c.bf16 %v1000, %v999
    %v1120 = vpack.c.bf16 %v1002, %v1001
    %v1121 = vpack.c.bf16 %v1004, %v1003
    %v1122 = vpack.c.bf16 %v1006, %v1005
    %v1123 = vpack.c.bf16 %v1008, %v1007
    %v1124 = vpack.c.bf16 %v1010, %v1009
    %v1125 = vpack.c.bf16 %v1012, %v1011
    %v1126 = vpack.c.bf16 %v1014, %v1013
    %v1127 = vpack.c.bf16 %v1016, %v1015
    %v1128 = vpack.c.bf16 %v1018, %v1017
    %v1129 = vpack.c.bf16 %v1020, %v1019
    %v1130 = vpack.c.bf16 %v1022, %v1021
    %v1131 = vpack.c.bf16 %v1024, %v1023
    %v1132 = vpack.c.bf16 %v1026, %v1025
    %v1133 = vpack.c.bf16 %v1028, %v1027
    %v1134 = vpack.c.bf16 %v1030, %v1029
    %v1135 = vpack.c.bf16 %v1032, %v1031
    %v1136 = vpack.c.bf16 %v1034, %v1033
    %v1137 = vpack.c.bf16 %v1036, %v1035
    %v1138 = vpack.c.bf16 %v1038, %v1037
    %v1139 = vpack.c.bf16 %v1040, %v1039
    %v1140 = vpack.c.bf16 %v1042, %v1041
    %v1141 = vpack.c.bf16 %v1044, %v1043
    %v1142 = vpack.c.bf16 %v1046, %v1045
    %v1143 = vpack.c.bf16 %v1048, %v1047
    %v1144 = vpack.c.bf16 %v1050, %v1049
    %v1145 = vpack.c.bf16 %v1052, %v1051
    %v1146 = vpack.c.bf16 %v1054, %v1053
    %v1147 = vpack.c.bf16 %v1056, %v1055
    %v1148 = vpack.c.bf16 %v1058, %v1057
    %v1149 = vpack.c.bf16 %v1060, %v1059
    %v1150 = vpack.c.bf16 %v1062, %v1061
    %v1151 = vpack.c.bf16 %v1064, %v1063
    %v1152 = vpack.c.bf16 %v1066, %v1065
    %v1153 = vpack.c.bf16 %v1068, %v1067
    %v1154 = vpack.c.bf16 %v1070, %v1069
    %v1155 = vpack.c.bf16 %v1072, %v1071
    %v1156 = vpack.c.bf16 %v1074, %v1073
    %v1157 = vpack.c.bf16 %v1076, %v1075
    %v1158 = vpack.c.bf16 %v1078, %v1077
    %v1159 = vpack.c.bf16 %v1080, %v1079
    %v1160 = vpack.c.bf16 %v1082, %v1081
    %v1161 = vpack.c.bf16 %v1084, %v1083
    %v1162 = vpack.c.bf16 %v1086, %v1085
    %v1163 = vpack.c.bf16 %v1088, %v1087
    %v1164 = vpack.c.bf16 %v1090, %v1089
    %v1165 = vpack.c.bf16 %v1092, %v1091
    %v1166 = vpack.c.bf16 %v1094, %v1093
    %v1167 = vpack.c.bf16 %v1096, %v1095
    %v1168 = vpack.c.bf16 %v1098, %v1097
    %v1169 = vpack.c.bf16 %v1100, %v1099
    %v1170 = vpack.c.bf16 %v1102, %v1101
    %v1171 = vpack.c.bf16 %v1104, %v1103
    %v1172 = vpack.c.bf16 %v1106, %v1105
    %v1173 = vpack.c.bf16 %v1108, %v1107
    %v1174 = vpack.c.bf16 %v1110, %v1109
    %v1175 = vld [vmem:[%s3] sm:$0xf]
    %v1176 = vld [vmem:[%s3 + $0x4] sm:$0xf]
    %v1177 = vld [vmem:[%s3 + $0x8] sm:$0xf]
    %v1178 = vld [vmem:[%s3 + $0xc] sm:$0xf]
    %v1179 = vld [vmem:[%s3 + $0x10] sm:$0xf]
    %v1180 = vld [vmem:[%s3 + $0x14] sm:$0xf]
    %v1181 = vld [vmem:[%s3 + $0x18] sm:$0xf]
    %v1182 = vld [vmem:[%s3 + $0x1c] sm:$0xf]
    %v1183 = vld [vmem:[%s3 + $0x20] sm:$0xf]
    %v1184 = vld [vmem:[%s3 + $0x24] sm:$0xf]
    %v1185 = vld [vmem:[%s3 + $0x28] sm:$0xf]
    %v1186 = vld [vmem:[%s3 + $0x2c] sm:$0xf]
    %v1187 = vld [vmem:[%s3 + $0x30] sm:$0xf]
    %v1188 = vld [vmem:[%s3 + $0x34] sm:$0xf]
    %v1189 = vld [vmem:[%s3 + $0x38] sm:$0xf]
    %v1190 = vld [vmem:[%s3 + $0x3c] sm:$0xf]
    %v1191 = vld [vmem:[%s4] sm:$0x1]
    %v1193 = vlaneseq
    %v1194 = vshrl.u32 %v1193, 7
    %v1195 = vsub.s32 0, %v1194
    %v1196 = vrot.slane %v1191, %v1195
    %v1214 = vunpack.c.l.b16 %v1175
    %v1215 = vunpack.c.l.b16 %v1176
    %v1216 = vunpack.c.l.b16 %v1177
    %v1217 = vunpack.c.l.b16 %v1178
    %v1218 = vunpack.c.l.b16 %v1179
    %v1219 = vunpack.c.l.b16 %v1180
    %v1220 = vunpack.c.l.b16 %v1181
    %v1221 = vunpack.c.l.b16 %v1182
    %v1222 = vunpack.c.l.b16 %v1183
    %v1223 = vunpack.c.l.b16 %v1184
    %v1224 = vunpack.c.l.b16 %v1185
    %v1225 = vunpack.c.l.b16 %v1186
    %v1226 = vunpack.c.l.b16 %v1187
    %v1227 = vunpack.c.l.b16 %v1188
    %v1228 = vunpack.c.l.b16 %v1189
    %v1229 = vunpack.c.l.b16 %v1190
    %v1230 = vpack.c.b16 %v1215, %v1214
    %v1231 = vpack.c.b16 %v1217, %v1216
    %v1232 = vpack.c.b16 %v1219, %v1218
    %v1233 = vpack.c.b16 %v1221, %v1220
    %v1234 = vpack.c.b16 %v1223, %v1222
    %v1235 = vpack.c.b16 %v1225, %v1224
    %v1236 = vpack.c.b16 %v1227, %v1226
    %v1237 = vpack.c.b16 %v1229, %v1228
    %1246 = vmatprep.subr.bf16.mxu0 0
    %1247 = vmatpush1.bf16.msra.mxu0 %v1230
    %1248 = vmatprep.subr.bf16.mxu0 0
    %1249 = vmatpush1.bf16.msra.mxu0 %v1231
    %1250 = vmatprep.subr.bf16.mxu0 0
    %1251 = vmatpush1.bf16.msra.mxu0 %v1232
    %1252 = vmatprep.subr.bf16.mxu0 0
    %1253 = vmatpush1.bf16.msra.mxu0 %v1233
    %1254 = vmatprep.subr.bf16.mxu0 0
    %1255 = vmatpush1.bf16.msra.mxu0 %v1234
    %1256 = vmatprep.subr.bf16.mxu0 0
    %1257 = vmatpush1.bf16.msra.mxu0 %v1235
    %1258 = vmatprep.subr.bf16.mxu0 0
    %1259 = vmatpush1.bf16.msra.mxu0 %v1236
    %1260 = vmatprep.subr.bf16.mxu0 0
    %1261 = vmatpush1.bf16.msra.mxu0 %v1237
    %1262 = vmatprep.subr.bf16.mxu0 0
    %1263 = vmatpush1.bf16.msra.mxu0 0
    %1264 = vmatprep.subr.bf16.mxu0 0
    %1265 = vmatpush1.bf16.msra.mxu0 0
    %1266 = vmatprep.subr.bf16.mxu0 0
    %1267 = vmatpush1.bf16.msra.mxu0 0
    %1268 = vmatprep.subr.bf16.mxu0 0
    %1269 = vmatpush1.bf16.msra.mxu0 0
    %1270 = vmatprep.subr.bf16.mxu0 0
    %1271 = vmatpush1.bf16.msra.mxu0 0
    %1272 = vmatprep.subr.bf16.mxu0 0
    %1273 = vmatpush1.bf16.msra.mxu0 0
    %1274 = vmatprep.subr.bf16.mxu0 0
    %1275 = vmatpush1.bf16.msra.mxu0 0
    %1276 = vmatprep.subr.bf16.mxu0 0
    %1277 = vmatpush1.bf16.msra.mxu0 0
    %1278 = vmatprep.mubr.bf16.mxu0 0
    %1279 = vmatmul.mubr.bf16.gmra.mrb[0].mxu0 %v1111
    %v1280 = vpop.f32.mrb[0].mxu0
    %v1281 = vadd.f32 %v1196, %v1280
    %v1282 = vpop.f32.mrb[0].mxu0
    %v1283 = vpop.f32.mrb[0].mxu0
    %v1284 = vadd.f32 %v1196, %v1283
    %v1285 = vpop.f32.mrb[0].mxu0
    %1286 = vmatprep.mubr.bf16.mxu0 0
    %1287 = vmatmul.mubr.bf16.gmra.mrb[0].mxu0 %v1112
    %v1288 = vpop.f32.mrb[0].mxu0
    %v1289 = vadd.f32 %v1196, %v1288
    %v1290 = vpop.f32.mrb[0].mxu0
    %v1291 = vpop.f32.mrb[0].mxu0
    %v1292 = vadd.f32 %v1196, %v1291
    %v1293 = vpop.f32.mrb[0].mxu0
    %1294 = vmatprep.mubr.bf16.mxu0 0
    %1295 = vmatmul.mubr.bf16.gmra.mrb[0].mxu0 %v1113
    %v1296 = vpop.f32.mrb[0].mxu0
    %v1297 = vadd.f32 %v1196, %v1296
    %v1298 = vpop.f32.mrb[0].mxu0
    %v1299 = vpop.f32.mrb[0].mxu0
    %v1300 = vadd.f32 %v1196, %v1299
    %v1301 = vpop.f32.mrb[0].mxu0
    %1302 = vmatprep.mubr.bf16.mxu0 0
    %1303 = vmatmul.mubr.bf16.gmra.mrb[0].mxu0 %v1114
    %v1304 = vpop.f32.mrb[0].mxu0
    %v1305 = vadd.f32 %v1196, %v1304
    %v1306 = vpop.f32.mrb[0].mxu0
    %v1307 = vpop.f32.mrb[0].mxu0
    %v1308 = vadd.f32 %v1196, %v1307
    %v1309 = vpop.f32.mrb[0].mxu0
    %1310 = vmatprep.mubr.bf16.mxu0 0
    %1311 = vmatmul.mubr.bf16.gmra.mrb[0].mxu0 %v1115
    %v1312 = vpop.f32.mrb[0].mxu0
    %v1313 = vadd.f32 %v1196, %v1312
    %v1314 = vpop.f32.mrb[0].mxu0
    %v1315 = vpop.f32.mrb[0].mxu0
    %v1316 = vadd.f32 %v1196, %v1315
    %v1317 = vpop.f32.mrb[0].mxu0
    %1318 = vmatprep.mubr.bf16.mxu0 0
    %1319 = vmatmul.mubr.bf16.gmra.mrb[0].mxu0 %v1116
    %v1320 = vpop.f32.mrb[0].mxu0
    %v1321 = vadd.f32 %v1196, %v1320
    %v1322 = vpop.f32.mrb[0].mxu0
    %v1323 = vpop.f32.mrb[0].mxu0
    %v1324 = vadd.f32 %v1196, %v1323
    %v1325 = vpop.f32.mrb[0].mxu0
    %1326 = vmatprep.mubr.bf16.mxu0 0
    %1327 = vmatmul.mubr.bf16.gmra.mrb[0].mxu0 %v1117
    %v1328 = vpop.f32.mrb[0].mxu0
    %v1329 = vadd.f32 %v1196, %v1328
    %v1330 = vpop.f32.mrb[0].mxu0
    %v1331 = vpop.f32.mrb[0].mxu0
    %v1332 = vadd.f32 %v1196, %v1331
    %v1333 = vpop.f32.mrb[0].mxu0
    %1334 = vmatprep.mubr.bf16.mxu0 0
    %1335 = vmatmul.mubr.bf16.gmra.mrb[0].mxu0 %v1118
    %v1336 = vpop.f32.mrb[0].mxu0
    %v1337 = vadd.f32 %v1196, %v1336
    %v1338 = vpop.f32.mrb[0].mxu0
    %v1339 = vpop.f32.mrb[0].mxu0
    %v1340 = vadd.f32 %v1196, %v1339
    %v1341 = vpop.f32.mrb[0].mxu0
    %1342 = vmatprep.mubr.bf16.mxu0 0
    %1343 = vmatmul.mubr.bf16.gmra.mrb[0].mxu0 %v1119
    %v1344 = vpop.f32.mrb[0].mxu0
    %v1345 = vadd.f32 %v1196, %v1344
    %v1346 = vpop.f32.mrb[0].mxu0
    %v1347 = vpop.f32.mrb[0].mxu0
    %v1348 = vadd.f32 %v1196, %v1347
    %v1349 = vpop.f32.mrb[0].mxu0
    %1350 = vmatprep.mubr.bf16.mxu0 0
    %1351 = vmatmul.mubr.bf16.gmra.mrb[0].mxu0 %v1120
    %v1352 = vpop.f32.mrb[0].mxu0
    %v1353 = vadd.f32 %v1196, %v1352
    %v1354 = vpop.f32.mrb[0].mxu0
    %v1355 = vpop.f32.mrb[0].mxu0
    %v1356 = vadd.f32 %v1196, %v1355
    %v1357 = vpop.f32.mrb[0].mxu0
    %1358 = vmatprep.mubr.bf16.mxu0 0
    %1359 = vmatmul.mubr.bf16.gmra.mrb[0].mxu0 %v1121
    %v1360 = vpop.f32.mrb[0].mxu0
    %v1361 = vadd.f32 %v1196, %v1360
    %v1362 = vpop.f32.mrb[0].mxu0
    %v1363 = vpop.f32.mrb[0].mxu0
    %v1364 = vadd.f32 %v1196, %v1363
    %v1365 = vpop.f32.mrb[0].mxu0
    %1366 = vmatprep.mubr.bf16.mxu0 0
    %1367 = vmatmul.mubr.bf16.gmra.mrb[0].mxu0 %v1122
    %v1368 = vpop.f32.mrb[0].mxu0
    %v1369 = vadd.f32 %v1196, %v1368
    %v1370 = vpop.f32.mrb[0].mxu0
    %v1371 = vpop.f32.mrb[0].mxu0
    %v1372 = vadd.f32 %v1196, %v1371
    %v1373 = vpop.f32.mrb[0].mxu0
    %1374 = vmatprep.mubr.bf16.mxu0 0
    %1375 = vmatmul.mubr.bf16.gmra.mrb[0].mxu0 %v1123
    %v1376 = vpop.f32.mrb[0].mxu0
    %v1377 = vadd.f32 %v1196, %v1376
    %v1378 = vpop.f32.mrb[0].mxu0
    %v1379 = vpop.f32.mrb[0].mxu0
    %v1380 = vadd.f32 %v1196, %v1379
    %v1381 = vpop.f32.mrb[0].mxu0
    %1382 = vmatprep.mubr.bf16.mxu0 0
    %1383 = vmatmul.mubr.bf16.gmra.mrb[0].mxu0 %v1124
    %v1384 = vpop.f32.mrb[0].mxu0
    %v1385 = vadd.f32 %v1196, %v1384
    %v1386 = vpop.f32.mrb[0].mxu0
    %v1387 = vpop.f32.mrb[0].mxu0
    %v1388 = vadd.f32 %v1196, %v1387
    %v1389 = vpop.f32.mrb[0].mxu0
    %1390 = vmatprep.mubr.bf16.mxu0 0
    %1391 = vmatmul.mubr.bf16.gmra.mrb[0].mxu0 %v1125
    %v1392 = vpop.f32.mrb[0].mxu0
    %v1393 = vadd.f32 %v1196, %v1392
    %v1394 = vpop.f32.mrb[0].mxu0
    %v1395 = vpop.f32.mrb[0].mxu0
    %v1396 = vadd.f32 %v1196, %v1395
    %v1397 = vpop.f32.mrb[0].mxu0
    %1398 = vmatprep.mubr.bf16.mxu0 0
    %1399 = vmatmul.mubr.bf16.gmra.mrb[0].mxu0 %v1126
    %v1400 = vpop.f32.mrb[0].mxu0
    %v1401 = vadd.f32 %v1196, %v1400
    %v1402 = vpop.f32.mrb[0].mxu0
    %v1403 = vpop.f32.mrb[0].mxu0
    %v1404 = vadd.f32 %v1196, %v1403
    %v1405 = vpop.f32.mrb[0].mxu0
    %1406 = vmatprep.mubr.bf16.mxu0 0
    %1407 = vmatmul.mubr.bf16.gmra.mrb[0].mxu0 %v1127
    %v1408 = vpop.f32.mrb[0].mxu0
    %v1409 = vadd.f32 %v1196, %v1408
    %v1410 = vpop.f32.mrb[0].mxu0
    %v1411 = vpop.f32.mrb[0].mxu0
    %v1412 = vadd.f32 %v1196, %v1411
    %v1413 = vpop.f32.mrb[0].mxu0
    %1414 = vmatprep.mubr.bf16.mxu0 0
    %1415 = vmatmul.mubr.bf16.gmra.mrb[0].mxu0 %v1128
    %v1416 = vpop.f32.mrb[0].mxu0
    %v1417 = vadd.f32 %v1196, %v1416
    %v1418 = vpop.f32.mrb[0].mxu0
    %v1419 = vpop.f32.mrb[0].mxu0
    %v1420 = vadd.f32 %v1196, %v1419
    %v1421 = vpop.f32.mrb[0].mxu0
    %1422 = vmatprep.mubr.bf16.mxu0 0
    %1423 = vmatmul.mubr.bf16.gmra.mrb[0].mxu0 %v1129
    %v1424 = vpop.f32.mrb[0].mxu0
    %v1425 = vadd.f32 %v1196, %v1424
    %v1426 = vpop.f32.mrb[0].mxu0
    %v1427 = vpop.f32.mrb[0].mxu0
    %v1428 = vadd.f32 %v1196, %v1427
    %v1429 = vpop.f32.mrb[0].mxu0
    %1430 = vmatprep.mubr.bf16.mxu0 0
    %1431 = vmatmul.mubr.bf16.gmra.mrb[0].mxu0 %v1130
    %v1432 = vpop.f32.mrb[0].mxu0
    %v1433 = vadd.f32 %v1196, %v1432
    %v1434 = vpop.f32.mrb[0].mxu0
    %v1435 = vpop.f32.mrb[0].mxu0
    %v1436 = vadd.f32 %v1196, %v1435
    %v1437 = vpop.f32.mrb[0].mxu0
    %1438 = vmatprep.mubr.bf16.mxu0 0
    %1439 = vmatmul.mubr.bf16.gmra.mrb[0].mxu0 %v1131
    %v1440 = vpop.f32.mrb[0].mxu0
    %v1441 = vadd.f32 %v1196, %v1440
    %v1442 = vpop.f32.mrb[0].mxu0
    %v1443 = vpop.f32.mrb[0].mxu0
    %v1444 = vadd.f32 %v1196, %v1443
    %v1445 = vpop.f32.mrb[0].mxu0
    %1446 = vmatprep.mubr.bf16.mxu0 0
    %1447 = vmatmul.mubr.bf16.gmra.mrb[0].mxu0 %v1132
    %v1448 = vpop.f32.mrb[0].mxu0
    %v1449 = vadd.f32 %v1196, %v1448
    %v1450 = vpop.f32.mrb[0].mxu0
    %v1451 = vpop.f32.mrb[0].mxu0
    %v1452 = vadd.f32 %v1196, %v1451
    %v1453 = vpop.f32.mrb[0].mxu0
    %1454 = vmatprep.mubr.bf16.mxu0 0
    %1455 = vmatmul.mubr.bf16.gmra.mrb[0].mxu0 %v1133
    %v1456 = vpop.f32.mrb[0].mxu0
    %v1457 = vadd.f32 %v1196, %v1456
    %v1458 = vpop.f32.mrb[0].mxu0
    %v1459 = vpop.f32.mrb[0].mxu0
    %v1460 = vadd.f32 %v1196, %v1459
    %v1461 = vpop.f32.mrb[0].mxu0
    %1462 = vmatprep.mubr.bf16.mxu0 0
    %1463 = vmatmul.mubr.bf16.gmra.mrb[0].mxu0 %v1134
    %v1464 = vpop.f32.mrb[0].mxu0
    %v1465 = vadd.f32 %v1196, %v1464
    %v1466 = vpop.f32.mrb[0].mxu0
    %v1467 = vpop.f32.mrb[0].mxu0
    %v1468 = vadd.f32 %v1196, %v1467
    %v1469 = vpop.f32.mrb[0].mxu0
    %1470 = vmatprep.mubr.bf16.mxu0 0
    %1471 = vmatmul.mubr.bf16.gmra.mrb[0].mxu0 %v1135
    %v1472 = vpop.f32.mrb[0].mxu0
    %v1473 = vadd.f32 %v1196, %v1472
    %v1474 = vpop.f32.mrb[0].mxu0
    %v1475 = vpop.f32.mrb[0].mxu0
    %v1476 = vadd.f32 %v1196, %v1475
    %v1477 = vpop.f32.mrb[0].mxu0
    %1478 = vmatprep.mubr.bf16.mxu0 0
    %1479 = vmatmul.mubr.bf16.gmra.mrb[0].mxu0 %v1136
    %v1480 = vpop.f32.mrb[0].mxu0
    %v1481 = vadd.f32 %v1196, %v1480
    %v1482 = vpop.f32.mrb[0].mxu0
    %v1483 = vpop.f32.mrb[0].mxu0
    %v1484 = vadd.f32 %v1196, %v1483
    %v1485 = vpop.f32.mrb[0].mxu0
    %1486 = vmatprep.mubr.bf16.mxu0 0
    %1487 = vmatmul.mubr.bf16.gmra.mrb[0].mxu0 %v1137
    %v1488 = vpop.f32.mrb[0].mxu0
    %v1489 = vadd.f32 %v1196, %v1488
    %v1490 = vpop.f32.mrb[0].mxu0
    %v1491 = vpop.f32.mrb[0].mxu0
    %v1492 = vadd.f32 %v1196, %v1491
    %v1493 = vpop.f32.mrb[0].mxu0
    %1494 = vmatprep.mubr.bf16.mxu0 0
    %1495 = vmatmul.mubr.bf16.gmra.mrb[0].mxu0 %v1138
    %v1496 = vpop.f32.mrb[0].mxu0
    %v1497 = vadd.f32 %v1196, %v1496
    %v1498 = vpop.f32.mrb[0].mxu0
    %v1499 = vpop.f32.mrb[0].mxu0
    %v1500 = vadd.f32 %v1196, %v1499
    %v1501 = vpop.f32.mrb[0].mxu0
    %1502 = vmatprep.mubr.bf16.mxu0 0
    %1503 = vmatmul.mubr.bf16.gmra.mrb[0].mxu0 %v1139
    %v1504 = vpop.f32.mrb[0].mxu0
    %v1505 = vadd.f32 %v1196, %v1504
    %v1506 = vpop.f32.mrb[0].mxu0
    %v1507 = vpop.f32.mrb[0].mxu0
    %v1508 = vadd.f32 %v1196, %v1507
    %v1509 = vpop.f32.mrb[0].mxu0
    %1510 = vmatprep.mubr.bf16.mxu0 0
    %1511 = vmatmul.mubr.bf16.gmra.mrb[0].mxu0 %v1140
    %v1512 = vpop.f32.mrb[0].mxu0
    %v1513 = vadd.f32 %v1196, %v1512
    %v1514 = vpop.f32.mrb[0].mxu0
    %v1515 = vpop.f32.mrb[0].mxu0
    %v1516 = vadd.f32 %v1196, %v1515
    %v1517 = vpop.f32.mrb[0].mxu0
    %1518 = vmatprep.mubr.bf16.mxu0 0
    %1519 = vmatmul.mubr.bf16.gmra.mrb[0].mxu0 %v1141
    %v1520 = vpop.f32.mrb[0].mxu0
    %v1521 = vadd.f32 %v1196, %v1520
    %v1522 = vpop.f32.mrb[0].mxu0
    %v1523 = vpop.f32.mrb[0].mxu0
    %v1524 = vadd.f32 %v1196, %v1523
    %v1525 = vpop.f32.mrb[0].mxu0
    %1526 = vmatprep.mubr.bf16.mxu0 0
    %1527 = vmatmul.mubr.bf16.gmra.mrb[0].mxu0 %v1142
    %v1528 = vpop.f32.mrb[0].mxu0
    %v1529 = vadd.f32 %v1196, %v1528
    %v1530 = vpop.f32.mrb[0].mxu0
    %v1531 = vpop.f32.mrb[0].mxu0
    %v1532 = vadd.f32 %v1196, %v1531
    %v1533 = vpop.f32.mrb[0].mxu0
    %1534 = vmatprep.mubr.bf16.mxu0 0
    %1535 = vmatmul.mubr.bf16.gmra.mrb[0].mxu0 %v1143
    %v1536 = vpop.f32.mrb[0].mxu0
    %v1537 = vadd.f32 %v1196, %v1536
    %v1538 = vpop.f32.mrb[0].mxu0
    %v1539 = vpop.f32.mrb[0].mxu0
    %v1540 = vadd.f32 %v1196, %v1539
    %v1541 = vpop.f32.mrb[0].mxu0
    %1542 = vmatprep.mubr.bf16.mxu0 0
    %1543 = vmatmul.mubr.bf16.gmra.mrb[0].mxu0 %v1144
    %v1544 = vpop.f32.mrb[0].mxu0
    %v1545 = vadd.f32 %v1196, %v1544
    %v1546 = vpop.f32.mrb[0].mxu0
    %v1547 = vpop.f32.mrb[0].mxu0
    %v1548 = vadd.f32 %v1196, %v1547
    %v1549 = vpop.f32.mrb[0].mxu0
    %1550 = vmatprep.mubr.bf16.mxu0 0
    %1551 = vmatmul.mubr.bf16.gmra.mrb[0].mxu0 %v1145
    %v1552 = vpop.f32.mrb[0].mxu0
    %v1553 = vadd.f32 %v1196, %v1552
    %v1554 = vpop.f32.mrb[0].mxu0
    %v1555 = vpop.f32.mrb[0].mxu0
    %v1556 = vadd.f32 %v1196, %v1555
    %v1557 = vpop.f32.mrb[0].mxu0
    %1558 = vmatprep.mubr.bf16.mxu0 0
    %1559 = vmatmul.mubr.bf16.gmra.mrb[0].mxu0 %v1146
    %v1560 = vpop.f32.mrb[0].mxu0
    %v1561 = vadd.f32 %v1196, %v1560
    %v1562 = vpop.f32.mrb[0].mxu0
    %v1563 = vpop.f32.mrb[0].mxu0
    %v1564 = vadd.f32 %v1196, %v1563
    %v1565 = vpop.f32.mrb[0].mxu0
    %1566 = vmatprep.mubr.bf16.mxu0 0
    %1567 = vmatmul.mubr.bf16.gmra.mrb[0].mxu0 %v1147
    %v1568 = vpop.f32.mrb[0].mxu0
    %v1569 = vadd.f32 %v1196, %v1568
    %v1570 = vpop.f32.mrb[0].mxu0
    %v1571 = vpop.f32.mrb[0].mxu0
    %v1572 = vadd.f32 %v1196, %v1571
    %v1573 = vpop.f32.mrb[0].mxu0
    %1574 = vmatprep.mubr.bf16.mxu0 0
    %1575 = vmatmul.mubr.bf16.gmra.mrb[0].mxu0 %v1148
    %v1576 = vpop.f32.mrb[0].mxu0
    %v1577 = vadd.f32 %v1196, %v1576
    %v1578 = vpop.f32.mrb[0].mxu0
    %v1579 = vpop.f32.mrb[0].mxu0
    %v1580 = vadd.f32 %v1196, %v1579
    %v1581 = vpop.f32.mrb[0].mxu0
    %1582 = vmatprep.mubr.bf16.mxu0 0
    %1583 = vmatmul.mubr.bf16.gmra.mrb[0].mxu0 %v1149
    %v1584 = vpop.f32.mrb[0].mxu0
    %v1585 = vadd.f32 %v1196, %v1584
    %v1586 = vpop.f32.mrb[0].mxu0
    %v1587 = vpop.f32.mrb[0].mxu0
    %v1588 = vadd.f32 %v1196, %v1587
    %v1589 = vpop.f32.mrb[0].mxu0
    %1590 = vmatprep.mubr.bf16.mxu0 0
    %1591 = vmatmul.mubr.bf16.gmra.mrb[0].mxu0 %v1150
    %v1592 = vpop.f32.mrb[0].mxu0
    %v1593 = vadd.f32 %v1196, %v1592
    %v1594 = vpop.f32.mrb[0].mxu0
    %v1595 = vpop.f32.mrb[0].mxu0
    %v1596 = vadd.f32 %v1196, %v1595
    %v1597 = vpop.f32.mrb[0].mxu0
    %1598 = vmatprep.mubr.bf16.mxu0 0
    %1599 = vmatmul.mubr.bf16.gmra.mrb[0].mxu0 %v1151
    %v1600 = vpop.f32.mrb[0].mxu0
    %v1601 = vadd.f32 %v1196, %v1600
    %v1602 = vpop.f32.mrb[0].mxu0
    %v1603 = vpop.f32.mrb[0].mxu0
    %v1604 = vadd.f32 %v1196, %v1603
    %v1605 = vpop.f32.mrb[0].mxu0
    %1606 = vmatprep.mubr.bf16.mxu0 0
    %1607 = vmatmul.mubr.bf16.gmra.mrb[0].mxu0 %v1152
    %v1608 = vpop.f32.mrb[0].mxu0
    %v1609 = vadd.f32 %v1196, %v1608
    %v1610 = vpop.f32.mrb[0].mxu0
    %v1611 = vpop.f32.mrb[0].mxu0
    %v1612 = vadd.f32 %v1196, %v1611
    %v1613 = vpop.f32.mrb[0].mxu0
    %1614 = vmatprep.mubr.bf16.mxu0 0
    %1615 = vmatmul.mubr.bf16.gmra.mrb[0].mxu0 %v1153
    %v1616 = vpop.f32.mrb[0].mxu0
    %v1617 = vadd.f32 %v1196, %v1616
    %v1618 = vpop.f32.mrb[0].mxu0
    %v1619 = vpop.f32.mrb[0].mxu0
    %v1620 = vadd.f32 %v1196, %v1619
    %v1621 = vpop.f32.mrb[0].mxu0
    %1622 = vmatprep.mubr.bf16.mxu0 0
    %1623 = vmatmul.mubr.bf16.gmra.mrb[0].mxu0 %v1154
    %v1624 = vpop.f32.mrb[0].mxu0
    %v1625 = vadd.f32 %v1196, %v1624
    %v1626 = vpop.f32.mrb[0].mxu0
    %v1627 = vpop.f32.mrb[0].mxu0
    %v1628 = vadd.f32 %v1196, %v1627
    %v1629 = vpop.f32.mrb[0].mxu0
    %1630 = vmatprep.mubr.bf16.mxu0 0
    %1631 = vmatmul.mubr.bf16.gmra.mrb[0].mxu0 %v1155
    %v1632 = vpop.f32.mrb[0].mxu0
    %v1633 = vadd.f32 %v1196, %v1632
    %v1634 = vpop.f32.mrb[0].mxu0
    %v1635 = vpop.f32.mrb[0].mxu0
    %v1636 = vadd.f32 %v1196, %v1635
    %v1637 = vpop.f32.mrb[0].mxu0
    %1638 = vmatprep.mubr.bf16.mxu0 0
    %1639 = vmatmul.mubr.bf16.gmra.mrb[0].mxu0 %v1156
    %v1640 = vpop.f32.mrb[0].mxu0
    %v1641 = vadd.f32 %v1196, %v1640
    %v1642 = vpop.f32.mrb[0].mxu0
    %v1643 = vpop.f32.mrb[0].mxu0
    %v1644 = vadd.f32 %v1196, %v1643
    %v1645 = vpop.f32.mrb[0].mxu0
    %1646 = vmatprep.mubr.bf16.mxu0 0
    %1647 = vmatmul.mubr.bf16.gmra.mrb[0].mxu0 %v1157
    %v1648 = vpop.f32.mrb[0].mxu0
    %v1649 = vadd.f32 %v1196, %v1648
    %v1650 = vpop.f32.mrb[0].mxu0
    %v1651 = vpop.f32.mrb[0].mxu0
    %v1652 = vadd.f32 %v1196, %v1651
    %v1653 = vpop.f32.mrb[0].mxu0
    %1654 = vmatprep.mubr.bf16.mxu0 0
    %1655 = vmatmul.mubr.bf16.gmra.mrb[0].mxu0 %v1158
    %v1656 = vpop.f32.mrb[0].mxu0
    %v1657 = vadd.f32 %v1196, %v1656
    %v1658 = vpop.f32.mrb[0].mxu0
    %v1659 = vpop.f32.mrb[0].mxu0
    %v1660 = vadd.f32 %v1196, %v1659
    %v1661 = vpop.f32.mrb[0].mxu0
    %1662 = vmatprep.mubr.bf16.mxu0 0
    %1663 = vmatmul.mubr.bf16.gmra.mrb[0].mxu0 %v1159
    %v1664 = vpop.f32.mrb[0].mxu0
    %v1665 = vadd.f32 %v1196, %v1664
    %v1666 = vpop.f32.mrb[0].mxu0
    %v1667 = vpop.f32.mrb[0].mxu0
    %v1668 = vadd.f32 %v1196, %v1667
    %v1669 = vpop.f32.mrb[0].mxu0
    %1670 = vmatprep.mubr.bf16.mxu0 0
    %1671 = vmatmul.mubr.bf16.gmra.mrb[0].mxu0 %v1160
    %v1672 = vpop.f32.mrb[0].mxu0
    %v1673 = vadd.f32 %v1196, %v1672
    %v1674 = vpop.f32.mrb[0].mxu0
    %v1675 = vpop.f32.mrb[0].mxu0
    %v1676 = vadd.f32 %v1196, %v1675
    %v1677 = vpop.f32.mrb[0].mxu0
    %1678 = vmatprep.mubr.bf16.mxu0 0
    %1679 = vmatmul.mubr.bf16.gmra.mrb[0].mxu0 %v1161
    %v1680 = vpop.f32.mrb[0].mxu0
    %v1681 = vadd.f32 %v1196, %v1680
    %v1682 = vpop.f32.mrb[0].mxu0
    %v1683 = vpop.f32.mrb[0].mxu0
    %v1684 = vadd.f32 %v1196, %v1683
    %v1685 = vpop.f32.mrb[0].mxu0
    %1686 = vmatprep.mubr.bf16.mxu0 0
    %1687 = vmatmul.mubr.bf16.gmra.mrb[0].mxu0 %v1162
    %v1688 = vpop.f32.mrb[0].mxu0
    %v1689 = vadd.f32 %v1196, %v1688
    %v1690 = vpop.f32.mrb[0].mxu0
    %v1691 = vpop.f32.mrb[0].mxu0
    %v1692 = vadd.f32 %v1196, %v1691
    %v1693 = vpop.f32.mrb[0].mxu0
    %1694 = vmatprep.mubr.bf16.mxu0 0
    %1695 = vmatmul.mubr.bf16.gmra.mrb[0].mxu0 %v1163
    %v1696 = vpop.f32.mrb[0].mxu0
    %v1697 = vadd.f32 %v1196, %v1696
    %v1698 = vpop.f32.mrb[0].mxu0
    %v1699 = vpop.f32.mrb[0].mxu0
    %v1700 = vadd.f32 %v1196, %v1699
    %v1701 = vpop.f32.mrb[0].mxu0
    %1702 = vmatprep.mubr.bf16.mxu0 0
    %1703 = vmatmul.mubr.bf16.gmra.mrb[0].mxu0 %v1164
    %v1704 = vpop.f32.mrb[0].mxu0
    %v1705 = vadd.f32 %v1196, %v1704
    %v1706 = vpop.f32.mrb[0].mxu0
    %v1707 = vpop.f32.mrb[0].mxu0
    %v1708 = vadd.f32 %v1196, %v1707
    %v1709 = vpop.f32.mrb[0].mxu0
    %1710 = vmatprep.mubr.bf16.mxu0 0
    %1711 = vmatmul.mubr.bf16.gmra.mrb[0].mxu0 %v1165
    %v1712 = vpop.f32.mrb[0].mxu0
    %v1713 = vadd.f32 %v1196, %v1712
    %v1714 = vpop.f32.mrb[0].mxu0
    %v1715 = vpop.f32.mrb[0].mxu0
    %v1716 = vadd.f32 %v1196, %v1715
    %v1717 = vpop.f32.mrb[0].mxu0
    %1718 = vmatprep.mubr.bf16.mxu0 0
    %1719 = vmatmul.mubr.bf16.gmra.mrb[0].mxu0 %v1166
    %v1720 = vpop.f32.mrb[0].mxu0
    %v1721 = vadd.f32 %v1196, %v1720
    %v1722 = vpop.f32.mrb[0].mxu0
    %v1723 = vpop.f32.mrb[0].mxu0
    %v1724 = vadd.f32 %v1196, %v1723
    %v1725 = vpop.f32.mrb[0].mxu0
    %1726 = vmatprep.mubr.bf16.mxu0 0
    %1727 = vmatmul.mubr.bf16.gmra.mrb[0].mxu0 %v1167
    %v1728 = vpop.f32.mrb[0].mxu0
    %v1729 = vadd.f32 %v1196, %v1728
    %v1730 = vpop.f32.mrb[0].mxu0
    %v1731 = vpop.f32.mrb[0].mxu0
    %v1732 = vadd.f32 %v1196, %v1731
    %v1733 = vpop.f32.mrb[0].mxu0
    %1734 = vmatprep.mubr.bf16.mxu0 0
    %1735 = vmatmul.mubr.bf16.gmra.mrb[0].mxu0 %v1168
    %v1736 = vpop.f32.mrb[0].mxu0
    %v1737 = vadd.f32 %v1196, %v1736
    %v1738 = vpop.f32.mrb[0].mxu0
    %v1739 = vpop.f32.mrb[0].mxu0
    %v1740 = vadd.f32 %v1196, %v1739
    %v1741 = vpop.f32.mrb[0].mxu0
    %1742 = vmatprep.mubr.bf16.mxu0 0
    %1743 = vmatmul.mubr.bf16.gmra.mrb[0].mxu0 %v1169
    %v1744 = vpop.f32.mrb[0].mxu0
    %v1745 = vadd.f32 %v1196, %v1744
    %v1746 = vpop.f32.mrb[0].mxu0
    %v1747 = vpop.f32.mrb[0].mxu0
    %v1748 = vadd.f32 %v1196, %v1747
    %v1749 = vpop.f32.mrb[0].mxu0
    %1750 = vmatprep.mubr.bf16.mxu0 0
    %1751 = vmatmul.mubr.bf16.gmra.mrb[0].mxu0 %v1170
    %v1752 = vpop.f32.mrb[0].mxu0
    %v1753 = vadd.f32 %v1196, %v1752
    %v1754 = vpop.f32.mrb[0].mxu0
    %v1755 = vpop.f32.mrb[0].mxu0
    %v1756 = vadd.f32 %v1196, %v1755
    %v1757 = vpop.f32.mrb[0].mxu0
    %1758 = vmatprep.mubr.bf16.mxu0 0
    %1759 = vmatmul.mubr.bf16.gmra.mrb[0].mxu0 %v1171
    %v1760 = vpop.f32.mrb[0].mxu0
    %v1761 = vadd.f32 %v1196, %v1760
    %v1762 = vpop.f32.mrb[0].mxu0
    %v1763 = vpop.f32.mrb[0].mxu0
    %v1764 = vadd.f32 %v1196, %v1763
    %v1765 = vpop.f32.mrb[0].mxu0
    %1766 = vmatprep.mubr.bf16.mxu0 0
    %1767 = vmatmul.mubr.bf16.gmra.mrb[0].mxu0 %v1172
    %v1768 = vpop.f32.mrb[0].mxu0
    %v1769 = vadd.f32 %v1196, %v1768
    %v1770 = vpop.f32.mrb[0].mxu0
    %v1771 = vpop.f32.mrb[0].mxu0
    %v1772 = vadd.f32 %v1196, %v1771
    %v1773 = vpop.f32.mrb[0].mxu0
    %1774 = vmatprep.mubr.bf16.mxu0 0
    %1775 = vmatmul.mubr.bf16.gmra.mrb[0].mxu0 %v1173
    %v1776 = vpop.f32.mrb[0].mxu0
    %v1777 = vadd.f32 %v1196, %v1776
    %v1778 = vpop.f32.mrb[0].mxu0
    %v1779 = vpop.f32.mrb[0].mxu0
    %v1780 = vadd.f32 %v1196, %v1779
    %v1781 = vpop.f32.mrb[0].mxu0
    %1782 = vmatprep.mubr.bf16.mxu0 0
    %1783 = vmatmul.mubr.bf16.gmra.mrb[0].mxu0 %v1174
    %v1784 = vpop.f32.mrb[0].mxu0
    %v1785 = vadd.f32 %v1196, %v1784
    %v1786 = vpop.f32.mrb[0].mxu0
    %v1787 = vpop.f32.mrb[0].mxu0
    %v1788 = vadd.f32 %v1196, %v1787
    %v1789 = vpop.f32.mrb[0].mxu0
    %1790 = vdwg.mxu0
    %v1791 = vmax.f32 %v1281, 0.0
    %v1792 = vmax.f32 %v1284, 0.0
    %v1793 = vmax.f32 %v1289, 0.0
    %v1794 = vmax.f32 %v1292, 0.0
    %v1795 = vmax.f32 %v1297, 0.0
    %v1796 = vmax.f32 %v1300, 0.0
    %v1797 = vmax.f32 %v1305, 0.0
    %v1798 = vmax.f32 %v1308, 0.0
    %v1799 = vmax.f32 %v1313, 0.0
    %v1800 = vmax.f32 %v1316, 0.0
    %v1801 = vmax.f32 %v1321, 0.0
    %v1802 = vmax.f32 %v1324, 0.0
    %v1803 = vmax.f32 %v1329, 0.0
    %v1804 = vmax.f32 %v1332, 0.0
    %v1805 = vmax.f32 %v1337, 0.0
    %v1806 = vmax.f32 %v1340, 0.0
    %v1807 = vmax.f32 %v1345, 0.0
    %v1808 = vmax.f32 %v1348, 0.0
    %v1809 = vmax.f32 %v1353, 0.0
    %v1810 = vmax.f32 %v1356, 0.0
    %v1811 = vmax.f32 %v1361, 0.0
    %v1812 = vmax.f32 %v1364, 0.0
    %v1813 = vmax.f32 %v1369, 0.0
    %v1814 = vmax.f32 %v1372, 0.0
    %v1815 = vmax.f32 %v1377, 0.0
    %v1816 = vmax.f32 %v1380, 0.0
    %v1817 = vmax.f32 %v1385, 0.0
    %v1818 = vmax.f32 %v1388, 0.0
    %v1819 = vmax.f32 %v1393, 0.0
    %v1820 = vmax.f32 %v1396, 0.0
    %v1821 = vmax.f32 %v1401, 0.0
    %v1822 = vmax.f32 %v1404, 0.0
    %v1823 = vmax.f32 %v1409, 0.0
    %v1824 = vmax.f32 %v1412, 0.0
    %v1825 = vmax.f32 %v1417, 0.0
    %v1826 = vmax.f32 %v1420, 0.0
    %v1827 = vmax.f32 %v1425, 0.0
    %v1828 = vmax.f32 %v1428, 0.0
    %v1829 = vmax.f32 %v1433, 0.0
    %v1830 = vmax.f32 %v1436, 0.0
    %v1831 = vmax.f32 %v1441, 0.0
    %v1832 = vmax.f32 %v1444, 0.0
    %v1833 = vmax.f32 %v1449, 0.0
    %v1834 = vmax.f32 %v1452, 0.0
    %v1835 = vmax.f32 %v1457, 0.0
    %v1836 = vmax.f32 %v1460, 0.0
    %v1837 = vmax.f32 %v1465, 0.0
    %v1838 = vmax.f32 %v1468, 0.0
    %v1839 = vmax.f32 %v1473, 0.0
    %v1840 = vmax.f32 %v1476, 0.0
    %v1841 = vmax.f32 %v1481, 0.0
    %v1842 = vmax.f32 %v1484, 0.0
    %v1843 = vmax.f32 %v1489, 0.0
    %v1844 = vmax.f32 %v1492, 0.0
    %v1845 = vmax.f32 %v1497, 0.0
    %v1846 = vmax.f32 %v1500, 0.0
    %v1847 = vmax.f32 %v1505, 0.0
    %v1848 = vmax.f32 %v1508, 0.0
    %v1849 = vmax.f32 %v1513, 0.0
    %v1850 = vmax.f32 %v1516, 0.0
    %v1851 = vmax.f32 %v1521, 0.0
    %v1852 = vmax.f32 %v1524, 0.0
    %v1853 = vmax.f32 %v1529, 0.0
    %v1854 = vmax.f32 %v1532, 0.0
    %v1855 = vmax.f32 %v1537, 0.0
    %v1856 = vmax.f32 %v1540, 0.0
    %v1857 = vmax.f32 %v1545, 0.0
    %v1858 = vmax.f32 %v1548, 0.0
    %v1859 = vmax.f32 %v1553, 0.0
    %v1860 = vmax.f32 %v1556, 0.0
    %v1861 = vmax.f32 %v1561, 0.0
    %v1862 = vmax.f32 %v1564, 0.0
    %v1863 = vmax.f32 %v1569, 0.0
    %v1864 = vmax.f32 %v1572, 0.0
    %v1865 = vmax.f32 %v1577, 0.0
    %v1866 = vmax.f32 %v1580, 0.0
    %v1867 = vmax.f32 %v1585, 0.0
    %v1868 = vmax.f32 %v1588, 0.0
    %v1869 = vmax.f32 %v1593, 0.0
    %v1870 = vmax.f32 %v1596, 0.0
    %v1871 = vmax.f32 %v1601, 0.0
    %v1872 = vmax.f32 %v1604, 0.0
    %v1873 = vmax.f32 %v1609, 0.0
    %v1874 = vmax.f32 %v1612, 0.0
    %v1875 = vmax.f32 %v1617, 0.0
    %v1876 = vmax.f32 %v1620, 0.0
    %v1877 = vmax.f32 %v1625, 0.0
    %v1878 = vmax.f32 %v1628, 0.0
    %v1879 = vmax.f32 %v1633, 0.0
    %v1880 = vmax.f32 %v1636, 0.0
    %v1881 = vmax.f32 %v1641, 0.0
    %v1882 = vmax.f32 %v1644, 0.0
    %v1883 = vmax.f32 %v1649, 0.0
    %v1884 = vmax.f32 %v1652, 0.0
    %v1885 = vmax.f32 %v1657, 0.0
    %v1886 = vmax.f32 %v1660, 0.0
    %v1887 = vmax.f32 %v1665, 0.0
    %v1888 = vmax.f32 %v1668, 0.0
    %v1889 = vmax.f32 %v1673, 0.0
    %v1890 = vmax.f32 %v1676, 0.0
    %v1891 = vmax.f32 %v1681, 0.0
    %v1892 = vmax.f32 %v1684, 0.0
    %v1893 = vmax.f32 %v1689, 0.0
    %v1894 = vmax.f32 %v1692, 0.0
    %v1895 = vmax.f32 %v1697, 0.0
    %v1896 = vmax.f32 %v1700, 0.0
    %v1897 = vmax.f32 %v1705, 0.0
    %v1898 = vmax.f32 %v1708, 0.0
    %v1899 = vmax.f32 %v1713, 0.0
    %v1900 = vmax.f32 %v1716, 0.0
    %v1901 = vmax.f32 %v1721, 0.0
    %v1902 = vmax.f32 %v1724, 0.0
    %v1903 = vmax.f32 %v1729, 0.0
    %v1904 = vmax.f32 %v1732, 0.0
    %v1905 = vmax.f32 %v1737, 0.0
    %v1906 = vmax.f32 %v1740, 0.0
    %v1907 = vmax.f32 %v1745, 0.0
    %v1908 = vmax.f32 %v1748, 0.0
    %v1909 = vmax.f32 %v1753, 0.0
    %v1910 = vmax.f32 %v1756, 0.0
    %v1911 = vmax.f32 %v1761, 0.0
    %v1912 = vmax.f32 %v1764, 0.0
    %v1913 = vmax.f32 %v1769, 0.0
    %v1914 = vmax.f32 %v1772, 0.0
    %v1915 = vmax.f32 %v1777, 0.0
    %v1916 = vmax.f32 %v1780, 0.0
    %v1917 = vmax.f32 %v1785, 0.0
    %v1918 = vmax.f32 %v1788, 0.0
    %v1919 = vld [vmem:[%s5] sm:$0x1]
    %v1921 = vlaneseq
    %v1922 = vshrl.u32 %v1921, 7
    %v1923 = vsub.s32 0, %v1922
    %v1924 = vrot.slane %v1919, %v1923
    %v1926 = vmul.f32 %v1791, %v1924
    %v1927 = vmul.f32 %v1792, %v1924
    %v1928 = vmul.f32 %v1793, %v1924
    %v1929 = vmul.f32 %v1794, %v1924
    %v1930 = vmul.f32 %v1795, %v1924
    %v1931 = vmul.f32 %v1796, %v1924
    %v1932 = vmul.f32 %v1797, %v1924
    %v1933 = vmul.f32 %v1798, %v1924
    %v1934 = vmul.f32 %v1799, %v1924
    %v1935 = vmul.f32 %v1800, %v1924
    %v1936 = vmul.f32 %v1801, %v1924
    %v1937 = vmul.f32 %v1802, %v1924
    %v1938 = vmul.f32 %v1803, %v1924
    %v1939 = vmul.f32 %v1804, %v1924
    %v1940 = vmul.f32 %v1805, %v1924
    %v1941 = vmul.f32 %v1806, %v1924
    %v1942 = vmul.f32 %v1807, %v1924
    %v1943 = vmul.f32 %v1808, %v1924
    %v1944 = vmul.f32 %v1809, %v1924
    %v1945 = vmul.f32 %v1810, %v1924
    %v1946 = vmul.f32 %v1811, %v1924
    %v1947 = vmul.f32 %v1812, %v1924
    %v1948 = vmul.f32 %v1813, %v1924
    %v1949 = vmul.f32 %v1814, %v1924
    %v1950 = vmul.f32 %v1815, %v1924
    %v1951 = vmul.f32 %v1816, %v1924
    %v1952 = vmul.f32 %v1817, %v1924
    %v1953 = vmul.f32 %v1818, %v1924
    %v1954 = vmul.f32 %v1819, %v1924
    %v1955 = vmul.f32 %v1820, %v1924
    %v1956 = vmul.f32 %v1821, %v1924
    %v1957 = vmul.f32 %v1822, %v1924
    %v1958 = vmul.f32 %v1823, %v1924
    %v1959 = vmul.f32 %v1824, %v1924
    %v1960 = vmul.f32 %v1825, %v1924
    %v1961 = vmul.f32 %v1826, %v1924
    %v1962 = vmul.f32 %v1827, %v1924
    %v1963 = vmul.f32 %v1828, %v1924
    %v1964 = vmul.f32 %v1829, %v1924
    %v1965 = vmul.f32 %v1830, %v1924
    %v1966 = vmul.f32 %v1831, %v1924
    %v1967 = vmul.f32 %v1832, %v1924
    %v1968 = vmul.f32 %v1833, %v1924
    %v1969 = vmul.f32 %v1834, %v1924
    %v1970 = vmul.f32 %v1835, %v1924
    %v1971 = vmul.f32 %v1836, %v1924
    %v1972 = vmul.f32 %v1837, %v1924
    %v1973 = vmul.f32 %v1838, %v1924
    %v1974 = vmul.f32 %v1839, %v1924
    %v1975 = vmul.f32 %v1840, %v1924
    %v1976 = vmul.f32 %v1841, %v1924
    %v1977 = vmul.f32 %v1842, %v1924
    %v1978 = vmul.f32 %v1843, %v1924
    %v1979 = vmul.f32 %v1844, %v1924
    %v1980 = vmul.f32 %v1845, %v1924
    %v1981 = vmul.f32 %v1846, %v1924
    %v1982 = vmul.f32 %v1847, %v1924
    %v1983 = vmul.f32 %v1848, %v1924
    %v1984 = vmul.f32 %v1849, %v1924
    %v1985 = vmul.f32 %v1850, %v1924
    %v1986 = vmul.f32 %v1851, %v1924
    %v1987 = vmul.f32 %v1852, %v1924
    %v1988 = vmul.f32 %v1853, %v1924
    %v1989 = vmul.f32 %v1854, %v1924
    %v1990 = vmul.f32 %v1855, %v1924
    %v1991 = vmul.f32 %v1856, %v1924
    %v1992 = vmul.f32 %v1857, %v1924
    %v1993 = vmul.f32 %v1858, %v1924
    %v1994 = vmul.f32 %v1859, %v1924
    %v1995 = vmul.f32 %v1860, %v1924
    %v1996 = vmul.f32 %v1861, %v1924
    %v1997 = vmul.f32 %v1862, %v1924
    %v1998 = vmul.f32 %v1863, %v1924
    %v1999 = vmul.f32 %v1864, %v1924
    %v2000 = vmul.f32 %v1865, %v1924
    %v2001 = vmul.f32 %v1866, %v1924
    %v2002 = vmul.f32 %v1867, %v1924
    %v2003 = vmul.f32 %v1868, %v1924
    %v2004 = vmul.f32 %v1869, %v1924
    %v2005 = vmul.f32 %v1870, %v1924
    %v2006 = vmul.f32 %v1871, %v1924
    %v2007 = vmul.f32 %v1872, %v1924
    %v2008 = vmul.f32 %v1873, %v1924
    %v2009 = vmul.f32 %v1874, %v1924
    %v2010 = vmul.f32 %v1875, %v1924
    %v2011 = vmul.f32 %v1876, %v1924
    %v2012 = vmul.f32 %v1877, %v1924
    %v2013 = vmul.f32 %v1878, %v1924
    %v2014 = vmul.f32 %v1879, %v1924
    %v2015 = vmul.f32 %v1880, %v1924
    %v2016 = vmul.f32 %v1881, %v1924
    %v2017 = vmul.f32 %v1882, %v1924
    %v2018 = vmul.f32 %v1883, %v1924
    %v2019 = vmul.f32 %v1884, %v1924
    %v2020 = vmul.f32 %v1885, %v1924
    %v2021 = vmul.f32 %v1886, %v1924
    %v2022 = vmul.f32 %v1887, %v1924
    %v2023 = vmul.f32 %v1888, %v1924
    %v2024 = vmul.f32 %v1889, %v1924
    %v2025 = vmul.f32 %v1890, %v1924
    %v2026 = vmul.f32 %v1891, %v1924
    %v2027 = vmul.f32 %v1892, %v1924
    %v2028 = vmul.f32 %v1893, %v1924
    %v2029 = vmul.f32 %v1894, %v1924
    %v2030 = vmul.f32 %v1895, %v1924
    %v2031 = vmul.f32 %v1896, %v1924
    %v2032 = vmul.f32 %v1897, %v1924
    %v2033 = vmul.f32 %v1898, %v1924
    %v2034 = vmul.f32 %v1899, %v1924
    %v2035 = vmul.f32 %v1900, %v1924
    %v2036 = vmul.f32 %v1901, %v1924
    %v2037 = vmul.f32 %v1902, %v1924
    %v2038 = vmul.f32 %v1903, %v1924
    %v2039 = vmul.f32 %v1904, %v1924
    %v2040 = vmul.f32 %v1905, %v1924
    %v2041 = vmul.f32 %v1906, %v1924
    %v2042 = vmul.f32 %v1907, %v1924
    %v2043 = vmul.f32 %v1908, %v1924
    %v2044 = vmul.f32 %v1909, %v1924
    %v2045 = vmul.f32 %v1910, %v1924
    %v2046 = vmul.f32 %v1911, %v1924
    %v2047 = vmul.f32 %v1912, %v1924
    %v2048 = vmul.f32 %v1913, %v1924
    %v2049 = vmul.f32 %v1914, %v1924
    %v2050 = vmul.f32 %v1915, %v1924
    %v2051 = vmul.f32 %v1916, %v1924
    %v2052 = vmul.f32 %v1917, %v1924
    %v2053 = vmul.f32 %v1918, %v1924
    %vm2054 = vcmask 523264
    %v2055 = vsel %vm2054, %v1926, 0.0
    %2056 = vadd.xlane.f32.xlu0 %v2055
    %v2057 = vpop.xlane.xlu0 %2056
    %v2058 = vsel %vm2054, %v1927, 0.0
    %2059 = vadd.xlane.f32.xlu0 %v2058
    %v2060 = vpop.xlane.xlu0 %2059
    %v2061 = vsel %vm2054, %v1928, 0.0
    %2062 = vadd.xlane.f32.xlu0 %v2061
    %v2063 = vpop.xlane.xlu0 %2062
    %v2064 = vsel %vm2054, %v1929, 0.0
    %2065 = vadd.xlane.f32.xlu0 %v2064
    %v2066 = vpop.xlane.xlu0 %2065
    %v2067 = vsel %vm2054, %v1930, 0.0
    %2068 = vadd.xlane.f32.xlu0 %v2067
    %v2069 = vpop.xlane.xlu0 %2068
    %v2070 = vsel %vm2054, %v1931, 0.0
    %2071 = vadd.xlane.f32.xlu0 %v2070
    %v2072 = vpop.xlane.xlu0 %2071
    %v2073 = vsel %vm2054, %v1932, 0.0
    %2074 = vadd.xlane.f32.xlu0 %v2073
    %v2075 = vpop.xlane.xlu0 %2074
    %v2076 = vsel %vm2054, %v1933, 0.0
    %2077 = vadd.xlane.f32.xlu0 %v2076
    %v2078 = vpop.xlane.xlu0 %2077
    %v2079 = vsel %vm2054, %v1934, 0.0
    %2080 = vadd.xlane.f32.xlu0 %v2079
    %v2081 = vpop.xlane.xlu0 %2080
    %v2082 = vsel %vm2054, %v1935, 0.0
    %2083 = vadd.xlane.f32.xlu0 %v2082
    %v2084 = vpop.xlane.xlu0 %2083
    %v2085 = vsel %vm2054, %v1936, 0.0
    %2086 = vadd.xlane.f32.xlu0 %v2085
    %v2087 = vpop.xlane.xlu0 %2086
    %v2088 = vsel %vm2054, %v1937, 0.0
    %2089 = vadd.xlane.f32.xlu0 %v2088
    %v2090 = vpop.xlane.xlu0 %2089
    %v2091 = vsel %vm2054, %v1938, 0.0
    %2092 = vadd.xlane.f32.xlu0 %v2091
    %v2093 = vpop.xlane.xlu0 %2092
    %v2094 = vsel %vm2054, %v1939, 0.0
    %2095 = vadd.xlane.f32.xlu0 %v2094
    %v2096 = vpop.xlane.xlu0 %2095
    %v2097 = vsel %vm2054, %v1940, 0.0
    %2098 = vadd.xlane.f32.xlu0 %v2097
    %v2099 = vpop.xlane.xlu0 %2098
    %v2100 = vsel %vm2054, %v1941, 0.0
    %2101 = vadd.xlane.f32.xlu0 %v2100
    %v2102 = vpop.xlane.xlu0 %2101
    %v2103 = vsel %vm2054, %v1942, 0.0
    %2104 = vadd.xlane.f32.xlu0 %v2103
    %v2105 = vpop.xlane.xlu0 %2104
    %v2106 = vsel %vm2054, %v1943, 0.0
    %2107 = vadd.xlane.f32.xlu0 %v2106
    %v2108 = vpop.xlane.xlu0 %2107
    %v2109 = vsel %vm2054, %v1944, 0.0
    %2110 = vadd.xlane.f32.xlu0 %v2109
    %v2111 = vpop.xlane.xlu0 %2110
    %v2112 = vsel %vm2054, %v1945, 0.0
    %2113 = vadd.xlane.f32.xlu0 %v2112
    %v2114 = vpop.xlane.xlu0 %2113
    %v2115 = vsel %vm2054, %v1946, 0.0
    %2116 = vadd.xlane.f32.xlu0 %v2115
    %v2117 = vpop.xlane.xlu0 %2116
    %v2118 = vsel %vm2054, %v1947, 0.0
    %2119 = vadd.xlane.f32.xlu0 %v2118
    %v2120 = vpop.xlane.xlu0 %2119
    %v2121 = vsel %vm2054, %v1948, 0.0
    %2122 = vadd.xlane.f32.xlu0 %v2121
    %v2123 = vpop.xlane.xlu0 %2122
    %v2124 = vsel %vm2054, %v1949, 0.0
    %2125 = vadd.xlane.f32.xlu0 %v2124
    %v2126 = vpop.xlane.xlu0 %2125
    %v2127 = vsel %vm2054, %v1950, 0.0
    %2128 = vadd.xlane.f32.xlu0 %v2127
    %v2129 = vpop.xlane.xlu0 %2128
    %v2130 = vsel %vm2054, %v1951, 0.0
    %2131 = vadd.xlane.f32.xlu0 %v2130
    %v2132 = vpop.xlane.xlu0 %2131
    %v2133 = vsel %vm2054, %v1952, 0.0
    %2134 = vadd.xlane.f32.xlu0 %v2133
    %v2135 = vpop.xlane.xlu0 %2134
    %v2136 = vsel %vm2054, %v1953, 0.0
    %2137 = vadd.xlane.f32.xlu0 %v2136
    %v2138 = vpop.xlane.xlu0 %2137
    %v2139 = vsel %vm2054, %v1954, 0.0
    %2140 = vadd.xlane.f32.xlu0 %v2139
    %v2141 = vpop.xlane.xlu0 %2140
    %v2142 = vsel %vm2054, %v1955, 0.0
    %2143 = vadd.xlane.f32.xlu0 %v2142
    %v2144 = vpop.xlane.xlu0 %2143
    %v2145 = vsel %vm2054, %v1956, 0.0
    %2146 = vadd.xlane.f32.xlu0 %v2145
    %v2147 = vpop.xlane.xlu0 %2146
    %v2148 = vsel %vm2054, %v1957, 0.0
    %2149 = vadd.xlane.f32.xlu0 %v2148
    %v2150 = vpop.xlane.xlu0 %2149
    %v2151 = vsel %vm2054, %v1958, 0.0
    %2152 = vadd.xlane.f32.xlu0 %v2151
    %v2153 = vpop.xlane.xlu0 %2152
    %v2154 = vsel %vm2054, %v1959, 0.0
    %2155 = vadd.xlane.f32.xlu0 %v2154
    %v2156 = vpop.xlane.xlu0 %2155
    %v2157 = vsel %vm2054, %v1960, 0.0
    %2158 = vadd.xlane.f32.xlu0 %v2157
    %v2159 = vpop.xlane.xlu0 %2158
    %v2160 = vsel %vm2054, %v1961, 0.0
    %2161 = vadd.xlane.f32.xlu0 %v2160
    %v2162 = vpop.xlane.xlu0 %2161
    %v2163 = vsel %vm2054, %v1962, 0.0
    %2164 = vadd.xlane.f32.xlu0 %v2163
    %v2165 = vpop.xlane.xlu0 %2164
    %v2166 = vsel %vm2054, %v1963, 0.0
    %2167 = vadd.xlane.f32.xlu0 %v2166
    %v2168 = vpop.xlane.xlu0 %2167
    %v2169 = vsel %vm2054, %v1964, 0.0
    %2170 = vadd.xlane.f32.xlu0 %v2169
    %v2171 = vpop.xlane.xlu0 %2170
    %v2172 = vsel %vm2054, %v1965, 0.0
    %2173 = vadd.xlane.f32.xlu0 %v2172
    %v2174 = vpop.xlane.xlu0 %2173
    %v2175 = vsel %vm2054, %v1966, 0.0
    %2176 = vadd.xlane.f32.xlu0 %v2175
    %v2177 = vpop.xlane.xlu0 %2176
    %v2178 = vsel %vm2054, %v1967, 0.0
    %2179 = vadd.xlane.f32.xlu0 %v2178
    %v2180 = vpop.xlane.xlu0 %2179
    %v2181 = vsel %vm2054, %v1968, 0.0
    %2182 = vadd.xlane.f32.xlu0 %v2181
    %v2183 = vpop.xlane.xlu0 %2182
    %v2184 = vsel %vm2054, %v1969, 0.0
    %2185 = vadd.xlane.f32.xlu0 %v2184
    %v2186 = vpop.xlane.xlu0 %2185
    %v2187 = vsel %vm2054, %v1970, 0.0
    %2188 = vadd.xlane.f32.xlu0 %v2187
    %v2189 = vpop.xlane.xlu0 %2188
    %v2190 = vsel %vm2054, %v1971, 0.0
    %2191 = vadd.xlane.f32.xlu0 %v2190
    %v2192 = vpop.xlane.xlu0 %2191
    %v2193 = vsel %vm2054, %v1972, 0.0
    %2194 = vadd.xlane.f32.xlu0 %v2193
    %v2195 = vpop.xlane.xlu0 %2194
    %v2196 = vsel %vm2054, %v1973, 0.0
    %2197 = vadd.xlane.f32.xlu0 %v2196
    %v2198 = vpop.xlane.xlu0 %2197
    %v2199 = vsel %vm2054, %v1974, 0.0
    %2200 = vadd.xlane.f32.xlu0 %v2199
    %v2201 = vpop.xlane.xlu0 %2200
    %v2202 = vsel %vm2054, %v1975, 0.0
    %2203 = vadd.xlane.f32.xlu0 %v2202
    %v2204 = vpop.xlane.xlu0 %2203
    %v2205 = vsel %vm2054, %v1976, 0.0
    %2206 = vadd.xlane.f32.xlu0 %v2205
    %v2207 = vpop.xlane.xlu0 %2206
    %v2208 = vsel %vm2054, %v1977, 0.0
    %2209 = vadd.xlane.f32.xlu0 %v2208
    %v2210 = vpop.xlane.xlu0 %2209
    %v2211 = vsel %vm2054, %v1978, 0.0
    %2212 = vadd.xlane.f32.xlu0 %v2211
    %v2213 = vpop.xlane.xlu0 %2212
    %v2214 = vsel %vm2054, %v1979, 0.0
    %2215 = vadd.xlane.f32.xlu0 %v2214
    %v2216 = vpop.xlane.xlu0 %2215
    %v2217 = vsel %vm2054, %v1980, 0.0
    %2218 = vadd.xlane.f32.xlu0 %v2217
    %v2219 = vpop.xlane.xlu0 %2218
    %v2220 = vsel %vm2054, %v1981, 0.0
    %2221 = vadd.xlane.f32.xlu0 %v2220
    %v2222 = vpop.xlane.xlu0 %2221
    %v2223 = vsel %vm2054, %v1982, 0.0
    %2224 = vadd.xlane.f32.xlu0 %v2223
    %v2225 = vpop.xlane.xlu0 %2224
    %v2226 = vsel %vm2054, %v1983, 0.0
    %2227 = vadd.xlane.f32.xlu0 %v2226
    %v2228 = vpop.xlane.xlu0 %2227
    %v2229 = vsel %vm2054, %v1984, 0.0
    %2230 = vadd.xlane.f32.xlu0 %v2229
    %v2231 = vpop.xlane.xlu0 %2230
    %v2232 = vsel %vm2054, %v1985, 0.0
    %2233 = vadd.xlane.f32.xlu0 %v2232
    %v2234 = vpop.xlane.xlu0 %2233
    %v2235 = vsel %vm2054, %v1986, 0.0
    %2236 = vadd.xlane.f32.xlu0 %v2235
    %v2237 = vpop.xlane.xlu0 %2236
    %v2238 = vsel %vm2054, %v1987, 0.0
    %2239 = vadd.xlane.f32.xlu0 %v2238
    %v2240 = vpop.xlane.xlu0 %2239
    %v2241 = vsel %vm2054, %v1988, 0.0
    %2242 = vadd.xlane.f32.xlu0 %v2241
    %v2243 = vpop.xlane.xlu0 %2242
    %v2244 = vsel %vm2054, %v1989, 0.0
    %2245 = vadd.xlane.f32.xlu0 %v2244
    %v2246 = vpop.xlane.xlu0 %2245
    %v2247 = vsel %vm2054, %v1990, 0.0
    %2248 = vadd.xlane.f32.xlu0 %v2247
    %v2249 = vpop.xlane.xlu0 %2248
    %v2250 = vsel %vm2054, %v1991, 0.0
    %2251 = vadd.xlane.f32.xlu0 %v2250
    %v2252 = vpop.xlane.xlu0 %2251
    %v2253 = vsel %vm2054, %v1992, 0.0
    %2254 = vadd.xlane.f32.xlu0 %v2253
    %v2255 = vpop.xlane.xlu0 %2254
    %v2256 = vsel %vm2054, %v1993, 0.0
    %2257 = vadd.xlane.f32.xlu0 %v2256
    %v2258 = vpop.xlane.xlu0 %2257
    %v2259 = vsel %vm2054, %v1994, 0.0
    %2260 = vadd.xlane.f32.xlu0 %v2259
    %v2261 = vpop.xlane.xlu0 %2260
    %v2262 = vsel %vm2054, %v1995, 0.0
    %2263 = vadd.xlane.f32.xlu0 %v2262
    %v2264 = vpop.xlane.xlu0 %2263
    %v2265 = vsel %vm2054, %v1996, 0.0
    %2266 = vadd.xlane.f32.xlu0 %v2265
    %v2267 = vpop.xlane.xlu0 %2266
    %v2268 = vsel %vm2054, %v1997, 0.0
    %2269 = vadd.xlane.f32.xlu0 %v2268
    %v2270 = vpop.xlane.xlu0 %2269
    %v2271 = vsel %vm2054, %v1998, 0.0
    %2272 = vadd.xlane.f32.xlu0 %v2271
    %v2273 = vpop.xlane.xlu0 %2272
    %v2274 = vsel %vm2054, %v1999, 0.0
    %2275 = vadd.xlane.f32.xlu0 %v2274
    %v2276 = vpop.xlane.xlu0 %2275
    %v2277 = vsel %vm2054, %v2000, 0.0
    %2278 = vadd.xlane.f32.xlu0 %v2277
    %v2279 = vpop.xlane.xlu0 %2278
    %v2280 = vsel %vm2054, %v2001, 0.0
    %2281 = vadd.xlane.f32.xlu0 %v2280
    %v2282 = vpop.xlane.xlu0 %2281
    %v2283 = vsel %vm2054, %v2002, 0.0
    %2284 = vadd.xlane.f32.xlu0 %v2283
    %v2285 = vpop.xlane.xlu0 %2284
    %v2286 = vsel %vm2054, %v2003, 0.0
    %2287 = vadd.xlane.f32.xlu0 %v2286
    %v2288 = vpop.xlane.xlu0 %2287
    %v2289 = vsel %vm2054, %v2004, 0.0
    %2290 = vadd.xlane.f32.xlu0 %v2289
    %v2291 = vpop.xlane.xlu0 %2290
    %v2292 = vsel %vm2054, %v2005, 0.0
    %2293 = vadd.xlane.f32.xlu0 %v2292
    %v2294 = vpop.xlane.xlu0 %2293
    %v2295 = vsel %vm2054, %v2006, 0.0
    %2296 = vadd.xlane.f32.xlu0 %v2295
    %v2297 = vpop.xlane.xlu0 %2296
    %v2298 = vsel %vm2054, %v2007, 0.0
    %2299 = vadd.xlane.f32.xlu0 %v2298
    %v2300 = vpop.xlane.xlu0 %2299
    %v2301 = vsel %vm2054, %v2008, 0.0
    %2302 = vadd.xlane.f32.xlu0 %v2301
    %v2303 = vpop.xlane.xlu0 %2302
    %v2304 = vsel %vm2054, %v2009, 0.0
    %2305 = vadd.xlane.f32.xlu0 %v2304
    %v2306 = vpop.xlane.xlu0 %2305
    %v2307 = vsel %vm2054, %v2010, 0.0
    %2308 = vadd.xlane.f32.xlu0 %v2307
    %v2309 = vpop.xlane.xlu0 %2308
    %v2310 = vsel %vm2054, %v2011, 0.0
    %2311 = vadd.xlane.f32.xlu0 %v2310
    %v2312 = vpop.xlane.xlu0 %2311
    %v2313 = vsel %vm2054, %v2012, 0.0
    %2314 = vadd.xlane.f32.xlu0 %v2313
    %v2315 = vpop.xlane.xlu0 %2314
    %v2316 = vsel %vm2054, %v2013, 0.0
    %2317 = vadd.xlane.f32.xlu0 %v2316
    %v2318 = vpop.xlane.xlu0 %2317
    %v2319 = vsel %vm2054, %v2014, 0.0
    %2320 = vadd.xlane.f32.xlu0 %v2319
    %v2321 = vpop.xlane.xlu0 %2320
    %v2322 = vsel %vm2054, %v2015, 0.0
    %2323 = vadd.xlane.f32.xlu0 %v2322
    %v2324 = vpop.xlane.xlu0 %2323
    %v2325 = vsel %vm2054, %v2016, 0.0
    %2326 = vadd.xlane.f32.xlu0 %v2325
    %v2327 = vpop.xlane.xlu0 %2326
    %v2328 = vsel %vm2054, %v2017, 0.0
    %2329 = vadd.xlane.f32.xlu0 %v2328
    %v2330 = vpop.xlane.xlu0 %2329
    %v2331 = vsel %vm2054, %v2018, 0.0
    %2332 = vadd.xlane.f32.xlu0 %v2331
    %v2333 = vpop.xlane.xlu0 %2332
    %v2334 = vsel %vm2054, %v2019, 0.0
    %2335 = vadd.xlane.f32.xlu0 %v2334
    %v2336 = vpop.xlane.xlu0 %2335
    %v2337 = vsel %vm2054, %v2020, 0.0
    %2338 = vadd.xlane.f32.xlu0 %v2337
    %v2339 = vpop.xlane.xlu0 %2338
    %v2340 = vsel %vm2054, %v2021, 0.0
    %2341 = vadd.xlane.f32.xlu0 %v2340
    %v2342 = vpop.xlane.xlu0 %2341
    %v2343 = vsel %vm2054, %v2022, 0.0
    %2344 = vadd.xlane.f32.xlu0 %v2343
    %v2345 = vpop.xlane.xlu0 %2344
    %v2346 = vsel %vm2054, %v2023, 0.0
    %2347 = vadd.xlane.f32.xlu0 %v2346
    %v2348 = vpop.xlane.xlu0 %2347
    %v2349 = vsel %vm2054, %v2024, 0.0
    %2350 = vadd.xlane.f32.xlu0 %v2349
    %v2351 = vpop.xlane.xlu0 %2350
    %v2352 = vsel %vm2054, %v2025, 0.0
    %2353 = vadd.xlane.f32.xlu0 %v2352
    %v2354 = vpop.xlane.xlu0 %2353
    %v2355 = vsel %vm2054, %v2026, 0.0
    %2356 = vadd.xlane.f32.xlu0 %v2355
    %v2357 = vpop.xlane.xlu0 %2356
    %v2358 = vsel %vm2054, %v2027, 0.0
    %2359 = vadd.xlane.f32.xlu0 %v2358
    %v2360 = vpop.xlane.xlu0 %2359
    %v2361 = vsel %vm2054, %v2028, 0.0
    %2362 = vadd.xlane.f32.xlu0 %v2361
    %v2363 = vpop.xlane.xlu0 %2362
    %v2364 = vsel %vm2054, %v2029, 0.0
    %2365 = vadd.xlane.f32.xlu0 %v2364
    %v2366 = vpop.xlane.xlu0 %2365
    %v2367 = vsel %vm2054, %v2030, 0.0
    %2368 = vadd.xlane.f32.xlu0 %v2367
    %v2369 = vpop.xlane.xlu0 %2368
    %v2370 = vsel %vm2054, %v2031, 0.0
    %2371 = vadd.xlane.f32.xlu0 %v2370
    %v2372 = vpop.xlane.xlu0 %2371
    %v2373 = vsel %vm2054, %v2032, 0.0
    %2374 = vadd.xlane.f32.xlu0 %v2373
    %v2375 = vpop.xlane.xlu0 %2374
    %v2376 = vsel %vm2054, %v2033, 0.0
    %2377 = vadd.xlane.f32.xlu0 %v2376
    %v2378 = vpop.xlane.xlu0 %2377
    %v2379 = vsel %vm2054, %v2034, 0.0
    %2380 = vadd.xlane.f32.xlu0 %v2379
    %v2381 = vpop.xlane.xlu0 %2380
    %v2382 = vsel %vm2054, %v2035, 0.0
    %2383 = vadd.xlane.f32.xlu0 %v2382
    %v2384 = vpop.xlane.xlu0 %2383
    %v2385 = vsel %vm2054, %v2036, 0.0
    %2386 = vadd.xlane.f32.xlu0 %v2385
    %v2387 = vpop.xlane.xlu0 %2386
    %v2388 = vsel %vm2054, %v2037, 0.0
    %2389 = vadd.xlane.f32.xlu0 %v2388
    %v2390 = vpop.xlane.xlu0 %2389
    %v2391 = vsel %vm2054, %v2038, 0.0
    %2392 = vadd.xlane.f32.xlu0 %v2391
    %v2393 = vpop.xlane.xlu0 %2392
    %v2394 = vsel %vm2054, %v2039, 0.0
    %2395 = vadd.xlane.f32.xlu0 %v2394
    %v2396 = vpop.xlane.xlu0 %2395
    %v2397 = vsel %vm2054, %v2040, 0.0
    %2398 = vadd.xlane.f32.xlu0 %v2397
    %v2399 = vpop.xlane.xlu0 %2398
    %v2400 = vsel %vm2054, %v2041, 0.0
    %2401 = vadd.xlane.f32.xlu0 %v2400
    %v2402 = vpop.xlane.xlu0 %2401
    %v2403 = vsel %vm2054, %v2042, 0.0
    %2404 = vadd.xlane.f32.xlu0 %v2403
    %v2405 = vpop.xlane.xlu0 %2404
    %v2406 = vsel %vm2054, %v2043, 0.0
    %2407 = vadd.xlane.f32.xlu0 %v2406
    %v2408 = vpop.xlane.xlu0 %2407
    %v2409 = vsel %vm2054, %v2044, 0.0
    %2410 = vadd.xlane.f32.xlu0 %v2409
    %v2411 = vpop.xlane.xlu0 %2410
    %v2412 = vsel %vm2054, %v2045, 0.0
    %2413 = vadd.xlane.f32.xlu0 %v2412
    %v2414 = vpop.xlane.xlu0 %2413
    %v2415 = vsel %vm2054, %v2046, 0.0
    %2416 = vadd.xlane.f32.xlu0 %v2415
    %v2417 = vpop.xlane.xlu0 %2416
    %v2418 = vsel %vm2054, %v2047, 0.0
    %2419 = vadd.xlane.f32.xlu0 %v2418
    %v2420 = vpop.xlane.xlu0 %2419
    %v2421 = vsel %vm2054, %v2048, 0.0
    %2422 = vadd.xlane.f32.xlu0 %v2421
    %v2423 = vpop.xlane.xlu0 %2422
    %v2424 = vsel %vm2054, %v2049, 0.0
    %2425 = vadd.xlane.f32.xlu0 %v2424
    %v2426 = vpop.xlane.xlu0 %2425
    %v2427 = vsel %vm2054, %v2050, 0.0
    %2428 = vadd.xlane.f32.xlu0 %v2427
    %v2429 = vpop.xlane.xlu0 %2428
    %v2430 = vsel %vm2054, %v2051, 0.0
    %2431 = vadd.xlane.f32.xlu0 %v2430
    %v2432 = vpop.xlane.xlu0 %2431
    %v2433 = vsel %vm2054, %v2052, 0.0
    %2434 = vadd.xlane.f32.xlu0 %v2433
    %v2435 = vpop.xlane.xlu0 %2434
    %v2436 = vsel %vm2054, %v2053, 0.0
    %2437 = vadd.xlane.f32.xlu0 %v2436
    %v2438 = vpop.xlane.xlu0 %2437
    %v2439 = vld [vmem:[#allocation2] sm:$0x1]
    %v2441 = vlaneseq
    %v2442 = vshrl.u32 %v2441, 7
    %v2443 = vsub.s32 0, %v2442
    %v2444 = vrot.slane %v2439, %v2443
    %2445 = vset.pattern.permute.xlu0 0
    %2446 = vperm.xlu0 %2445, %v2444
    %v2447 = vpop.permute.xlu0 %2446
    %v2449 = vadd.f32 %v2057, %v2447
    %v2450 = vadd.f32 %v2060, %v2447
    %v2451 = vadd.f32 %v2063, %v2447
    %v2452 = vadd.f32 %v2066, %v2447
    %v2453 = vadd.f32 %v2069, %v2447
    %v2454 = vadd.f32 %v2072, %v2447
    %v2455 = vadd.f32 %v2075, %v2447
    %v2456 = vadd.f32 %v2078, %v2447
    %v2457 = vadd.f32 %v2081, %v2447
    %v2458 = vadd.f32 %v2084, %v2447
    %v2459 = vadd.f32 %v2087, %v2447
    %v2460 = vadd.f32 %v2090, %v2447
    %v2461 = vadd.f32 %v2093, %v2447
    %v2462 = vadd.f32 %v2096, %v2447
    %v2463 = vadd.f32 %v2099, %v2447
    %v2464 = vadd.f32 %v2102, %v2447
    %v2465 = vadd.f32 %v2105, %v2447
    %v2466 = vadd.f32 %v2108, %v2447
    %v2467 = vadd.f32 %v2111, %v2447
    %v2468 = vadd.f32 %v2114, %v2447
    %v2469 = vadd.f32 %v2117, %v2447
    %v2470 = vadd.f32 %v2120, %v2447
    %v2471 = vadd.f32 %v2123, %v2447
    %v2472 = vadd.f32 %v2126, %v2447
    %v2473 = vadd.f32 %v2129, %v2447
    %v2474 = vadd.f32 %v2132, %v2447
    %v2475 = vadd.f32 %v2135, %v2447
    %v2476 = vadd.f32 %v2138, %v2447
    %v2477 = vadd.f32 %v2141, %v2447
    %v2478 = vadd.f32 %v2144, %v2447
    %v2479 = vadd.f32 %v2147, %v2447
    %v2480 = vadd.f32 %v2150, %v2447
    %v2481 = vadd.f32 %v2153, %v2447
    %v2482 = vadd.f32 %v2156, %v2447
    %v2483 = vadd.f32 %v2159, %v2447
    %v2484 = vadd.f32 %v2162, %v2447
    %v2485 = vadd.f32 %v2165, %v2447
    %v2486 = vadd.f32 %v2168, %v2447
    %v2487 = vadd.f32 %v2171, %v2447
    %v2488 = vadd.f32 %v2174, %v2447
    %v2489 = vadd.f32 %v2177, %v2447
    %v2490 = vadd.f32 %v2180, %v2447
    %v2491 = vadd.f32 %v2183, %v2447
    %v2492 = vadd.f32 %v2186, %v2447
    %v2493 = vadd.f32 %v2189, %v2447
    %v2494 = vadd.f32 %v2192, %v2447
    %v2495 = vadd.f32 %v2195, %v2447
    %v2496 = vadd.f32 %v2198, %v2447
    %v2497 = vadd.f32 %v2201, %v2447
    %v2498 = vadd.f32 %v2204, %v2447
    %v2499 = vadd.f32 %v2207, %v2447
    %v2500 = vadd.f32 %v2210, %v2447
    %v2501 = vadd.f32 %v2213, %v2447
    %v2502 = vadd.f32 %v2216, %v2447
    %v2503 = vadd.f32 %v2219, %v2447
    %v2504 = vadd.f32 %v2222, %v2447
    %v2505 = vadd.f32 %v2225, %v2447
    %v2506 = vadd.f32 %v2228, %v2447
    %v2507 = vadd.f32 %v2231, %v2447
    %v2508 = vadd.f32 %v2234, %v2447
    %v2509 = vadd.f32 %v2237, %v2447
    %v2510 = vadd.f32 %v2240, %v2447
    %v2511 = vadd.f32 %v2243, %v2447
    %v2512 = vadd.f32 %v2246, %v2447
    %v2513 = vadd.f32 %v2249, %v2447
    %v2514 = vadd.f32 %v2252, %v2447
    %v2515 = vadd.f32 %v2255, %v2447
    %v2516 = vadd.f32 %v2258, %v2447
    %v2517 = vadd.f32 %v2261, %v2447
    %v2518 = vadd.f32 %v2264, %v2447
    %v2519 = vadd.f32 %v2267, %v2447
    %v2520 = vadd.f32 %v2270, %v2447
    %v2521 = vadd.f32 %v2273, %v2447
    %v2522 = vadd.f32 %v2276, %v2447
    %v2523 = vadd.f32 %v2279, %v2447
    %v2524 = vadd.f32 %v2282, %v2447
    %v2525 = vadd.f32 %v2285, %v2447
    %v2526 = vadd.f32 %v2288, %v2447
    %v2527 = vadd.f32 %v2291, %v2447
    %v2528 = vadd.f32 %v2294, %v2447
    %v2529 = vadd.f32 %v2297, %v2447
    %v2530 = vadd.f32 %v2300, %v2447
    %v2531 = vadd.f32 %v2303, %v2447
    %v2532 = vadd.f32 %v2306, %v2447
    %v2533 = vadd.f32 %v2309, %v2447
    %v2534 = vadd.f32 %v2312, %v2447
    %v2535 = vadd.f32 %v2315, %v2447
    %v2536 = vadd.f32 %v2318, %v2447
    %v2537 = vadd.f32 %v2321, %v2447
    %v2538 = vadd.f32 %v2324, %v2447
    %v2539 = vadd.f32 %v2327, %v2447
    %v2540 = vadd.f32 %v2330, %v2447
    %v2541 = vadd.f32 %v2333, %v2447
    %v2542 = vadd.f32 %v2336, %v2447
    %v2543 = vadd.f32 %v2339, %v2447
    %v2544 = vadd.f32 %v2342, %v2447
    %v2545 = vadd.f32 %v2345, %v2447
    %v2546 = vadd.f32 %v2348, %v2447
    %v2547 = vadd.f32 %v2351, %v2447
    %v2548 = vadd.f32 %v2354, %v2447
    %v2549 = vadd.f32 %v2357, %v2447
    %v2550 = vadd.f32 %v2360, %v2447
    %v2551 = vadd.f32 %v2363, %v2447
    %v2552 = vadd.f32 %v2366, %v2447
    %v2553 = vadd.f32 %v2369, %v2447
    %v2554 = vadd.f32 %v2372, %v2447
    %v2555 = vadd.f32 %v2375, %v2447
    %v2556 = vadd.f32 %v2378, %v2447
    %v2557 = vadd.f32 %v2381, %v2447
    %v2558 = vadd.f32 %v2384, %v2447
    %v2559 = vadd.f32 %v2387, %v2447
    %v2560 = vadd.f32 %v2390, %v2447
    %v2561 = vadd.f32 %v2393, %v2447
    %v2562 = vadd.f32 %v2396, %v2447
    %v2563 = vadd.f32 %v2399, %v2447
    %v2564 = vadd.f32 %v2402, %v2447
    %v2565 = vadd.f32 %v2405, %v2447
    %v2566 = vadd.f32 %v2408, %v2447
    %v2567 = vadd.f32 %v2411, %v2447
    %v2568 = vadd.f32 %v2414, %v2447
    %v2569 = vadd.f32 %v2417, %v2447
    %v2570 = vadd.f32 %v2420, %v2447
    %v2571 = vadd.f32 %v2423, %v2447
    %v2572 = vadd.f32 %v2426, %v2447
    %v2573 = vadd.f32 %v2429, %v2447
    %v2574 = vadd.f32 %v2432, %v2447
    %v2575 = vadd.f32 %v2435, %v2447
    %v2576 = vadd.f32 %v2438, %v2447
    %v2577 = vsub.f32 0.0, %v2449
    %v2578 = vsub.f32 0.0, %v2450
    %v2579 = vsub.f32 0.0, %v2451
    %v2580 = vsub.f32 0.0, %v2452
    %v2581 = vsub.f32 0.0, %v2453
    %v2582 = vsub.f32 0.0, %v2454
    %v2583 = vsub.f32 0.0, %v2455
    %v2584 = vsub.f32 0.0, %v2456
    %v2585 = vsub.f32 0.0, %v2457
    %v2586 = vsub.f32 0.0, %v2458
    %v2587 = vsub.f32 0.0, %v2459
    %v2588 = vsub.f32 0.0, %v2460
    %v2589 = vsub.f32 0.0, %v2461
    %v2590 = vsub.f32 0.0, %v2462
    %v2591 = vsub.f32 0.0, %v2463
    %v2592 = vsub.f32 0.0, %v2464
    %v2593 = vsub.f32 0.0, %v2465
    %v2594 = vsub.f32 0.0, %v2466
    %v2595 = vsub.f32 0.0, %v2467
    %v2596 = vsub.f32 0.0, %v2468
    %v2597 = vsub.f32 0.0, %v2469
    %v2598 = vsub.f32 0.0, %v2470
    %v2599 = vsub.f32 0.0, %v2471
    %v2600 = vsub.f32 0.0, %v2472
    %v2601 = vsub.f32 0.0, %v2473
    %v2602 = vsub.f32 0.0, %v2474
    %v2603 = vsub.f32 0.0, %v2475
    %v2604 = vsub.f32 0.0, %v2476
    %v2605 = vsub.f32 0.0, %v2477
    %v2606 = vsub.f32 0.0, %v2478
    %v2607 = vsub.f32 0.0, %v2479
    %v2608 = vsub.f32 0.0, %v2480
    %v2609 = vsub.f32 0.0, %v2481
    %v2610 = vsub.f32 0.0, %v2482
    %v2611 = vsub.f32 0.0, %v2483
    %v2612 = vsub.f32 0.0, %v2484
    %v2613 = vsub.f32 0.0, %v2485
    %v2614 = vsub.f32 0.0, %v2486
    %v2615 = vsub.f32 0.0, %v2487
    %v2616 = vsub.f32 0.0, %v2488
    %v2617 = vsub.f32 0.0, %v2489
    %v2618 = vsub.f32 0.0, %v2490
    %v2619 = vsub.f32 0.0, %v2491
    %v2620 = vsub.f32 0.0, %v2492
    %v2621 = vsub.f32 0.0, %v2493
    %v2622 = vsub.f32 0.0, %v2494
    %v2623 = vsub.f32 0.0, %v2495
    %v2624 = vsub.f32 0.0, %v2496
    %v2625 = vsub.f32 0.0, %v2497
    %v2626 = vsub.f32 0.0, %v2498
    %v2627 = vsub.f32 0.0, %v2499
    %v2628 = vsub.f32 0.0, %v2500
    %v2629 = vsub.f32 0.0, %v2501
    %v2630 = vsub.f32 0.0, %v2502
    %v2631 = vsub.f32 0.0, %v2503
    %v2632 = vsub.f32 0.0, %v2504
    %v2633 = vsub.f32 0.0, %v2505
    %v2634 = vsub.f32 0.0, %v2506
    %v2635 = vsub.f32 0.0, %v2507
    %v2636 = vsub.f32 0.0, %v2508
    %v2637 = vsub.f32 0.0, %v2509
    %v2638 = vsub.f32 0.0, %v2510
    %v2639 = vsub.f32 0.0, %v2511
    %v2640 = vsub.f32 0.0, %v2512
    %v2641 = vsub.f32 0.0, %v2513
    %v2642 = vsub.f32 0.0, %v2514
    %v2643 = vsub.f32 0.0, %v2515
    %v2644 = vsub.f32 0.0, %v2516
    %v2645 = vsub.f32 0.0, %v2517
    %v2646 = vsub.f32 0.0, %v2518
    %v2647 = vsub.f32 0.0, %v2519
    %v2648 = vsub.f32 0.0, %v2520
    %v2649 = vsub.f32 0.0, %v2521
    %v2650 = vsub.f32 0.0, %v2522
    %v2651 = vsub.f32 0.0, %v2523
    %v2652 = vsub.f32 0.0, %v2524
    %v2653 = vsub.f32 0.0, %v2525
    %v2654 = vsub.f32 0.0, %v2526
    %v2655 = vsub.f32 0.0, %v2527
    %v2656 = vsub.f32 0.0, %v2528
    %v2657 = vsub.f32 0.0, %v2529
    %v2658 = vsub.f32 0.0, %v2530
    %v2659 = vsub.f32 0.0, %v2531
    %v2660 = vsub.f32 0.0, %v2532
    %v2661 = vsub.f32 0.0, %v2533
    %v2662 = vsub.f32 0.0, %v2534
    %v2663 = vsub.f32 0.0, %v2535
    %v2664 = vsub.f32 0.0, %v2536
    %v2665 = vsub.f32 0.0, %v2537
    %v2666 = vsub.f32 0.0, %v2538
    %v2667 = vsub.f32 0.0, %v2539
    %v2668 = vsub.f32 0.0, %v2540
    %v2669 = vsub.f32 0.0, %v2541
    %v2670 = vsub.f32 0.0, %v2542
    %v2671 = vsub.f32 0.0, %v2543
    %v2672 = vsub.f32 0.0, %v2544
    %v2673 = vsub.f32 0.0, %v2545
    %v2674 = vsub.f32 0.0, %v2546
    %v2675 = vsub.f32 0.0, %v2547
    %v2676 = vsub.f32 0.0, %v2548
    %v2677 = vsub.f32 0.0, %v2549
    %v2678 = vsub.f32 0.0, %v2550
    %v2679 = vsub.f32 0.0, %v2551
    %v2680 = vsub.f32 0.0, %v2552
    %v2681 = vsub.f32 0.0, %v2553
    %v2682 = vsub.f32 0.0, %v2554
    %v2683 = vsub.f32 0.0, %v2555
    %v2684 = vsub.f32 0.0, %v2556
    %v2685 = vsub.f32 0.0, %v2557
    %v2686 = vsub.f32 0.0, %v2558
    %v2687 = vsub.f32 0.0, %v2559
    %v2688 = vsub.f32 0.0, %v2560
    %v2689 = vsub.f32 0.0, %v2561
    %v2690 = vsub.f32 0.0, %v2562
    %v2691 = vsub.f32 0.0, %v2563
    %v2692 = vsub.f32 0.0, %v2564
    %v2693 = vsub.f32 0.0, %v2565
    %v2694 = vsub.f32 0.0, %v2566
    %v2695 = vsub.f32 0.0, %v2567
    %v2696 = vsub.f32 0.0, %v2568
    %v2697 = vsub.f32 0.0, %v2569
    %v2698 = vsub.f32 0.0, %v2570
    %v2699 = vsub.f32 0.0, %v2571
    %v2700 = vsub.f32 0.0, %v2572
    %v2701 = vsub.f32 0.0, %v2573
    %v2702 = vsub.f32 0.0, %v2574
    %v2703 = vsub.f32 0.0, %v2575
    %v2704 = vsub.f32 0.0, %v2576
    %v2705 = vmul.f32 %v2577, 1.442695
    %v2706 = vpow.pop %v2705
    %v2707 = vmul.f32 %v2578, 1.442695
    %v2708 = vpow.pop %v2707
    %v2709 = vmul.f32 %v2579, 1.442695
    %v2710 = vpow.pop %v2709
    %v2711 = vmul.f32 %v2580, 1.442695
    %v2712 = vpow.pop %v2711
    %v2713 = vmul.f32 %v2581, 1.442695
    %v2714 = vpow.pop %v2713
    %v2715 = vmul.f32 %v2582, 1.442695
    %v2716 = vpow.pop %v2715
    %v2717 = vmul.f32 %v2583, 1.442695
    %v2718 = vpow.pop %v2717
    %v2719 = vmul.f32 %v2584, 1.442695
    %v2720 = vpow.pop %v2719
    %v2721 = vmul.f32 %v2585, 1.442695
    %v2722 = vpow.pop %v2721
    %v2723 = vmul.f32 %v2586, 1.442695
    %v2724 = vpow.pop %v2723
    %v2725 = vmul.f32 %v2587, 1.442695
    %v2726 = vpow.pop %v2725
    %v2727 = vmul.f32 %v2588, 1.442695
    %v2728 = vpow.pop %v2727
    %v2729 = vmul.f32 %v2589, 1.442695
    %v2730 = vpow.pop %v2729
    %v2731 = vmul.f32 %v2590, 1.442695
    %v2732 = vpow.pop %v2731
    %v2733 = vmul.f32 %v2591, 1.442695
    %v2734 = vpow.pop %v2733
    %v2735 = vmul.f32 %v2592, 1.442695
    %v2736 = vpow.pop %v2735
    %v2737 = vmul.f32 %v2593, 1.442695
    %v2738 = vpow.pop %v2737
    %v2739 = vmul.f32 %v2594, 1.442695
    %v2740 = vpow.pop %v2739
    %v2741 = vmul.f32 %v2595, 1.442695
    %v2742 = vpow.pop %v2741
    %v2743 = vmul.f32 %v2596, 1.442695
    %v2744 = vpow.pop %v2743
    %v2745 = vmul.f32 %v2597, 1.442695
    %v2746 = vpow.pop %v2745
    %v2747 = vmul.f32 %v2598, 1.442695
    %v2748 = vpow.pop %v2747
    %v2749 = vmul.f32 %v2599, 1.442695
    %v2750 = vpow.pop %v2749
    %v2751 = vmul.f32 %v2600, 1.442695
    %v2752 = vpow.pop %v2751
    %v2753 = vmul.f32 %v2601, 1.442695
    %v2754 = vpow.pop %v2753
    %v2755 = vmul.f32 %v2602, 1.442695
    %v2756 = vpow.pop %v2755
    %v2757 = vmul.f32 %v2603, 1.442695
    %v2758 = vpow.pop %v2757
    %v2759 = vmul.f32 %v2604, 1.442695
    %v2760 = vpow.pop %v2759
    %v2761 = vmul.f32 %v2605, 1.442695
    %v2762 = vpow.pop %v2761
    %v2763 = vmul.f32 %v2606, 1.442695
    %v2764 = vpow.pop %v2763
    %v2765 = vmul.f32 %v2607, 1.442695
    %v2766 = vpow.pop %v2765
    %v2767 = vmul.f32 %v2608, 1.442695
    %v2768 = vpow.pop %v2767
    %v2769 = vmul.f32 %v2609, 1.442695
    %v2770 = vpow.pop %v2769
    %v2771 = vmul.f32 %v2610, 1.442695
    %v2772 = vpow.pop %v2771
    %v2773 = vmul.f32 %v2611, 1.442695
    %v2774 = vpow.pop %v2773
    %v2775 = vmul.f32 %v2612, 1.442695
    %v2776 = vpow.pop %v2775
    %v2777 = vmul.f32 %v2613, 1.442695
    %v2778 = vpow.pop %v2777
    %v2779 = vmul.f32 %v2614, 1.442695
    %v2780 = vpow.pop %v2779
    %v2781 = vmul.f32 %v2615, 1.442695
    %v2782 = vpow.pop %v2781
    %v2783 = vmul.f32 %v2616, 1.442695
    %v2784 = vpow.pop %v2783
    %v2785 = vmul.f32 %v2617, 1.442695
    %v2786 = vpow.pop %v2785
    %v2787 = vmul.f32 %v2618, 1.442695
    %v2788 = vpow.pop %v2787
    %v2789 = vmul.f32 %v2619, 1.442695
    %v2790 = vpow.pop %v2789
    %v2791 = vmul.f32 %v2620, 1.442695
    %v2792 = vpow.pop %v2791
    %v2793 = vmul.f32 %v2621, 1.442695
    %v2794 = vpow.pop %v2793
    %v2795 = vmul.f32 %v2622, 1.442695
    %v2796 = vpow.pop %v2795
    %v2797 = vmul.f32 %v2623, 1.442695
    %v2798 = vpow.pop %v2797
    %v2799 = vmul.f32 %v2624, 1.442695
    %v2800 = vpow.pop %v2799
    %v2801 = vmul.f32 %v2625, 1.442695
    %v2802 = vpow.pop %v2801
    %v2803 = vmul.f32 %v2626, 1.442695
    %v2804 = vpow.pop %v2803
    %v2805 = vmul.f32 %v2627, 1.442695
    %v2806 = vpow.pop %v2805
    %v2807 = vmul.f32 %v2628, 1.442695
    %v2808 = vpow.pop %v2807
    %v2809 = vmul.f32 %v2629, 1.442695
    %v2810 = vpow.pop %v2809
    %v2811 = vmul.f32 %v2630, 1.442695
    %v2812 = vpow.pop %v2811
    %v2813 = vmul.f32 %v2631, 1.442695
    %v2814 = vpow.pop %v2813
    %v2815 = vmul.f32 %v2632, 1.442695
    %v2816 = vpow.pop %v2815
    %v2817 = vmul.f32 %v2633, 1.442695
    %v2818 = vpow.pop %v2817
    %v2819 = vmul.f32 %v2634, 1.442695
    %v2820 = vpow.pop %v2819
    %v2821 = vmul.f32 %v2635, 1.442695
    %v2822 = vpow.pop %v2821
    %v2823 = vmul.f32 %v2636, 1.442695
    %v2824 = vpow.pop %v2823
    %v2825 = vmul.f32 %v2637, 1.442695
    %v2826 = vpow.pop %v2825
    %v2827 = vmul.f32 %v2638, 1.442695
    %v2828 = vpow.pop %v2827
    %v2829 = vmul.f32 %v2639, 1.442695
    %v2830 = vpow.pop %v2829
    %v2831 = vmul.f32 %v2640, 1.442695
    %v2832 = vpow.pop %v2831
    %v2833 = vmul.f32 %v2641, 1.442695
    %v2834 = vpow.pop %v2833
    %v2835 = vmul.f32 %v2642, 1.442695
    %v2836 = vpow.pop %v2835
    %v2837 = vmul.f32 %v2643, 1.442695
    %v2838 = vpow.pop %v2837
    %v2839 = vmul.f32 %v2644, 1.442695
    %v2840 = vpow.pop %v2839
    %v2841 = vmul.f32 %v2645, 1.442695
    %v2842 = vpow.pop %v2841
    %v2843 = vmul.f32 %v2646, 1.442695
    %v2844 = vpow.pop %v2843
    %v2845 = vmul.f32 %v2647, 1.442695
    %v2846 = vpow.pop %v2845
    %v2847 = vmul.f32 %v2648, 1.442695
    %v2848 = vpow.pop %v2847
    %v2849 = vmul.f32 %v2649, 1.442695
    %v2850 = vpow.pop %v2849
    %v2851 = vmul.f32 %v2650, 1.442695
    %v2852 = vpow.pop %v2851
    %v2853 = vmul.f32 %v2651, 1.442695
    %v2854 = vpow.pop %v2853
    %v2855 = vmul.f32 %v2652, 1.442695
    %v2856 = vpow.pop %v2855
    %v2857 = vmul.f32 %v2653, 1.442695
    %v2858 = vpow.pop %v2857
    %v2859 = vmul.f32 %v2654, 1.442695
    %v2860 = vpow.pop %v2859
    %v2861 = vmul.f32 %v2655, 1.442695
    %v2862 = vpow.pop %v2861
    %v2863 = vmul.f32 %v2656, 1.442695
    %v2864 = vpow.pop %v2863
    %v2865 = vmul.f32 %v2657, 1.442695
    %v2866 = vpow.pop %v2865
    %v2867 = vmul.f32 %v2658, 1.442695
    %v2868 = vpow.pop %v2867
    %v2869 = vmul.f32 %v2659, 1.442695
    %v2870 = vpow.pop %v2869
    %v2871 = vmul.f32 %v2660, 1.442695
    %v2872 = vpow.pop %v2871
    %v2873 = vmul.f32 %v2661, 1.442695
    %v2874 = vpow.pop %v2873
    %v2875 = vmul.f32 %v2662, 1.442695
    %v2876 = vpow.pop %v2875
    %v2877 = vmul.f32 %v2663, 1.442695
    %v2878 = vpow.pop %v2877
    %v2879 = vmul.f32 %v2664, 1.442695
    %v2880 = vpow.pop %v2879
    %v2881 = vmul.f32 %v2665, 1.442695
    %v2882 = vpow.pop %v2881
    %v2883 = vmul.f32 %v2666, 1.442695
    %v2884 = vpow.pop %v2883
    %v2885 = vmul.f32 %v2667, 1.442695
    %v2886 = vpow.pop %v2885
    %v2887 = vmul.f32 %v2668, 1.442695
    %v2888 = vpow.pop %v2887
    %v2889 = vmul.f32 %v2669, 1.442695
    %v2890 = vpow.pop %v2889
    %v2891 = vmul.f32 %v2670, 1.442695
    %v2892 = vpow.pop %v2891
    %v2893 = vmul.f32 %v2671, 1.442695
    %v2894 = vpow.pop %v2893
    %v2895 = vmul.f32 %v2672, 1.442695
    %v2896 = vpow.pop %v2895
    %v2897 = vmul.f32 %v2673, 1.442695
    %v2898 = vpow.pop %v2897
    %v2899 = vmul.f32 %v2674, 1.442695
    %v2900 = vpow.pop %v2899
    %v2901 = vmul.f32 %v2675, 1.442695
    %v2902 = vpow.pop %v2901
    %v2903 = vmul.f32 %v2676, 1.442695
    %v2904 = vpow.pop %v2903
    %v2905 = vmul.f32 %v2677, 1.442695
    %v2906 = vpow.pop %v2905
    %v2907 = vmul.f32 %v2678, 1.442695
    %v2908 = vpow.pop %v2907
    %v2909 = vmul.f32 %v2679, 1.442695
    %v2910 = vpow.pop %v2909
    %v2911 = vmul.f32 %v2680, 1.442695
    %v2912 = vpow.pop %v2911
    %v2913 = vmul.f32 %v2681, 1.442695
    %v2914 = vpow.pop %v2913
    %v2915 = vmul.f32 %v2682, 1.442695
    %v2916 = vpow.pop %v2915
    %v2917 = vmul.f32 %v2683, 1.442695
    %v2918 = vpow.pop %v2917
    %v2919 = vmul.f32 %v2684, 1.442695
    %v2920 = vpow.pop %v2919
    %v2921 = vmul.f32 %v2685, 1.442695
    %v2922 = vpow.pop %v2921
    %v2923 = vmul.f32 %v2686, 1.442695
    %v2924 = vpow.pop %v2923
    %v2925 = vmul.f32 %v2687, 1.442695
    %v2926 = vpow.pop %v2925
    %v2927 = vmul.f32 %v2688, 1.442695
    %v2928 = vpow.pop %v2927
    %v2929 = vmul.f32 %v2689, 1.442695
    %v2930 = vpow.pop %v2929
    %v2931 = vmul.f32 %v2690, 1.442695
    %v2932 = vpow.pop %v2931
    %v2933 = vmul.f32 %v2691, 1.442695
    %v2934 = vpow.pop %v2933
    %v2935 = vmul.f32 %v2692, 1.442695
    %v2936 = vpow.pop %v2935
    %v2937 = vmul.f32 %v2693, 1.442695
    %v2938 = vpow.pop %v2937
    %v2939 = vmul.f32 %v2694, 1.442695
    %v2940 = vpow.pop %v2939
    %v2941 = vmul.f32 %v2695, 1.442695
    %v2942 = vpow.pop %v2941
    %v2943 = vmul.f32 %v2696, 1.442695
    %v2944 = vpow.pop %v2943
    %v2945 = vmul.f32 %v2697, 1.442695
    %v2946 = vpow.pop %v2945
    %v2947 = vmul.f32 %v2698, 1.442695
    %v2948 = vpow.pop %v2947
    %v2949 = vmul.f32 %v2699, 1.442695
    %v2950 = vpow.pop %v2949
    %v2951 = vmul.f32 %v2700, 1.442695
    %v2952 = vpow.pop %v2951
    %v2953 = vmul.f32 %v2701, 1.442695
    %v2954 = vpow.pop %v2953
    %v2955 = vmul.f32 %v2702, 1.442695
    %v2956 = vpow.pop %v2955
    %v2957 = vmul.f32 %v2703, 1.442695
    %v2958 = vpow.pop %v2957
    %v2959 = vmul.f32 %v2704, 1.442695
    %v2960 = vpow.pop %v2959
    %v2961 = vadd.f32 %v2706, 1.0
    %v2962 = vadd.f32 %v2708, 1.0
    %v2963 = vadd.f32 %v2710, 1.0
    %v2964 = vadd.f32 %v2712, 1.0
    %v2965 = vadd.f32 %v2714, 1.0
    %v2966 = vadd.f32 %v2716, 1.0
    %v2967 = vadd.f32 %v2718, 1.0
    %v2968 = vadd.f32 %v2720, 1.0
    %v2969 = vadd.f32 %v2722, 1.0
    %v2970 = vadd.f32 %v2724, 1.0
    %v2971 = vadd.f32 %v2726, 1.0
    %v2972 = vadd.f32 %v2728, 1.0
    %v2973 = vadd.f32 %v2730, 1.0
    %v2974 = vadd.f32 %v2732, 1.0
    %v2975 = vadd.f32 %v2734, 1.0
    %v2976 = vadd.f32 %v2736, 1.0
    %v2977 = vadd.f32 %v2738, 1.0
    %v2978 = vadd.f32 %v2740, 1.0
    %v2979 = vadd.f32 %v2742, 1.0
    %v2980 = vadd.f32 %v2744, 1.0
    %v2981 = vadd.f32 %v2746, 1.0
    %v2982 = vadd.f32 %v2748, 1.0
    %v2983 = vadd.f32 %v2750, 1.0
    %v2984 = vadd.f32 %v2752, 1.0
    %v2985 = vadd.f32 %v2754, 1.0
    %v2986 = vadd.f32 %v2756, 1.0
    %v2987 = vadd.f32 %v2758, 1.0
    %v2988 = vadd.f32 %v2760, 1.0
    %v2989 = vadd.f32 %v2762, 1.0
    %v2990 = vadd.f32 %v2764, 1.0
    %v2991 = vadd.f32 %v2766, 1.0
    %v2992 = vadd.f32 %v2768, 1.0
    %v2993 = vadd.f32 %v2770, 1.0
    %v2994 = vadd.f32 %v2772, 1.0
    %v2995 = vadd.f32 %v2774, 1.0
    %v2996 = vadd.f32 %v2776, 1.0
    %v2997 = vadd.f32 %v2778, 1.0
    %v2998 = vadd.f32 %v2780, 1.0
    %v2999 = vadd.f32 %v2782, 1.0
    %v3000 = vadd.f32 %v2784, 1.0
    %v3001 = vadd.f32 %v2786, 1.0
    %v3002 = vadd.f32 %v2788, 1.0
    %v3003 = vadd.f32 %v2790, 1.0
    %v3004 = vadd.f32 %v2792, 1.0
    %v3005 = vadd.f32 %v2794, 1.0
    %v3006 = vadd.f32 %v2796, 1.0
    %v3007 = vadd.f32 %v2798, 1.0
    %v3008 = vadd.f32 %v2800, 1.0
    %v3009 = vadd.f32 %v2802, 1.0
    %v3010 = vadd.f32 %v2804, 1.0
    %v3011 = vadd.f32 %v2806, 1.0
    %v3012 = vadd.f32 %v2808, 1.0
    %v3013 = vadd.f32 %v2810, 1.0
    %v3014 = vadd.f32 %v2812, 1.0
    %v3015 = vadd.f32 %v2814, 1.0
    %v3016 = vadd.f32 %v2816, 1.0
    %v3017 = vadd.f32 %v2818, 1.0
    %v3018 = vadd.f32 %v2820, 1.0
    %v3019 = vadd.f32 %v2822, 1.0
    %v3020 = vadd.f32 %v2824, 1.0
    %v3021 = vadd.f32 %v2826, 1.0
    %v3022 = vadd.f32 %v2828, 1.0
    %v3023 = vadd.f32 %v2830, 1.0
    %v3024 = vadd.f32 %v2832, 1.0
    %v3025 = vadd.f32 %v2834, 1.0
    %v3026 = vadd.f32 %v2836, 1.0
    %v3027 = vadd.f32 %v2838, 1.0
    %v3028 = vadd.f32 %v2840, 1.0
    %v3029 = vadd.f32 %v2842, 1.0
    %v3030 = vadd.f32 %v2844, 1.0
    %v3031 = vadd.f32 %v2846, 1.0
    %v3032 = vadd.f32 %v2848, 1.0
    %v3033 = vadd.f32 %v2850, 1.0
    %v3034 = vadd.f32 %v2852, 1.0
    %v3035 = vadd.f32 %v2854, 1.0
    %v3036 = vadd.f32 %v2856, 1.0
    %v3037 = vadd.f32 %v2858, 1.0
    %v3038 = vadd.f32 %v2860, 1.0
    %v3039 = vadd.f32 %v2862, 1.0
    %v3040 = vadd.f32 %v2864, 1.0
    %v3041 = vadd.f32 %v2866, 1.0
    %v3042 = vadd.f32 %v2868, 1.0
    %v3043 = vadd.f32 %v2870, 1.0
    %v3044 = vadd.f32 %v2872, 1.0
    %v3045 = vadd.f32 %v2874, 1.0
    %v3046 = vadd.f32 %v2876, 1.0
    %v3047 = vadd.f32 %v2878, 1.0
    %v3048 = vadd.f32 %v2880, 1.0
    %v3049 = vadd.f32 %v2882, 1.0
    %v3050 = vadd.f32 %v2884, 1.0
    %v3051 = vadd.f32 %v2886, 1.0
    %v3052 = vadd.f32 %v2888, 1.0
    %v3053 = vadd.f32 %v2890, 1.0
    %v3054 = vadd.f32 %v2892, 1.0
    %v3055 = vadd.f32 %v2894, 1.0
    %v3056 = vadd.f32 %v2896, 1.0
    %v3057 = vadd.f32 %v2898, 1.0
    %v3058 = vadd.f32 %v2900, 1.0
    %v3059 = vadd.f32 %v2902, 1.0
    %v3060 = vadd.f32 %v2904, 1.0
    %v3061 = vadd.f32 %v2906, 1.0
    %v3062 = vadd.f32 %v2908, 1.0
    %v3063 = vadd.f32 %v2910, 1.0
    %v3064 = vadd.f32 %v2912, 1.0
    %v3065 = vadd.f32 %v2914, 1.0
    %v3066 = vadd.f32 %v2916, 1.0
    %v3067 = vadd.f32 %v2918, 1.0
    %v3068 = vadd.f32 %v2920, 1.0
    %v3069 = vadd.f32 %v2922, 1.0
    %v3070 = vadd.f32 %v2924, 1.0
    %v3071 = vadd.f32 %v2926, 1.0
    %v3072 = vadd.f32 %v2928, 1.0
    %v3073 = vadd.f32 %v2930, 1.0
    %v3074 = vadd.f32 %v2932, 1.0
    %v3075 = vadd.f32 %v2934, 1.0
    %v3076 = vadd.f32 %v2936, 1.0
    %v3077 = vadd.f32 %v2938, 1.0
    %v3078 = vadd.f32 %v2940, 1.0
    %v3079 = vadd.f32 %v2942, 1.0
    %v3080 = vadd.f32 %v2944, 1.0
    %v3081 = vadd.f32 %v2946, 1.0
    %v3082 = vadd.f32 %v2948, 1.0
    %v3083 = vadd.f32 %v2950, 1.0
    %v3084 = vadd.f32 %v2952, 1.0
    %v3085 = vadd.f32 %v2954, 1.0
    %v3086 = vadd.f32 %v2956, 1.0
    %v3087 = vadd.f32 %v2958, 1.0
    %v3088 = vadd.f32 %v2960, 1.0
    %v3089 = vrcp.pop %v2961
    %v3090 = vmul.f32 1.0, %v3089
    %v3091 = vrcp.pop %v2962
    %v3092 = vmul.f32 1.0, %v3091
    %v3093 = vrcp.pop %v2963
    %v3094 = vmul.f32 1.0, %v3093
    %v3095 = vrcp.pop %v2964
    %v3096 = vmul.f32 1.0, %v3095
    %v3097 = vrcp.pop %v2965
    %v3098 = vmul.f32 1.0, %v3097
    %v3099 = vrcp.pop %v2966
    %v3100 = vmul.f32 1.0, %v3099
    %v3101 = vrcp.pop %v2967
    %v3102 = vmul.f32 1.0, %v3101
    %v3103 = vrcp.pop %v2968
    %v3104 = vmul.f32 1.0, %v3103
    %v3105 = vrcp.pop %v2969
    %v3106 = vmul.f32 1.0, %v3105
    %v3107 = vrcp.pop %v2970
    %v3108 = vmul.f32 1.0, %v3107
    %v3109 = vrcp.pop %v2971
    %v3110 = vmul.f32 1.0, %v3109
    %v3111 = vrcp.pop %v2972
    %v3112 = vmul.f32 1.0, %v3111
    %v3113 = vrcp.pop %v2973
    %v3114 = vmul.f32 1.0, %v3113
    %v3115 = vrcp.pop %v2974
    %v3116 = vmul.f32 1.0, %v3115
    %v3117 = vrcp.pop %v2975
    %v3118 = vmul.f32 1.0, %v3117
    %v3119 = vrcp.pop %v2976
    %v3120 = vmul.f32 1.0, %v3119
    %v3121 = vrcp.pop %v2977
    %v3122 = vmul.f32 1.0, %v3121
    %v3123 = vrcp.pop %v2978
    %v3124 = vmul.f32 1.0, %v3123
    %v3125 = vrcp.pop %v2979
    %v3126 = vmul.f32 1.0, %v3125
    %v3127 = vrcp.pop %v2980
    %v3128 = vmul.f32 1.0, %v3127
    %v3129 = vrcp.pop %v2981
    %v3130 = vmul.f32 1.0, %v3129
    %v3131 = vrcp.pop %v2982
    %v3132 = vmul.f32 1.0, %v3131
    %v3133 = vrcp.pop %v2983
    %v3134 = vmul.f32 1.0, %v3133
    %v3135 = vrcp.pop %v2984
    %v3136 = vmul.f32 1.0, %v3135
    %v3137 = vrcp.pop %v2985
    %v3138 = vmul.f32 1.0, %v3137
    %v3139 = vrcp.pop %v2986
    %v3140 = vmul.f32 1.0, %v3139
    %v3141 = vrcp.pop %v2987
    %v3142 = vmul.f32 1.0, %v3141
    %v3143 = vrcp.pop %v2988
    %v3144 = vmul.f32 1.0, %v3143
    %v3145 = vrcp.pop %v2989
    %v3146 = vmul.f32 1.0, %v3145
    %v3147 = vrcp.pop %v2990
    %v3148 = vmul.f32 1.0, %v3147
    %v3149 = vrcp.pop %v2991
    %v3150 = vmul.f32 1.0, %v3149
    %v3151 = vrcp.pop %v2992
    %v3152 = vmul.f32 1.0, %v3151
    %v3153 = vrcp.pop %v2993
    %v3154 = vmul.f32 1.0, %v3153
    %v3155 = vrcp.pop %v2994
    %v3156 = vmul.f32 1.0, %v3155
    %v3157 = vrcp.pop %v2995
    %v3158 = vmul.f32 1.0, %v3157
    %v3159 = vrcp.pop %v2996
    %v3160 = vmul.f32 1.0, %v3159
    %v3161 = vrcp.pop %v2997
    %v3162 = vmul.f32 1.0, %v3161
    %v3163 = vrcp.pop %v2998
    %v3164 = vmul.f32 1.0, %v3163
    %v3165 = vrcp.pop %v2999
    %v3166 = vmul.f32 1.0, %v3165
    %v3167 = vrcp.pop %v3000
    %v3168 = vmul.f32 1.0, %v3167
    %v3169 = vrcp.pop %v3001
    %v3170 = vmul.f32 1.0, %v3169
    %v3171 = vrcp.pop %v3002
    %v3172 = vmul.f32 1.0, %v3171
    %v3173 = vrcp.pop %v3003
    %v3174 = vmul.f32 1.0, %v3173
    %v3175 = vrcp.pop %v3004
    %v3176 = vmul.f32 1.0, %v3175
    %v3177 = vrcp.pop %v3005
    %v3178 = vmul.f32 1.0, %v3177
    %v3179 = vrcp.pop %v3006
    %v3180 = vmul.f32 1.0, %v3179
    %v3181 = vrcp.pop %v3007
    %v3182 = vmul.f32 1.0, %v3181
    %v3183 = vrcp.pop %v3008
    %v3184 = vmul.f32 1.0, %v3183
    %v3185 = vrcp.pop %v3009
    %v3186 = vmul.f32 1.0, %v3185
    %v3187 = vrcp.pop %v3010
    %v3188 = vmul.f32 1.0, %v3187
    %v3189 = vrcp.pop %v3011
    %v3190 = vmul.f32 1.0, %v3189
    %v3191 = vrcp.pop %v3012
    %v3192 = vmul.f32 1.0, %v3191
    %v3193 = vrcp.pop %v3013
    %v3194 = vmul.f32 1.0, %v3193
    %v3195 = vrcp.pop %v3014
    %v3196 = vmul.f32 1.0, %v3195
    %v3197 = vrcp.pop %v3015
    %v3198 = vmul.f32 1.0, %v3197
    %v3199 = vrcp.pop %v3016
    %v3200 = vmul.f32 1.0, %v3199
    %v3201 = vrcp.pop %v3017
    %v3202 = vmul.f32 1.0, %v3201
    %v3203 = vrcp.pop %v3018
    %v3204 = vmul.f32 1.0, %v3203
    %v3205 = vrcp.pop %v3019
    %v3206 = vmul.f32 1.0, %v3205
    %v3207 = vrcp.pop %v3020
    %v3208 = vmul.f32 1.0, %v3207
    %v3209 = vrcp.pop %v3021
    %v3210 = vmul.f32 1.0, %v3209
    %v3211 = vrcp.pop %v3022
    %v3212 = vmul.f32 1.0, %v3211
    %v3213 = vrcp.pop %v3023
    %v3214 = vmul.f32 1.0, %v3213
    %v3215 = vrcp.pop %v3024
    %v3216 = vmul.f32 1.0, %v3215
    %v3217 = vrcp.pop %v3025
    %v3218 = vmul.f32 1.0, %v3217
    %v3219 = vrcp.pop %v3026
    %v3220 = vmul.f32 1.0, %v3219
    %v3221 = vrcp.pop %v3027
    %v3222 = vmul.f32 1.0, %v3221
    %v3223 = vrcp.pop %v3028
    %v3224 = vmul.f32 1.0, %v3223
    %v3225 = vrcp.pop %v3029
    %v3226 = vmul.f32 1.0, %v3225
    %v3227 = vrcp.pop %v3030
    %v3228 = vmul.f32 1.0, %v3227
    %v3229 = vrcp.pop %v3031
    %v3230 = vmul.f32 1.0, %v3229
    %v3231 = vrcp.pop %v3032
    %v3232 = vmul.f32 1.0, %v3231
    %v3233 = vrcp.pop %v3033
    %v3234 = vmul.f32 1.0, %v3233
    %v3235 = vrcp.pop %v3034
    %v3236 = vmul.f32 1.0, %v3235
    %v3237 = vrcp.pop %v3035
    %v3238 = vmul.f32 1.0, %v3237
    %v3239 = vrcp.pop %v3036
    %v3240 = vmul.f32 1.0, %v3239
    %v3241 = vrcp.pop %v3037
    %v3242 = vmul.f32 1.0, %v3241
    %v3243 = vrcp.pop %v3038
    %v3244 = vmul.f32 1.0, %v3243
    %v3245 = vrcp.pop %v3039
    %v3246 = vmul.f32 1.0, %v3245
    %v3247 = vrcp.pop %v3040
    %v3248 = vmul.f32 1.0, %v3247
    %v3249 = vrcp.pop %v3041
    %v3250 = vmul.f32 1.0, %v3249
    %v3251 = vrcp.pop %v3042
    %v3252 = vmul.f32 1.0, %v3251
    %v3253 = vrcp.pop %v3043
    %v3254 = vmul.f32 1.0, %v3253
    %v3255 = vrcp.pop %v3044
    %v3256 = vmul.f32 1.0, %v3255
    %v3257 = vrcp.pop %v3045
    %v3258 = vmul.f32 1.0, %v3257
    %v3259 = vrcp.pop %v3046
    %v3260 = vmul.f32 1.0, %v3259
    %v3261 = vrcp.pop %v3047
    %v3262 = vmul.f32 1.0, %v3261
    %v3263 = vrcp.pop %v3048
    %v3264 = vmul.f32 1.0, %v3263
    %v3265 = vrcp.pop %v3049
    %v3266 = vmul.f32 1.0, %v3265
    %v3267 = vrcp.pop %v3050
    %v3268 = vmul.f32 1.0, %v3267
    %v3269 = vrcp.pop %v3051
    %v3270 = vmul.f32 1.0, %v3269
    %v3271 = vrcp.pop %v3052
    %v3272 = vmul.f32 1.0, %v3271
    %v3273 = vrcp.pop %v3053
    %v3274 = vmul.f32 1.0, %v3273
    %v3275 = vrcp.pop %v3054
    %v3276 = vmul.f32 1.0, %v3275
    %v3277 = vrcp.pop %v3055
    %v3278 = vmul.f32 1.0, %v3277
    %v3279 = vrcp.pop %v3056
    %v3280 = vmul.f32 1.0, %v3279
    %v3281 = vrcp.pop %v3057
    %v3282 = vmul.f32 1.0, %v3281
    %v3283 = vrcp.pop %v3058
    %v3284 = vmul.f32 1.0, %v3283
    %v3285 = vrcp.pop %v3059
    %v3286 = vmul.f32 1.0, %v3285
    %v3287 = vrcp.pop %v3060
    %v3288 = vmul.f32 1.0, %v3287
    %v3289 = vrcp.pop %v3061
    %v3290 = vmul.f32 1.0, %v3289
    %v3291 = vrcp.pop %v3062
    %v3292 = vmul.f32 1.0, %v3291
    %v3293 = vrcp.pop %v3063
    %v3294 = vmul.f32 1.0, %v3293
    %v3295 = vrcp.pop %v3064
    %v3296 = vmul.f32 1.0, %v3295
    %v3297 = vrcp.pop %v3065
    %v3298 = vmul.f32 1.0, %v3297
    %v3299 = vrcp.pop %v3066
    %v3300 = vmul.f32 1.0, %v3299
    %v3301 = vrcp.pop %v3067
    %v3302 = vmul.f32 1.0, %v3301
    %v3303 = vrcp.pop %v3068
    %v3304 = vmul.f32 1.0, %v3303
    %v3305 = vrcp.pop %v3069
    %v3306 = vmul.f32 1.0, %v3305
    %v3307 = vrcp.pop %v3070
    %v3308 = vmul.f32 1.0, %v3307
    %v3309 = vrcp.pop %v3071
    %v3310 = vmul.f32 1.0, %v3309
    %v3311 = vrcp.pop %v3072
    %v3312 = vmul.f32 1.0, %v3311
    %v3313 = vrcp.pop %v3073
    %v3314 = vmul.f32 1.0, %v3313
    %v3315 = vrcp.pop %v3074
    %v3316 = vmul.f32 1.0, %v3315
    %v3317 = vrcp.pop %v3075
    %v3318 = vmul.f32 1.0, %v3317
    %v3319 = vrcp.pop %v3076
    %v3320 = vmul.f32 1.0, %v3319
    %v3321 = vrcp.pop %v3077
    %v3322 = vmul.f32 1.0, %v3321
    %v3323 = vrcp.pop %v3078
    %v3324 = vmul.f32 1.0, %v3323
    %v3325 = vrcp.pop %v3079
    %v3326 = vmul.f32 1.0, %v3325
    %v3327 = vrcp.pop %v3080
    %v3328 = vmul.f32 1.0, %v3327
    %v3329 = vrcp.pop %v3081
    %v3330 = vmul.f32 1.0, %v3329
    %v3331 = vrcp.pop %v3082
    %v3332 = vmul.f32 1.0, %v3331
    %v3333 = vrcp.pop %v3083
    %v3334 = vmul.f32 1.0, %v3333
    %v3335 = vrcp.pop %v3084
    %v3336 = vmul.f32 1.0, %v3335
    %v3337 = vrcp.pop %v3085
    %v3338 = vmul.f32 1.0, %v3337
    %v3339 = vrcp.pop %v3086
    %v3340 = vmul.f32 1.0, %v3339
    %v3341 = vrcp.pop %v3087
    %v3342 = vmul.f32 1.0, %v3341
    %v3343 = vrcp.pop %v3088
    %v3344 = vmul.f32 1.0, %v3343
    %v3473 = vlaneseq
    %v3474 = vand.u32 %v3473, 127
    %v3475 = vlaneseq
    %v3476 = vshrl.u32 %v3475, 7
    %v3477 = vsub.s32 %v3474, %v3476
    %v3478 = vrot.slane %v3090, %v3477
    %v3479 = vadd.s32 %v3474, 4294967288
    %v3480 = vlaneseq
    %v3481 = vshrl.u32 %v3480, 7
    %v3482 = vsub.s32 %v3479, %v3481
    %v3483 = vrot.slane %v3092, %v3482
    %vm3484 = vcmask 130112
    %v3485 = vsel %vm3484, %v3483, %v3478
    %v3486 = vadd.s32 %v3474, 4294967280
    %v3487 = vlaneseq
    %v3488 = vshrl.u32 %v3487, 7
    %v3489 = vsub.s32 %v3486, %v3488
    %v3490 = vrot.slane %v3094, %v3489
    %vm3491 = vcmask 195712
    %v3492 = vsel %vm3491, %v3490, %v3485
    %v3493 = vadd.s32 %v3474, 4294967272
    %v3494 = vlaneseq
    %v3495 = vshrl.u32 %v3494, 7
    %v3496 = vsub.s32 %v3493, %v3495
    %v3497 = vrot.slane %v3096, %v3496
    %vm3498 = vcmask 261312
    %v3499 = vsel %vm3498, %v3497, %v3492
    %v3500 = vadd.s32 %v3474, 4294967264
    %v3501 = vlaneseq
    %v3502 = vshrl.u32 %v3501, 7
    %v3503 = vsub.s32 %v3500, %v3502
    %v3504 = vrot.slane %v3098, %v3503
    %vm3505 = vcmask 326912
    %v3506 = vsel %vm3505, %v3504, %v3499
    %v3507 = vadd.s32 %v3474, 4294967256
    %v3508 = vlaneseq
    %v3509 = vshrl.u32 %v3508, 7
    %v3510 = vsub.s32 %v3507, %v3509
    %v3511 = vrot.slane %v3100, %v3510
    %vm3512 = vcmask 392512
    %v3513 = vsel %vm3512, %v3511, %v3506
    %v3514 = vadd.s32 %v3474, 4294967248
    %v3515 = vlaneseq
    %v3516 = vshrl.u32 %v3515, 7
    %v3517 = vsub.s32 %v3514, %v3516
    %v3518 = vrot.slane %v3102, %v3517
    %vm3519 = vcmask 458112
    %v3520 = vsel %vm3519, %v3518, %v3513
    %v3521 = vadd.s32 %v3474, 4294967240
    %v3522 = vlaneseq
    %v3523 = vshrl.u32 %v3522, 7
    %v3524 = vsub.s32 %v3521, %v3523
    %v3525 = vrot.slane %v3104, %v3524
    %vm3526 = vcmask 523712
    %v3527 = vsel %vm3526, %v3525, %v3520
    %v3528 = vadd.s32 %v3474, 4294967232
    %v3529 = vlaneseq
    %v3530 = vshrl.u32 %v3529, 7
    %v3531 = vsub.s32 %v3528, %v3530
    %v3532 = vrot.slane %v3106, %v3531
    %vm3533 = vcmask 589312
    %v3534 = vsel %vm3533, %v3532, %v3527
    %v3535 = vadd.s32 %v3474, 4294967224
    %v3536 = vlaneseq
    %v3537 = vshrl.u32 %v3536, 7
    %v3538 = vsub.s32 %v3535, %v3537
    %v3539 = vrot.slane %v3108, %v3538
    %vm3540 = vcmask 654912
    %v3541 = vsel %vm3540, %v3539, %v3534
    %v3542 = vadd.s32 %v3474, 4294967216
    %v3543 = vlaneseq
    %v3544 = vshrl.u32 %v3543, 7
    %v3545 = vsub.s32 %v3542, %v3544
    %v3546 = vrot.slane %v3110, %v3545
    %vm3547 = vcmask 720512
    %v3548 = vsel %vm3547, %v3546, %v3541
    %v3549 = vadd.s32 %v3474, 4294967208
    %v3550 = vlaneseq
    %v3551 = vshrl.u32 %v3550, 7
    %v3552 = vsub.s32 %v3549, %v3551
    %v3553 = vrot.slane %v3112, %v3552
    %vm3554 = vcmask 786112
    %v3555 = vsel %vm3554, %v3553, %v3548
    %v3556 = vadd.s32 %v3474, 4294967200
    %v3557 = vlaneseq
    %v3558 = vshrl.u32 %v3557, 7
    %v3559 = vsub.s32 %v3556, %v3558
    %v3560 = vrot.slane %v3114, %v3559
    %vm3561 = vcmask 851712
    %v3562 = vsel %vm3561, %v3560, %v3555
    %v3563 = vadd.s32 %v3474, 4294967192
    %v3564 = vlaneseq
    %v3565 = vshrl.u32 %v3564, 7
    %v3566 = vsub.s32 %v3563, %v3565
    %v3567 = vrot.slane %v3116, %v3566
    %vm3568 = vcmask 917312
    %v3569 = vsel %vm3568, %v3567, %v3562
    %v3570 = vadd.s32 %v3474, 4294967184
    %v3571 = vlaneseq
    %v3572 = vshrl.u32 %v3571, 7
    %v3573 = vsub.s32 %v3570, %v3572
    %v3574 = vrot.slane %v3118, %v3573
    %vm3575 = vcmask 982912
    %v3576 = vsel %vm3575, %v3574, %v3569
    %v3577 = vadd.s32 %v3474, 4294967176
    %v3578 = vlaneseq
    %v3579 = vshrl.u32 %v3578, 7
    %v3580 = vsub.s32 %v3577, %v3579
    %v3581 = vrot.slane %v3120, %v3580
    %vm3582 = vcmask 1048512
    %v3583 = vsel %vm3582, %v3581, %v3576
    %v3584 = vlaneseq
    %v3585 = vshrl.u32 %v3584, 7
    %v3586 = vsub.s32 %v3474, %v3585
    %v3587 = vrot.slane %v3122, %v3586
    %v3588 = vlaneseq
    %v3589 = vshrl.u32 %v3588, 7
    %v3590 = vsub.s32 %v3479, %v3589
    %v3591 = vrot.slane %v3124, %v3590
    %v3592 = vsel %vm3484, %v3591, %v3587
    %v3593 = vlaneseq
    %v3594 = vshrl.u32 %v3593, 7
    %v3595 = vsub.s32 %v3486, %v3594
    %v3596 = vrot.slane %v3126, %v3595
    %v3597 = vsel %vm3491, %v3596, %v3592
    %v3598 = vlaneseq
    %v3599 = vshrl.u32 %v3598, 7
    %v3600 = vsub.s32 %v3493, %v3599
    %v3601 = vrot.slane %v3128, %v3600
    %v3602 = vsel %vm3498, %v3601, %v3597
    %v3603 = vlaneseq
    %v3604 = vshrl.u32 %v3603, 7
    %v3605 = vsub.s32 %v3500, %v3604
    %v3606 = vrot.slane %v3130, %v3605
    %v3607 = vsel %vm3505, %v3606, %v3602
    %v3608 = vlaneseq
    %v3609 = vshrl.u32 %v3608, 7
    %v3610 = vsub.s32 %v3507, %v3609
    %v3611 = vrot.slane %v3132, %v3610
    %v3612 = vsel %vm3512, %v3611, %v3607
    %v3613 = vlaneseq
    %v3614 = vshrl.u32 %v3613, 7
    %v3615 = vsub.s32 %v3514, %v3614
    %v3616 = vrot.slane %v3134, %v3615
    %v3617 = vsel %vm3519, %v3616, %v3612
    %v3618 = vlaneseq
    %v3619 = vshrl.u32 %v3618, 7
    %v3620 = vsub.s32 %v3521, %v3619
    %v3621 = vrot.slane %v3136, %v3620
    %v3622 = vsel %vm3526, %v3621, %v3617
    %v3623 = vlaneseq
    %v3624 = vshrl.u32 %v3623, 7
    %v3625 = vsub.s32 %v3528, %v3624
    %v3626 = vrot.slane %v3138, %v3625
    %v3627 = vsel %vm3533, %v3626, %v3622
    %v3628 = vlaneseq
    %v3629 = vshrl.u32 %v3628, 7
    %v3630 = vsub.s32 %v3535, %v3629
    %v3631 = vrot.slane %v3140, %v3630
    %v3632 = vsel %vm3540, %v3631, %v3627
    %v3633 = vlaneseq
    %v3634 = vshrl.u32 %v3633, 7
    %v3635 = vsub.s32 %v3542, %v3634
    %v3636 = vrot.slane %v3142, %v3635
    %v3637 = vsel %vm3547, %v3636, %v3632
    %v3638 = vlaneseq
    %v3639 = vshrl.u32 %v3638, 7
    %v3640 = vsub.s32 %v3549, %v3639
    %v3641 = vrot.slane %v3144, %v3640
    %v3642 = vsel %vm3554, %v3641, %v3637
    %v3643 = vlaneseq
    %v3644 = vshrl.u32 %v3643, 7
    %v3645 = vsub.s32 %v3556, %v3644
    %v3646 = vrot.slane %v3146, %v3645
    %v3647 = vsel %vm3561, %v3646, %v3642
    %v3648 = vlaneseq
    %v3649 = vshrl.u32 %v3648, 7
    %v3650 = vsub.s32 %v3563, %v3649
    %v3651 = vrot.slane %v3148, %v3650
    %v3652 = vsel %vm3568, %v3651, %v3647
    %v3653 = vlaneseq
    %v3654 = vshrl.u32 %v3653, 7
    %v3655 = vsub.s32 %v3570, %v3654
    %v3656 = vrot.slane %v3150, %v3655
    %v3657 = vsel %vm3575, %v3656, %v3652
    %v3658 = vlaneseq
    %v3659 = vshrl.u32 %v3658, 7
    %v3660 = vsub.s32 %v3577, %v3659
    %v3661 = vrot.slane %v3152, %v3660
    %v3662 = vsel %vm3582, %v3661, %v3657
    %v3663 = vlaneseq
    %v3664 = vshrl.u32 %v3663, 7
    %v3665 = vsub.s32 %v3474, %v3664
    %v3666 = vrot.slane %v3154, %v3665
    %v3667 = vlaneseq
    %v3668 = vshrl.u32 %v3667, 7
    %v3669 = vsub.s32 %v3479, %v3668
    %v3670 = vrot.slane %v3156, %v3669
    %v3671 = vsel %vm3484, %v3670, %v3666
    %v3672 = vlaneseq
    %v3673 = vshrl.u32 %v3672, 7
    %v3674 = vsub.s32 %v3486, %v3673
    %v3675 = vrot.slane %v3158, %v3674
    %v3676 = vsel %vm3491, %v3675, %v3671
    %v3677 = vlaneseq
    %v3678 = vshrl.u32 %v3677, 7
    %v3679 = vsub.s32 %v3493, %v3678
    %v3680 = vrot.slane %v3160, %v3679
    %v3681 = vsel %vm3498, %v3680, %v3676
    %v3682 = vlaneseq
    %v3683 = vshrl.u32 %v3682, 7
    %v3684 = vsub.s32 %v3500, %v3683
    %v3685 = vrot.slane %v3162, %v3684
    %v3686 = vsel %vm3505, %v3685, %v3681
    %v3687 = vlaneseq
    %v3688 = vshrl.u32 %v3687, 7
    %v3689 = vsub.s32 %v3507, %v3688
    %v3690 = vrot.slane %v3164, %v3689
    %v3691 = vsel %vm3512, %v3690, %v3686
    %v3692 = vlaneseq
    %v3693 = vshrl.u32 %v3692, 7
    %v3694 = vsub.s32 %v3514, %v3693
    %v3695 = vrot.slane %v3166, %v3694
    %v3696 = vsel %vm3519, %v3695, %v3691
    %v3697 = vlaneseq
    %v3698 = vshrl.u32 %v3697, 7
    %v3699 = vsub.s32 %v3521, %v3698
    %v3700 = vrot.slane %v3168, %v3699
    %v3701 = vsel %vm3526, %v3700, %v3696
    %v3702 = vlaneseq
    %v3703 = vshrl.u32 %v3702, 7
    %v3704 = vsub.s32 %v3528, %v3703
    %v3705 = vrot.slane %v3170, %v3704
    %v3706 = vsel %vm3533, %v3705, %v3701
    %v3707 = vlaneseq
    %v3708 = vshrl.u32 %v3707, 7
    %v3709 = vsub.s32 %v3535, %v3708
    %v3710 = vrot.slane %v3172, %v3709
    %v3711 = vsel %vm3540, %v3710, %v3706
    %v3712 = vlaneseq
    %v3713 = vshrl.u32 %v3712, 7
    %v3714 = vsub.s32 %v3542, %v3713
    %v3715 = vrot.slane %v3174, %v3714
    %v3716 = vsel %vm3547, %v3715, %v3711
    %v3717 = vlaneseq
    %v3718 = vshrl.u32 %v3717, 7
    %v3719 = vsub.s32 %v3549, %v3718
    %v3720 = vrot.slane %v3176, %v3719
    %v3721 = vsel %vm3554, %v3720, %v3716
    %v3722 = vlaneseq
    %v3723 = vshrl.u32 %v3722, 7
    %v3724 = vsub.s32 %v3556, %v3723
    %v3725 = vrot.slane %v3178, %v3724
    %v3726 = vsel %vm3561, %v3725, %v3721
    %v3727 = vlaneseq
    %v3728 = vshrl.u32 %v3727, 7
    %v3729 = vsub.s32 %v3563, %v3728
    %v3730 = vrot.slane %v3180, %v3729
    %v3731 = vsel %vm3568, %v3730, %v3726
    %v3732 = vlaneseq
    %v3733 = vshrl.u32 %v3732, 7
    %v3734 = vsub.s32 %v3570, %v3733
    %v3735 = vrot.slane %v3182, %v3734
    %v3736 = vsel %vm3575, %v3735, %v3731
    %v3737 = vlaneseq
    %v3738 = vshrl.u32 %v3737, 7
    %v3739 = vsub.s32 %v3577, %v3738
    %v3740 = vrot.slane %v3184, %v3739
    %v3741 = vsel %vm3582, %v3740, %v3736
    %v3742 = vlaneseq
    %v3743 = vshrl.u32 %v3742, 7
    %v3744 = vsub.s32 %v3474, %v3743
    %v3745 = vrot.slane %v3186, %v3744
    %v3746 = vlaneseq
    %v3747 = vshrl.u32 %v3746, 7
    %v3748 = vsub.s32 %v3479, %v3747
    %v3749 = vrot.slane %v3188, %v3748
    %v3750 = vsel %vm3484, %v3749, %v3745
    %v3751 = vlaneseq
    %v3752 = vshrl.u32 %v3751, 7
    %v3753 = vsub.s32 %v3486, %v3752
    %v3754 = vrot.slane %v3190, %v3753
    %v3755 = vsel %vm3491, %v3754, %v3750
    %v3756 = vlaneseq
    %v3757 = vshrl.u32 %v3756, 7
    %v3758 = vsub.s32 %v3493, %v3757
    %v3759 = vrot.slane %v3192, %v3758
    %v3760 = vsel %vm3498, %v3759, %v3755
    %v3761 = vlaneseq
    %v3762 = vshrl.u32 %v3761, 7
    %v3763 = vsub.s32 %v3500, %v3762
    %v3764 = vrot.slane %v3194, %v3763
    %v3765 = vsel %vm3505, %v3764, %v3760
    %v3766 = vlaneseq
    %v3767 = vshrl.u32 %v3766, 7
    %v3768 = vsub.s32 %v3507, %v3767
    %v3769 = vrot.slane %v3196, %v3768
    %v3770 = vsel %vm3512, %v3769, %v3765
    %v3771 = vlaneseq
    %v3772 = vshrl.u32 %v3771, 7
    %v3773 = vsub.s32 %v3514, %v3772
    %v3774 = vrot.slane %v3198, %v3773
    %v3775 = vsel %vm3519, %v3774, %v3770
    %v3776 = vlaneseq
    %v3777 = vshrl.u32 %v3776, 7
    %v3778 = vsub.s32 %v3521, %v3777
    %v3779 = vrot.slane %v3200, %v3778
    %v3780 = vsel %vm3526, %v3779, %v3775
    %v3781 = vlaneseq
    %v3782 = vshrl.u32 %v3781, 7
    %v3783 = vsub.s32 %v3528, %v3782
    %v3784 = vrot.slane %v3202, %v3783
    %v3785 = vsel %vm3533, %v3784, %v3780
    %v3786 = vlaneseq
    %v3787 = vshrl.u32 %v3786, 7
    %v3788 = vsub.s32 %v3535, %v3787
    %v3789 = vrot.slane %v3204, %v3788
    %v3790 = vsel %vm3540, %v3789, %v3785
    %v3791 = vlaneseq
    %v3792 = vshrl.u32 %v3791, 7
    %v3793 = vsub.s32 %v3542, %v3792
    %v3794 = vrot.slane %v3206, %v3793
    %v3795 = vsel %vm3547, %v3794, %v3790
    %v3796 = vlaneseq
    %v3797 = vshrl.u32 %v3796, 7
    %v3798 = vsub.s32 %v3549, %v3797
    %v3799 = vrot.slane %v3208, %v3798
    %v3800 = vsel %vm3554, %v3799, %v3795
    %v3801 = vlaneseq
    %v3802 = vshrl.u32 %v3801, 7
    %v3803 = vsub.s32 %v3556, %v3802
    %v3804 = vrot.slane %v3210, %v3803
    %v3805 = vsel %vm3561, %v3804, %v3800
    %v3806 = vlaneseq
    %v3807 = vshrl.u32 %v3806, 7
    %v3808 = vsub.s32 %v3563, %v3807
    %v3809 = vrot.slane %v3212, %v3808
    %v3810 = vsel %vm3568, %v3809, %v3805
    %v3811 = vlaneseq
    %v3812 = vshrl.u32 %v3811, 7
    %v3813 = vsub.s32 %v3570, %v3812
    %v3814 = vrot.slane %v3214, %v3813
    %v3815 = vsel %vm3575, %v3814, %v3810
    %v3816 = vlaneseq
    %v3817 = vshrl.u32 %v3816, 7
    %v3818 = vsub.s32 %v3577, %v3817
    %v3819 = vrot.slane %v3216, %v3818
    %v3820 = vsel %vm3582, %v3819, %v3815
    %v3821 = vlaneseq
    %v3822 = vshrl.u32 %v3821, 7
    %v3823 = vsub.s32 %v3474, %v3822
    %v3824 = vrot.slane %v3218, %v3823
    %v3825 = vlaneseq
    %v3826 = vshrl.u32 %v3825, 7
    %v3827 = vsub.s32 %v3479, %v3826
    %v3828 = vrot.slane %v3220, %v3827
    %v3829 = vsel %vm3484, %v3828, %v3824
    %v3830 = vlaneseq
    %v3831 = vshrl.u32 %v3830, 7
    %v3832 = vsub.s32 %v3486, %v3831
    %v3833 = vrot.slane %v3222, %v3832
    %v3834 = vsel %vm3491, %v3833, %v3829
    %v3835 = vlaneseq
    %v3836 = vshrl.u32 %v3835, 7
    %v3837 = vsub.s32 %v3493, %v3836
    %v3838 = vrot.slane %v3224, %v3837
    %v3839 = vsel %vm3498, %v3838, %v3834
    %v3840 = vlaneseq
    %v3841 = vshrl.u32 %v3840, 7
    %v3842 = vsub.s32 %v3500, %v3841
    %v3843 = vrot.slane %v3226, %v3842
    %v3844 = vsel %vm3505, %v3843, %v3839
    %v3845 = vlaneseq
    %v3846 = vshrl.u32 %v3845, 7
    %v3847 = vsub.s32 %v3507, %v3846
    %v3848 = vrot.slane %v3228, %v3847
    %v3849 = vsel %vm3512, %v3848, %v3844
    %v3850 = vlaneseq
    %v3851 = vshrl.u32 %v3850, 7
    %v3852 = vsub.s32 %v3514, %v3851
    %v3853 = vrot.slane %v3230, %v3852
    %v3854 = vsel %vm3519, %v3853, %v3849
    %v3855 = vlaneseq
    %v3856 = vshrl.u32 %v3855, 7
    %v3857 = vsub.s32 %v3521, %v3856
    %v3858 = vrot.slane %v3232, %v3857
    %v3859 = vsel %vm3526, %v3858, %v3854
    %v3860 = vlaneseq
    %v3861 = vshrl.u32 %v3860, 7
    %v3862 = vsub.s32 %v3528, %v3861
    %v3863 = vrot.slane %v3234, %v3862
    %v3864 = vsel %vm3533, %v3863, %v3859
    %v3865 = vlaneseq
    %v3866 = vshrl.u32 %v3865, 7
    %v3867 = vsub.s32 %v3535, %v3866
    %v3868 = vrot.slane %v3236, %v3867
    %v3869 = vsel %vm3540, %v3868, %v3864
    %v3870 = vlaneseq
    %v3871 = vshrl.u32 %v3870, 7
    %v3872 = vsub.s32 %v3542, %v3871
    %v3873 = vrot.slane %v3238, %v3872
    %v3874 = vsel %vm3547, %v3873, %v3869
    %v3875 = vlaneseq
    %v3876 = vshrl.u32 %v3875, 7
    %v3877 = vsub.s32 %v3549, %v3876
    %v3878 = vrot.slane %v3240, %v3877
    %v3879 = vsel %vm3554, %v3878, %v3874
    %v3880 = vlaneseq
    %v3881 = vshrl.u32 %v3880, 7
    %v3882 = vsub.s32 %v3556, %v3881
    %v3883 = vrot.slane %v3242, %v3882
    %v3884 = vsel %vm3561, %v3883, %v3879
    %v3885 = vlaneseq
    %v3886 = vshrl.u32 %v3885, 7
    %v3887 = vsub.s32 %v3563, %v3886
    %v3888 = vrot.slane %v3244, %v3887
    %v3889 = vsel %vm3568, %v3888, %v3884
    %v3890 = vlaneseq
    %v3891 = vshrl.u32 %v3890, 7
    %v3892 = vsub.s32 %v3570, %v3891
    %v3893 = vrot.slane %v3246, %v3892
    %v3894 = vsel %vm3575, %v3893, %v3889
    %v3895 = vlaneseq
    %v3896 = vshrl.u32 %v3895, 7
    %v3897 = vsub.s32 %v3577, %v3896
    %v3898 = vrot.slane %v3248, %v3897
    %v3899 = vsel %vm3582, %v3898, %v3894
    %v3900 = vlaneseq
    %v3901 = vshrl.u32 %v3900, 7
    %v3902 = vsub.s32 %v3474, %v3901
    %v3903 = vrot.slane %v3250, %v3902
    %v3904 = vlaneseq
    %v3905 = vshrl.u32 %v3904, 7
    %v3906 = vsub.s32 %v3479, %v3905
    %v3907 = vrot.slane %v3252, %v3906
    %v3908 = vsel %vm3484, %v3907, %v3903
    %v3909 = vlaneseq
    %v3910 = vshrl.u32 %v3909, 7
    %v3911 = vsub.s32 %v3486, %v3910
    %v3912 = vrot.slane %v3254, %v3911
    %v3913 = vsel %vm3491, %v3912, %v3908
    %v3914 = vlaneseq
    %v3915 = vshrl.u32 %v3914, 7
    %v3916 = vsub.s32 %v3493, %v3915
    %v3917 = vrot.slane %v3256, %v3916
    %v3918 = vsel %vm3498, %v3917, %v3913
    %v3919 = vlaneseq
    %v3920 = vshrl.u32 %v3919, 7
    %v3921 = vsub.s32 %v3500, %v3920
    %v3922 = vrot.slane %v3258, %v3921
    %v3923 = vsel %vm3505, %v3922, %v3918
    %v3924 = vlaneseq
    %v3925 = vshrl.u32 %v3924, 7
    %v3926 = vsub.s32 %v3507, %v3925
    %v3927 = vrot.slane %v3260, %v3926
    %v3928 = vsel %vm3512, %v3927, %v3923
    %v3929 = vlaneseq
    %v3930 = vshrl.u32 %v3929, 7
    %v3931 = vsub.s32 %v3514, %v3930
    %v3932 = vrot.slane %v3262, %v3931
    %v3933 = vsel %vm3519, %v3932, %v3928
    %v3934 = vlaneseq
    %v3935 = vshrl.u32 %v3934, 7
    %v3936 = vsub.s32 %v3521, %v3935
    %v3937 = vrot.slane %v3264, %v3936
    %v3938 = vsel %vm3526, %v3937, %v3933
    %v3939 = vlaneseq
    %v3940 = vshrl.u32 %v3939, 7
    %v3941 = vsub.s32 %v3528, %v3940
    %v3942 = vrot.slane %v3266, %v3941
    %v3943 = vsel %vm3533, %v3942, %v3938
    %v3944 = vlaneseq
    %v3945 = vshrl.u32 %v3944, 7
    %v3946 = vsub.s32 %v3535, %v3945
    %v3947 = vrot.slane %v3268, %v3946
    %v3948 = vsel %vm3540, %v3947, %v3943
    %v3949 = vlaneseq
    %v3950 = vshrl.u32 %v3949, 7
    %v3951 = vsub.s32 %v3542, %v3950
    %v3952 = vrot.slane %v3270, %v3951
    %v3953 = vsel %vm3547, %v3952, %v3948
    %v3954 = vlaneseq
    %v3955 = vshrl.u32 %v3954, 7
    %v3956 = vsub.s32 %v3549, %v3955
    %v3957 = vrot.slane %v3272, %v3956
    %v3958 = vsel %vm3554, %v3957, %v3953
    %v3959 = vlaneseq
    %v3960 = vshrl.u32 %v3959, 7
    %v3961 = vsub.s32 %v3556, %v3960
    %v3962 = vrot.slane %v3274, %v3961
    %v3963 = vsel %vm3561, %v3962, %v3958
    %v3964 = vlaneseq
    %v3965 = vshrl.u32 %v3964, 7
    %v3966 = vsub.s32 %v3563, %v3965
    %v3967 = vrot.slane %v3276, %v3966
    %v3968 = vsel %vm3568, %v3967, %v3963
    %v3969 = vlaneseq
    %v3970 = vshrl.u32 %v3969, 7
    %v3971 = vsub.s32 %v3570, %v3970
    %v3972 = vrot.slane %v3278, %v3971
    %v3973 = vsel %vm3575, %v3972, %v3968
    %v3974 = vlaneseq
    %v3975 = vshrl.u32 %v3974, 7
    %v3976 = vsub.s32 %v3577, %v3975
    %v3977 = vrot.slane %v3280, %v3976
    %v3978 = vsel %vm3582, %v3977, %v3973
    %v3979 = vlaneseq
    %v3980 = vshrl.u32 %v3979, 7
    %v3981 = vsub.s32 %v3474, %v3980
    %v3982 = vrot.slane %v3282, %v3981
    %v3983 = vlaneseq
    %v3984 = vshrl.u32 %v3983, 7
    %v3985 = vsub.s32 %v3479, %v3984
    %v3986 = vrot.slane %v3284, %v3985
    %v3987 = vsel %vm3484, %v3986, %v3982
    %v3988 = vlaneseq
    %v3989 = vshrl.u32 %v3988, 7
    %v3990 = vsub.s32 %v3486, %v3989
    %v3991 = vrot.slane %v3286, %v3990
    %v3992 = vsel %vm3491, %v3991, %v3987
    %v3993 = vlaneseq
    %v3994 = vshrl.u32 %v3993, 7
    %v3995 = vsub.s32 %v3493, %v3994
    %v3996 = vrot.slane %v3288, %v3995
    %v3997 = vsel %vm3498, %v3996, %v3992
    %v3998 = vlaneseq
    %v3999 = vshrl.u32 %v3998, 7
    %v4000 = vsub.s32 %v3500, %v3999
    %v4001 = vrot.slane %v3290, %v4000
    %v4002 = vsel %vm3505, %v4001, %v3997
    %v4003 = vlaneseq
    %v4004 = vshrl.u32 %v4003, 7
    %v4005 = vsub.s32 %v3507, %v4004
    %v4006 = vrot.slane %v3292, %v4005
    %v4007 = vsel %vm3512, %v4006, %v4002
    %v4008 = vlaneseq
    %v4009 = vshrl.u32 %v4008, 7
    %v4010 = vsub.s32 %v3514, %v4009
    %v4011 = vrot.slane %v3294, %v4010
    %v4012 = vsel %vm3519, %v4011, %v4007
    %v4013 = vlaneseq
    %v4014 = vshrl.u32 %v4013, 7
    %v4015 = vsub.s32 %v3521, %v4014
    %v4016 = vrot.slane %v3296, %v4015
    %v4017 = vsel %vm3526, %v4016, %v4012
    %v4018 = vlaneseq
    %v4019 = vshrl.u32 %v4018, 7
    %v4020 = vsub.s32 %v3528, %v4019
    %v4021 = vrot.slane %v3298, %v4020
    %v4022 = vsel %vm3533, %v4021, %v4017
    %v4023 = vlaneseq
    %v4024 = vshrl.u32 %v4023, 7
    %v4025 = vsub.s32 %v3535, %v4024
    %v4026 = vrot.slane %v3300, %v4025
    %v4027 = vsel %vm3540, %v4026, %v4022
    %v4028 = vlaneseq
    %v4029 = vshrl.u32 %v4028, 7
    %v4030 = vsub.s32 %v3542, %v4029
    %v4031 = vrot.slane %v3302, %v4030
    %v4032 = vsel %vm3547, %v4031, %v4027
    %v4033 = vlaneseq
    %v4034 = vshrl.u32 %v4033, 7
    %v4035 = vsub.s32 %v3549, %v4034
    %v4036 = vrot.slane %v3304, %v4035
    %v4037 = vsel %vm3554, %v4036, %v4032
    %v4038 = vlaneseq
    %v4039 = vshrl.u32 %v4038, 7
    %v4040 = vsub.s32 %v3556, %v4039
    %v4041 = vrot.slane %v3306, %v4040
    %v4042 = vsel %vm3561, %v4041, %v4037
    %v4043 = vlaneseq
    %v4044 = vshrl.u32 %v4043, 7
    %v4045 = vsub.s32 %v3563, %v4044
    %v4046 = vrot.slane %v3308, %v4045
    %v4047 = vsel %vm3568, %v4046, %v4042
    %v4048 = vlaneseq
    %v4049 = vshrl.u32 %v4048, 7
    %v4050 = vsub.s32 %v3570, %v4049
    %v4051 = vrot.slane %v3310, %v4050
    %v4052 = vsel %vm3575, %v4051, %v4047
    %v4053 = vlaneseq
    %v4054 = vshrl.u32 %v4053, 7
    %v4055 = vsub.s32 %v3577, %v4054
    %v4056 = vrot.slane %v3312, %v4055
    %v4057 = vsel %vm3582, %v4056, %v4052
    %v4058 = vlaneseq
    %v4059 = vshrl.u32 %v4058, 7
    %v4060 = vsub.s32 %v3474, %v4059
    %v4061 = vrot.slane %v3314, %v4060
    %v4062 = vlaneseq
    %v4063 = vshrl.u32 %v4062, 7
    %v4064 = vsub.s32 %v3479, %v4063
    %v4065 = vrot.slane %v3316, %v4064
    %v4066 = vsel %vm3484, %v4065, %v4061
    %v4067 = vlaneseq
    %v4068 = vshrl.u32 %v4067, 7
    %v4069 = vsub.s32 %v3486, %v4068
    %v4070 = vrot.slane %v3318, %v4069
    %v4071 = vsel %vm3491, %v4070, %v4066
    %v4072 = vlaneseq
    %v4073 = vshrl.u32 %v4072, 7
    %v4074 = vsub.s32 %v3493, %v4073
    %v4075 = vrot.slane %v3320, %v4074
    %v4076 = vsel %vm3498, %v4075, %v4071
    %v4077 = vlaneseq
    %v4078 = vshrl.u32 %v4077, 7
    %v4079 = vsub.s32 %v3500, %v4078
    %v4080 = vrot.slane %v3322, %v4079
    %v4081 = vsel %vm3505, %v4080, %v4076
    %v4082 = vlaneseq
    %v4083 = vshrl.u32 %v4082, 7
    %v4084 = vsub.s32 %v3507, %v4083
    %v4085 = vrot.slane %v3324, %v4084
    %v4086 = vsel %vm3512, %v4085, %v4081
    %v4087 = vlaneseq
    %v4088 = vshrl.u32 %v4087, 7
    %v4089 = vsub.s32 %v3514, %v4088
    %v4090 = vrot.slane %v3326, %v4089
    %v4091 = vsel %vm3519, %v4090, %v4086
    %v4092 = vlaneseq
    %v4093 = vshrl.u32 %v4092, 7
    %v4094 = vsub.s32 %v3521, %v4093
    %v4095 = vrot.slane %v3328, %v4094
    %v4096 = vsel %vm3526, %v4095, %v4091
    %v4097 = vlaneseq
    %v4098 = vshrl.u32 %v4097, 7
    %v4099 = vsub.s32 %v3528, %v4098
    %v4100 = vrot.slane %v3330, %v4099
    %v4101 = vsel %vm3533, %v4100, %v4096
    %v4102 = vlaneseq
    %v4103 = vshrl.u32 %v4102, 7
    %v4104 = vsub.s32 %v3535, %v4103
    %v4105 = vrot.slane %v3332, %v4104
    %v4106 = vsel %vm3540, %v4105, %v4101
    %v4107 = vlaneseq
    %v4108 = vshrl.u32 %v4107, 7
    %v4109 = vsub.s32 %v3542, %v4108
    %v4110 = vrot.slane %v3334, %v4109
    %v4111 = vsel %vm3547, %v4110, %v4106
    %v4112 = vlaneseq
    %v4113 = vshrl.u32 %v4112, 7
    %v4114 = vsub.s32 %v3549, %v4113
    %v4115 = vrot.slane %v3336, %v4114
    %v4116 = vsel %vm3554, %v4115, %v4111
    %v4117 = vlaneseq
    %v4118 = vshrl.u32 %v4117, 7
    %v4119 = vsub.s32 %v3556, %v4118
    %v4120 = vrot.slane %v3338, %v4119
    %v4121 = vsel %vm3561, %v4120, %v4116
    %v4122 = vlaneseq
    %v4123 = vshrl.u32 %v4122, 7
    %v4124 = vsub.s32 %v3563, %v4123
    %v4125 = vrot.slane %v3340, %v4124
    %v4126 = vsel %vm3568, %v4125, %v4121
    %v4127 = vlaneseq
    %v4128 = vshrl.u32 %v4127, 7
    %v4129 = vsub.s32 %v3570, %v4128
    %v4130 = vrot.slane %v3342, %v4129
    %v4131 = vsel %vm3575, %v4130, %v4126
    %v4132 = vlaneseq
    %v4133 = vshrl.u32 %v4132, 7
    %v4134 = vsub.s32 %v3577, %v4133
    %v4135 = vrot.slane %v3344, %v4134
    %v4136 = vsel %vm3582, %v4135, %v4131
    %vm4137 = vcmask 1041409
    %v4138 = vsel %vm4137, %v3662, %v3583
    %vm4139 = vcmask 1042434
    %v4140 = vsel %vm4139, %v3741, %v4138
    %vm4141 = vcmask 1043459
    %v4142 = vsel %vm4141, %v3820, %v4140
    %vm4143 = vcmask 1044484
    %v4144 = vsel %vm4143, %v3899, %v4142
    %vm4145 = vcmask 1045509
    %v4146 = vsel %vm4145, %v3978, %v4144
    %vm4147 = vcmask 1046534
    %v4148 = vsel %vm4147, %v4057, %v4146
    %vm4149 = vcmask 1047559
    %v4150 = vsel %vm4149, %v4136, %v4148
    %4152 = vst [vmem:[#allocation3] sm:$0xff] %v4150
    // Predicated region
    $region30: #{tpu_custom_call.1} parent=1 // pred_check
      _
    $region31: #{tpu_custom_call.1} parent=1 // pred_check_branch
      %4154 = sbr.rel (0) target = $region33
    $region32: #{tpu_custom_call.1} parent=1 // pred_region
      %s4156 = ssub.s32 128, 128
      %4157 = vsyncadd [#allocation4], %s4156
      %s4159 = sshll.u32 [#allocation3], 4
      %s4160 = int_to_ptr.vmem [resolvable:$true] %s4159
      %4162 = dma.vmem_to_hbm [thread:$0]  %s4160, 128, %s7, [#allocation4]
    $region33: #{tpu_custom_call.1} parent=1 // pred_fallthru
      _
    // Predicated region
    $region34: #{tpu_custom_call.1} parent=1 // pred_check
      _
    $region35: #{tpu_custom_call.1} parent=1 // pred_check_branch
      %4164 = sbr.rel (0) target = $region37
    $region36: #{tpu_custom_call.1} parent=1 // pred_region
      %4165 = dma.done [#allocation4], 128
    $region37: #{tpu_custom_call.1} parent=1 // pred_fallthru
      _
    %4166 = vsyncpa [#allocation4], 1

</llo_original>
